<compile_context>
chip_gen: v7x
topology: tpu7x:2x2x1
jax: 0.10.0
libtpu: 0.0.40
codegen_flags: <defaults>
</compile_context>

<pallas_src>
import jax
import jax.numpy as jnp
from jax.experimental import pallas as pl
from jax.experimental.pallas import tpu as pltpu

VMEM_SPEC = pl.BlockSpec(memory_space=pltpu.MemorySpace.VMEM)

# conv geometry: 28x28, k=5, stride 2 -> 12x12 conv out; 2x2/2 pool -> 6x6
POOL_HW = 6
N_SPATIAL = POOL_HW * POOL_HW          # 36 pooled positions
K_TAPS = 25                            # 5x5 conv taps
C_CONV = 20                            # conv output channels
K_CONV = N_SPATIAL * K_TAPS            # 900 patch columns
K_CONV_PAD = 1024                      # lane-padded patch K
F_DIM = N_SPATIAL * C_CONV             # 720 flattened features
F_PAD = 768                            # lane-padded feature width
H_DIM, H_PAD = 500, 512                # fc1 width (padded)
HEAD_DIM, HEAD_PAD = 12, 128           # [emb(2) | logits(10)] packed head


# ---------------------------------------------------------------------------
# Single fused kernel: conv+relu+pool  ->  fc1+relu  ->  [fc2|fc3]  ->  loss.
# ---------------------------------------------------------------------------
def _net_kernel(p_ref, same_ref, wcb_ref, bcb_ref, w1_ref, b1_ref,
                w23_ref, b23_ref, out_ref):
    m2 = p_ref.shape[0] // 4       # 2N image rows (x0 batch ++ x1 batch)
    npairs = m2 // 2               # N pairs

    # conv1 for all 4 pool offsets (stacked along M) and all 36 pooled
    # positions (block-diagonal weight) in ONE MXU call; bias added once.
    conv = jnp.dot(p_ref[...], wcb_ref[...],
                   preferred_element_type=jnp.float32) + bcb_ref[...]   # (4*2N, 768) f32

    # 2x2 max-pool = max over the 4 offset row-groups; ReLU folded into the
    # max (relu is monotone, so relu(max) == max(relu)).
    pooled = jnp.maximum(jnp.maximum(conv[0 * m2:1 * m2], conv[1 * m2:2 * m2]),
                         jnp.maximum(conv[2 * m2:3 * m2], conv[3 * m2:4 * m2]))
    feat = jnp.maximum(pooled, 0.0)                                     # (2N, 768) f32

    # fc1 + ReLU (bf16 operands, f32 accumulation and elementwise).
    h = jnp.maximum(
        jnp.dot(feat.astype(jnp.bfloat16), w1_ref[...],
                preferred_element_type=jnp.float32) + b1_ref[...], 0.0)  # (2N, 512) f32

    # fused fc2|fc3: cols [0:2] = embedding, [2:12] = logits, rest exactly 0.
    el = jnp.dot(h.astype(jnp.bfloat16), w23_ref[...],
                 preferred_element_type=jnp.float32) + b23_ref[...]      # (2N, 128) f32

    emb0 = el[0:npairs, 0:2]                 # embedding of the x_0 branch
    f0 = el[0:npairs, 2:12]                  # fc3 logits, x_0 branch
    f1 = el[npairs:2 * npairs, 2:12]         # fc3 logits, x_1 branch

    # Contrastive loss (margin = 1.0), computed on the fc3 logits exactly as
    # in the reference Net.
    d = f0 - f1
    d_sq = jnp.sum(d * d, axis=1, keepdims=True)                         # (N, 1)
    # TODO(synk): eps inside sqrt guards d->0; reference may use exact sqrt.
    dist = jnp.sqrt(d_sq + 1e-9)
    hinge = jnp.maximum(1.0 - dist, 0.0)
    y = same_ref[...]
    loss = 0.5 * (y * d_sq + (1.0 - y) * hinge * hinge)                  # (N, 1)

    # One lane-dense (N, 128) output slab: [embedding(2) | loss(1) | zeros].
    out_ref[...] = jnp.concatenate(
        [emb0, loss, jnp.zeros((npairs, HEAD_PAD - 3), jnp.float32)], axis=1)


# ---------------------------------------------------------------------------
# Host-side im2col via strided basic slices (no gathers).
#   For pool offset (dy, dx), pooled pos (ph, pw), tap (kh, kw):
#   input pixel = x[4*ph + 2*dy + kh, 4*pw + 2*dx + kw].
# Rows of the result: offset-major, then batch.  Cols ordered (ph, pw, kh*5+kw).
# ---------------------------------------------------------------------------
def _im2col_pool_offsets(x):
    b = x.shape[0]
    mats = []
    for dy in range(2):
        for dx in range(2):
            taps = []
            for kh in range(5):
                for kw in range(5):
                    r0 = 2 * dy + kh
                    c0 = 2 * dx + kw
                    taps.append(x[:, r0:r0 + 21:4, c0:c0 + 21:4])   # (B, 6, 6)
            p = jnp.stack(taps, axis=-1).reshape(b, K_CONV)         # (B, 900)
            mats.append(p)
    p_all = jnp.concatenate(mats, axis=0)                           # (4B, 900)
    return jnp.pad(p_all, ((0, 0), (0, K_CONV_PAD - K_CONV)))       # (4B, 1024)


# ---------------------------------------------------------------------------
# Parameters (synthetic), pre-transformed into kernel-ready fused/padded form.
# ---------------------------------------------------------------------------
def init_params(key):
    ks = jax.random.split(key, 8)

    # conv1: (25, 20), rows k = kh*5 + kw (torch flatten order)
    wc = 0.05 * jax.random.normal(ks[0], (K_TAPS, C_CONV), jnp.float32)
    bc = 0.05 * jax.random.normal(ks[1], (1, C_CONV), jnp.float32)
    # Block-diagonal conv+flatten weight: (36*25, 36*20) -> padded (1024, 768).
    wcb = jnp.einsum("st,kc->sktc", jnp.eye(N_SPATIAL, dtype=jnp.float32), wc)
    wcb = wcb.reshape(K_CONV, F_DIM)
    wcb = jnp.pad(wcb, ((0, K_CONV_PAD - K_CONV), (0, F_PAD - F_DIM)))
    bcb = jnp.pad(jnp.tile(bc, (1, N_SPATIAL)), ((0, 0), (0, F_PAD - F_DIM)))

    # fc1 (720 -> 500), input rows in (h, w, c) order; padded to (768, 512).
    w1 = 0.02 * jax.random.normal(ks[2], (F_DIM, H_DIM), jnp.float32)
    b1 = 0.02 * jax.random.normal(ks[3], (1, H_DIM), jnp.float32)
    w1p = jnp.pad(w1, ((0, F_PAD - F_DIM), (0, H_PAD - H_DIM)))
    b1p = jnp.pad(b1, ((0, 0), (0, H_PAD - H_DIM)))

    # fc2 (500 -> 2) and fc3 (2 -> 10), fused:
    #   [emb | logits] = h @ [w2 | w2@w3] + [b2 | b2@w3 + b3]
    w2 = 0.05 * jax.random.normal(ks[4], (H_DIM, 2), jnp.float32)
    b2 = 0.05 * jax.random.normal(ks[5], (1, 2), jnp.float32)
    w3 = 0.05 * jax.random.normal(ks[6], (2, 10), jnp.float32)
    b3 = 0.05 * jax.random.normal(ks[7], (1, 10), jnp.float32)
    w23 = jnp.concatenate([w2, w2 @ w3], axis=1)                    # (500, 12)
    b23 = jnp.concatenate([b2, b2 @ w3 + b3], axis=1)               # (1, 12)
    w23p = jnp.pad(w23, ((0, H_PAD - H_DIM), (0, HEAD_PAD - HEAD_DIM)))
    b23p = jnp.pad(b23, ((0, 0), (0, HEAD_PAD - HEAD_DIM)))

    return dict(
        wcb=wcb.astype(jnp.bfloat16),   # large matmul weights in bf16
        bcb=bcb,                        # biases stay f32
        w1=w1p.astype(jnp.bfloat16),
        b1=b1p,
        w23=w23p.astype(jnp.bfloat16),
        b23=b23p,
    )


# ---------------------------------------------------------------------------
# Full Net forward.
# ---------------------------------------------------------------------------
def net_forward(params, images, targets):
    n = images.shape[0]

    # TODO(synk): trw's make_pair_indices uses random numpy pairing; replaced
    # with a deterministic roll-by-1 pairing (same semantics downstream).
    same_target = (targets == jnp.roll(targets, 1)).astype(jnp.float32)

    x0 = images[:, 0].astype(jnp.float32) / 255.0          # (N, 28, 28)
    x1 = jnp.roll(x0, shift=1, axis=0)
    x_all = jnp.concatenate([x0, x1], axis=0)               # (2N, 28, 28)

    p_all = _im2col_pool_offsets(x_all).astype(jnp.bfloat16)  # (8N, 1024)

    slab = pl.pallas_call(
        _net_kernel,
        out_shape=jax.ShapeDtypeStruct((n, HEAD_PAD), jnp.float32),
        in_specs=[VMEM_SPEC] * 8,
        out_specs=VMEM_SPEC,
    )(p_all, same_target.reshape(n, 1),
      params["wcb"], params["bcb"], params["w1"], params["b1"],
      params["w23"], params["b23"])

    return {
        "contrastive_loss": slab[:, 2],      # per-pair loss (OutputLoss payload)
        "embedding": slab[:, 0:2],           # (N, 2) fc2 embedding of x_0
        "embedding_target": targets,         # classes[indices_0] (identity pairing)
    }


if __name__ == "__main__":
    key = jax.random.PRNGKey(0)
    k_img, k_tgt, k_par = jax.random.split(key, 3)

    batch_n = 8
    images = jax.random.uniform(k_img, (batch_n, 1, 28, 28), jnp.float32,
                                minval=0.0, maxval=255.0)
    targets = jax.random.randint(k_tgt, (batch_n,), 0, 10, jnp.int32)
    params = init_params(k_par)

    out = jax.jit(net_forward)(params, images, targets)
    jax.block_until_ready(out)

    assert out["contrastive_loss"].shape == (batch_n,)
    assert out["embedding"].shape == (batch_n, 2)
    assert out["embedding_target"].shape == (batch_n,)
    assert bool(jnp.all(jnp.isfinite(out["contrastive_loss"])))
    assert bool(jnp.all(jnp.isfinite(out["embedding"])))
    print("KERNEL_OK")
</pallas_src>

<mosaic_0001>
module attributes {stable_mosaic.version = 11 : i64} {
  func.func @_net_kernel(%arg0: memref<64x1024xbf16, #tpu.memory_space<vmem>>, %arg1: memref<8x1xf32, #tpu.memory_space<vmem>>, %arg2: memref<1024x768xbf16, #tpu.memory_space<vmem>>, %arg3: memref<1x768xf32, #tpu.memory_space<vmem>>, %arg4: memref<768x512xbf16, #tpu.memory_space<vmem>>, %arg5: memref<1x512xf32, #tpu.memory_space<vmem>>, %arg6: memref<512x128xbf16, #tpu.memory_space<vmem>>, %arg7: memref<1x128xf32, #tpu.memory_space<vmem>>, %arg8: memref<8x128xf32, #tpu.memory_space<vmem>>) attributes {dimension_semantics = [], scalar_prefetch = 0 : i64, scratch_operands = 0 : i64, tpu.core_type = #tpu.core_type<tc>} {
    %c0 = arith.constant 0 : index
    %c0_0 = arith.constant 0 : index
    %0 = vector.load %arg0[%c0, %c0_0] : memref<64x1024xbf16, #tpu.memory_space<vmem>>, vector<64x1024xbf16>
    %c0_1 = arith.constant 0 : index
    %c0_2 = arith.constant 0 : index
    %1 = vector.load %arg2[%c0_1, %c0_2] : memref<1024x768xbf16, #tpu.memory_space<vmem>>, vector<1024x768xbf16>
    %cst = arith.constant dense<0.000000e+00> : vector<64x768xf32>
    %2 = tpu.matmul %0, %1, %cst {dimension_numbers = #tpu.dot_dimension_numbers<[1], [0], [0], [1], [0, 0, 1, 1], [], []>} : vector<64x1024xbf16>, vector<1024x768xbf16>, vector<64x768xf32> -> vector<64x768xf32>
    %c0_3 = arith.constant 0 : index
    %c0_4 = arith.constant 0 : index
    %3 = vector.load %arg3[%c0_3, %c0_4] : memref<1x768xf32, #tpu.memory_space<vmem>>, vector<1x768xf32>
    %4 = vector.broadcast %3 : vector<1x768xf32> to vector<64x768xf32>
    %5 = arith.addf %2, %4 : vector<64x768xf32>
    %6 = vector.extract_strided_slice %5 {offsets = [0, 0], sizes = [16, 768], strides = [1, 1]} : vector<64x768xf32> to vector<16x768xf32>
    %7 = vector.extract_strided_slice %5 {offsets = [16, 0], sizes = [16, 768], strides = [1, 1]} : vector<64x768xf32> to vector<16x768xf32>
    %8 = arith.maximumf %6, %7 : vector<16x768xf32>
    %9 = vector.extract_strided_slice %5 {offsets = [32, 0], sizes = [16, 768], strides = [1, 1]} : vector<64x768xf32> to vector<16x768xf32>
    %10 = vector.extract_strided_slice %5 {offsets = [48, 0], sizes = [16, 768], strides = [1, 1]} : vector<64x768xf32> to vector<16x768xf32>
    %11 = arith.maximumf %9, %10 : vector<16x768xf32>
    %12 = arith.maximumf %8, %11 : vector<16x768xf32>
    %cst_5 = arith.constant 0.000000e+00 : f32
    %13 = vector.broadcast %cst_5 : f32 to vector<16x768xf32>
    %14 = arith.maximumf %12, %13 : vector<16x768xf32>
    %15 = arith.truncf %14 : vector<16x768xf32> to vector<16x768xbf16>
    %c0_6 = arith.constant 0 : index
    %c0_7 = arith.constant 0 : index
    %16 = vector.load %arg4[%c0_6, %c0_7] : memref<768x512xbf16, #tpu.memory_space<vmem>>, vector<768x512xbf16>
    %cst_8 = arith.constant dense<0.000000e+00> : vector<16x512xf32>
    %17 = tpu.matmul %15, %16, %cst_8 {dimension_numbers = #tpu.dot_dimension_numbers<[1], [0], [0], [1], [0, 0, 1, 1], [], []>} : vector<16x768xbf16>, vector<768x512xbf16>, vector<16x512xf32> -> vector<16x512xf32>
    %c0_9 = arith.constant 0 : index
    %c0_10 = arith.constant 0 : index
    %18 = vector.load %arg5[%c0_9, %c0_10] : memref<1x512xf32, #tpu.memory_space<vmem>>, vector<1x512xf32>
    %19 = vector.broadcast %18 : vector<1x512xf32> to vector<16x512xf32>
    %20 = arith.addf %17, %19 : vector<16x512xf32>
    %cst_11 = arith.constant 0.000000e+00 : f32
    %21 = vector.broadcast %cst_11 : f32 to vector<16x512xf32>
    %22 = arith.maximumf %20, %21 : vector<16x512xf32>
    %23 = arith.truncf %22 : vector<16x512xf32> to vector<16x512xbf16>
    %c0_12 = arith.constant 0 : index
    %c0_13 = arith.constant 0 : index
    %24 = vector.load %arg6[%c0_12, %c0_13] : memref<512x128xbf16, #tpu.memory_space<vmem>>, vector<512x128xbf16>
    %cst_14 = arith.constant dense<0.000000e+00> : vector<16x128xf32>
    %25 = tpu.matmul %23, %24, %cst_14 {dimension_numbers = #tpu.dot_dimension_numbers<[1], [0], [0], [1], [0, 0, 1, 1], [], []>} : vector<16x512xbf16>, vector<512x128xbf16>, vector<16x128xf32> -> vector<16x128xf32>
    %c0_15 = arith.constant 0 : index
    %c0_16 = arith.constant 0 : index
    %26 = vector.load %arg7[%c0_15, %c0_16] : memref<1x128xf32, #tpu.memory_space<vmem>>, vector<1x128xf32>
    %27 = vector.broadcast %26 : vector<1x128xf32> to vector<16x128xf32>
    %28 = arith.addf %25, %27 : vector<16x128xf32>
    %29 = vector.extract_strided_slice %28 {offsets = [0, 0], sizes = [8, 2], strides = [1, 1]} : vector<16x128xf32> to vector<8x2xf32>
    %30 = vector.extract_strided_slice %28 {offsets = [0, 2], sizes = [8, 10], strides = [1, 1]} : vector<16x128xf32> to vector<8x10xf32>
    %31 = vector.extract_strided_slice %28 {offsets = [8, 2], sizes = [8, 10], strides = [1, 1]} : vector<16x128xf32> to vector<8x10xf32>
    %32 = arith.subf %30, %31 : vector<8x10xf32>
    %33 = arith.mulf %32, %32 : vector<8x10xf32>
    %cst_17 = arith.constant dense<0.000000e+00> : vector<8xf32>
    %34 = vector.multi_reduction <add>, %33, %cst_17 [1] : vector<8x10xf32> to vector<8xf32>
    %35 = vector.shape_cast %34 : vector<8xf32> to vector<8x1xf32>
    %cst_18 = arith.constant 9.99999971E-10 : f32
    %36 = vector.broadcast %cst_18 : f32 to vector<8x1xf32>
    %37 = arith.addf %35, %36 : vector<8x1xf32>
    %38 = math.sqrt %37 : vector<8x1xf32>
    %cst_19 = arith.constant 1.000000e+00 : f32
    %39 = vector.broadcast %cst_19 : f32 to vector<8x1xf32>
    %40 = arith.subf %39, %38 : vector<8x1xf32>
    %cst_20 = arith.constant 0.000000e+00 : f32
    %41 = vector.broadcast %cst_20 : f32 to vector<8x1xf32>
    %42 = arith.maximumf %40, %41 : vector<8x1xf32>
    %c0_21 = arith.constant 0 : index
    %c0_22 = arith.constant 0 : index
    %43 = vector.load %arg1[%c0_21, %c0_22] : memref<8x1xf32, #tpu.memory_space<vmem>>, vector<8x1xf32>
    %44 = arith.mulf %43, %35 : vector<8x1xf32>
    %cst_23 = arith.constant 1.000000e+00 : f32
    %45 = vector.broadcast %cst_23 : f32 to vector<8x1xf32>
    %46 = arith.subf %45, %43 : vector<8x1xf32>
    %47 = arith.mulf %46, %42 : vector<8x1xf32>
    %48 = arith.mulf %47, %42 : vector<8x1xf32>
    %49 = arith.addf %44, %48 : vector<8x1xf32>
    %cst_24 = arith.constant 5.000000e-01 : f32
    %50 = vector.broadcast %cst_24 : f32 to vector<8x1xf32>
    %51 = arith.mulf %50, %49 : vector<8x1xf32>
    %cst_25 = arith.constant 0.000000e+00 : f32
    %52 = vector.broadcast %cst_25 : f32 to vector<8x125xf32>
    %53 = tpu.concatenate %29, %51, %52 in 1 : vector<8x2xf32>, vector<8x1xf32>, vector<8x125xf32> -> vector<8x128xf32>
    %c0_26 = arith.constant 0 : index
    %c0_27 = arith.constant 0 : index
    %54 = vector.load %arg8[%c0_26, %c0_27] : memref<8x128xf32, #tpu.memory_space<vmem>>, vector<8x128xf32>
    tpu.vector_store %arg8[%c0_26, %c0_27], %53 {strides = array<i32>} : memref<8x128xf32, #tpu.memory_space<vmem>>, vector<8x128xf32>,
    return
  }
}

</mosaic_0001>

<llo_original>
// kernel: net_forward.1
$region0: #{net_forward.1}
  #allocation0 [shape = 'u32[]', space=smem, size = 0x4, offset = 0x4, fixed_abs, tag = 'smem constant byte address 0x4 - core index']
  #allocation1 [shape = 'u32[144,128]{1,0:T(1,128)}', space=vmem, size = 0x12000, scoped, tag = 'internal scratch']
  %s0 = inlined_call_operand.vmem [shape: bf16[64,1024], index: 0, kind: input, shape index: {}]
  %s1 = inlined_call_operand.vmem [shape: f32[8,1], index: 1, kind: input, shape index: {}]
  %s2 = inlined_call_operand.vmem [shape: bf16[1024,768], index: 2, kind: input, shape index: {}]
  %s3 = inlined_call_operand.vmem [shape: f32[1,768], index: 3, kind: input, shape index: {}]
  %s4 = inlined_call_operand.vmem [shape: bf16[768,512], index: 4, kind: input, shape index: {}]
  %s5 = inlined_call_operand.vmem [shape: f32[1,512], index: 5, kind: input, shape index: {}]
  %s6 = inlined_call_operand.vmem [shape: bf16[512,128], index: 6, kind: input, shape index: {}]
  %s7 = inlined_call_operand.vmem [shape: f32[1,128], index: 7, kind: input, shape index: {}]
  %s8 = inlined_call_operand.vmem [shape: f32[8,128], index: 8, kind: output, shape index: {}]
  %s9 = sld [smem:[#allocation0]]
  $region42: #{net_forward.1} parent=0
    _
  %s11 = ssub.s32 1, %s9
  %s12 = scalar_select 0, %s11, %s9
  // Predicated region
  $region2: #{net_forward.1} parent=0 // pred_check
    _
  $region3: #{net_forward.1} parent=0 // pred_check_branch
    %14 = sbr.rel (0) target = $region5
  $region4: #{net_forward.1} parent=0 // pred_region
    _
  $region5: #{net_forward.1} parent=0 // pred_fallthru
    _
  // Predicated region
  $region6: #{net_forward.1} parent=0 // pred_check
    _
  $region7: #{net_forward.1} parent=0 // pred_check_branch
    %16 = sbr.rel (0) target = $region9
  $region8: #{net_forward.1} parent=0 // pred_region
    _
  $region9: #{net_forward.1} parent=0 // pred_fallthru
    _
  // Predicated region
  $region10: #{net_forward.1} parent=0 // pred_check
    _
  $region11: #{net_forward.1} parent=0 // pred_check_branch
    %18 = sbr.rel (0) target = $region13
  $region12: #{net_forward.1} parent=0 // pred_region
    _
  $region13: #{net_forward.1} parent=0 // pred_fallthru
    _
  // Predicated region
  $region14: #{net_forward.1} parent=0 // pred_check
    _
  $region15: #{net_forward.1} parent=0 // pred_check_branch
    %20 = sbr.rel (0) target = $region17
  $region16: #{net_forward.1} parent=0 // pred_region
    _
  $region17: #{net_forward.1} parent=0 // pred_fallthru
    _
  // Predicated region
  $region18: #{net_forward.1} parent=0 // pred_check
    _
  $region19: #{net_forward.1} parent=0 // pred_check_branch
    %22 = sbr.rel (0) target = $region21
  $region20: #{net_forward.1} parent=0 // pred_region
    _
  $region21: #{net_forward.1} parent=0 // pred_fallthru
    _
  // Predicated region
  $region22: #{net_forward.1} parent=0 // pred_check
    _
  $region23: #{net_forward.1} parent=0 // pred_check_branch
    %24 = sbr.rel (0) target = $region25
  $region24: #{net_forward.1} parent=0 // pred_region
    _
  $region25: #{net_forward.1} parent=0 // pred_fallthru
    _
  // Predicated region
  $region26: #{net_forward.1} parent=0 // pred_check
    _
  $region27: #{net_forward.1} parent=0 // pred_check_branch
    %26 = sbr.rel (0) target = $region29
  $region28: #{net_forward.1} parent=0 // pred_region
    _
  $region29: #{net_forward.1} parent=0 // pred_fallthru
    _
  // Predicated region
  $region30: #{net_forward.1} parent=0 // pred_check
    _
  $region31: #{net_forward.1} parent=0 // pred_check_branch
    %28 = sbr.rel (0) target = $region33
  $region32: #{net_forward.1} parent=0 // pred_region
    _
  $region33: #{net_forward.1} parent=0 // pred_fallthru
    _
  %v30 = vld [vmem:[%s0] sm:$0xff]
  %v31 = vld [vmem:[%s0 + $0x8] sm:$0xff]
  %v32 = vld [vmem:[%s0 + $0x10] sm:$0xff]
  %v33 = vld [vmem:[%s0 + $0x18] sm:$0xff]
  %v34 = vld [vmem:[%s0 + $0x20] sm:$0xff]
  %v35 = vld [vmem:[%s0 + $0x28] sm:$0xff]
  %v36 = vld [vmem:[%s0 + $0x30] sm:$0xff]
  %v37 = vld [vmem:[%s0 + $0x38] sm:$0xff]
  %v38 = vld [vmem:[%s0 + $0x40] sm:$0xff]
  %v39 = vld [vmem:[%s0 + $0x48] sm:$0xff]
  %v40 = vld [vmem:[%s0 + $0x50] sm:$0xff]
  %v41 = vld [vmem:[%s0 + $0x58] sm:$0xff]
  %v42 = vld [vmem:[%s0 + $0x60] sm:$0xff]
  %v43 = vld [vmem:[%s0 + $0x68] sm:$0xff]
  %v44 = vld [vmem:[%s0 + $0x70] sm:$0xff]
  %v45 = vld [vmem:[%s0 + $0x78] sm:$0xff]
  %v46 = vld [vmem:[%s0 + $0x80] sm:$0xff]
  %v47 = vld [vmem:[%s0 + $0x88] sm:$0xff]
  %v48 = vld [vmem:[%s0 + $0x90] sm:$0xff]
  %v49 = vld [vmem:[%s0 + $0x98] sm:$0xff]
  %v50 = vld [vmem:[%s0 + $0xa0] sm:$0xff]
  %v51 = vld [vmem:[%s0 + $0xa8] sm:$0xff]
  %v52 = vld [vmem:[%s0 + $0xb0] sm:$0xff]
  %v53 = vld [vmem:[%s0 + $0xb8] sm:$0xff]
  %v54 = vld [vmem:[%s0 + $0xc0] sm:$0xff]
  %v55 = vld [vmem:[%s0 + $0xc8] sm:$0xff]
  %v56 = vld [vmem:[%s0 + $0xd0] sm:$0xff]
  %v57 = vld [vmem:[%s0 + $0xd8] sm:$0xff]
  %v58 = vld [vmem:[%s0 + $0xe0] sm:$0xff]
  %v59 = vld [vmem:[%s0 + $0xe8] sm:$0xff]
  %v60 = vld [vmem:[%s0 + $0xf0] sm:$0xff]
  %v61 = vld [vmem:[%s0 + $0xf8] sm:$0xff]
  %v62 = vld [vmem:[%s2] sm:$0xff]
  %v63 = vld [vmem:[%s2 + $0x8] sm:$0xff]
  %v64 = vld [vmem:[%s2 + $0x10] sm:$0xff]
  %v65 = vld [vmem:[%s2 + $0x18] sm:$0xff]
  %v66 = vld [vmem:[%s2 + $0x20] sm:$0xff]
  %v67 = vld [vmem:[%s2 + $0x28] sm:$0xff]
  %v68 = vld [vmem:[%s2 + $0x30] sm:$0xff]
  %v69 = vld [vmem:[%s2 + $0x38] sm:$0xff]
  %v70 = vld [vmem:[%s2 + $0x40] sm:$0xff]
  %v71 = vld [vmem:[%s2 + $0x48] sm:$0xff]
  %v72 = vld [vmem:[%s2 + $0x50] sm:$0xff]
  %v73 = vld [vmem:[%s2 + $0x58] sm:$0xff]
  %v74 = vld [vmem:[%s2 + $0x60] sm:$0xff]
  %v75 = vld [vmem:[%s2 + $0x68] sm:$0xff]
  %v76 = vld [vmem:[%s2 + $0x70] sm:$0xff]
  %v77 = vld [vmem:[%s2 + $0x78] sm:$0xff]
  %v78 = vld [vmem:[%s2 + $0x80] sm:$0xff]
  %v79 = vld [vmem:[%s2 + $0x88] sm:$0xff]
  %v80 = vld [vmem:[%s2 + $0x90] sm:$0xff]
  %v81 = vld [vmem:[%s2 + $0x98] sm:$0xff]
  %v82 = vld [vmem:[%s2 + $0xa0] sm:$0xff]
  %v83 = vld [vmem:[%s2 + $0xa8] sm:$0xff]
  %v84 = vld [vmem:[%s2 + $0xb0] sm:$0xff]
  %v85 = vld [vmem:[%s2 + $0xb8] sm:$0xff]
  %v86 = vld [vmem:[%s2 + $0xc0] sm:$0xff]
  %v87 = vld [vmem:[%s2 + $0xc8] sm:$0xff]
  %v88 = vld [vmem:[%s2 + $0xd0] sm:$0xff]
  %v89 = vld [vmem:[%s2 + $0xd8] sm:$0xff]
  %v90 = vld [vmem:[%s2 + $0xe0] sm:$0xff]
  %v91 = vld [vmem:[%s2 + $0xe8] sm:$0xff]
  %v92 = vld [vmem:[%s2 + $0xf0] sm:$0xff]
  %v93 = vld [vmem:[%s2 + $0xf8] sm:$0xff]
  %v94 = vld [vmem:[%s2 + $0x100] sm:$0xff]
  %v95 = vld [vmem:[%s2 + $0x108] sm:$0xff]
  %v96 = vld [vmem:[%s2 + $0x110] sm:$0xff]
  %v97 = vld [vmem:[%s2 + $0x118] sm:$0xff]
  %v98 = vld [vmem:[%s2 + $0x120] sm:$0xff]
  %v99 = vld [vmem:[%s2 + $0x128] sm:$0xff]
  %v100 = vld [vmem:[%s2 + $0x130] sm:$0xff]
  %v101 = vld [vmem:[%s2 + $0x138] sm:$0xff]
  %v102 = vld [vmem:[%s2 + $0x140] sm:$0xff]
  %v103 = vld [vmem:[%s2 + $0x148] sm:$0xff]
  %v104 = vld [vmem:[%s2 + $0x150] sm:$0xff]
  %v105 = vld [vmem:[%s2 + $0x158] sm:$0xff]
  %v106 = vld [vmem:[%s2 + $0x160] sm:$0xff]
  %v107 = vld [vmem:[%s2 + $0x168] sm:$0xff]
  %v108 = vld [vmem:[%s2 + $0x170] sm:$0xff]
  %v109 = vld [vmem:[%s2 + $0x178] sm:$0xff]
  %v110 = vld [vmem:[%s2 + $0x180] sm:$0xff]
  %v111 = vld [vmem:[%s2 + $0x188] sm:$0xff]
  %v112 = vld [vmem:[%s2 + $0x190] sm:$0xff]
  %v113 = vld [vmem:[%s2 + $0x198] sm:$0xff]
  %v114 = vld [vmem:[%s2 + $0x1a0] sm:$0xff]
  %v115 = vld [vmem:[%s2 + $0x1a8] sm:$0xff]
  %v116 = vld [vmem:[%s2 + $0x1b0] sm:$0xff]
  %v117 = vld [vmem:[%s2 + $0x1b8] sm:$0xff]
  %v118 = vld [vmem:[%s2 + $0x1c0] sm:$0xff]
  %v119 = vld [vmem:[%s2 + $0x1c8] sm:$0xff]
  %v120 = vld [vmem:[%s2 + $0x1d0] sm:$0xff]
  %v121 = vld [vmem:[%s2 + $0x1d8] sm:$0xff]
  %v122 = vld [vmem:[%s2 + $0x1e0] sm:$0xff]
  %v123 = vld [vmem:[%s2 + $0x1e8] sm:$0xff]
  %v124 = vld [vmem:[%s2 + $0x1f0] sm:$0xff]
  %v125 = vld [vmem:[%s2 + $0x1f8] sm:$0xff]
  %v126 = vld [vmem:[%s2 + $0x200] sm:$0xff]
  %v127 = vld [vmem:[%s2 + $0x208] sm:$0xff]
  %v128 = vld [vmem:[%s2 + $0x210] sm:$0xff]
  %v129 = vld [vmem:[%s2 + $0x218] sm:$0xff]
  %v130 = vld [vmem:[%s2 + $0x220] sm:$0xff]
  %v131 = vld [vmem:[%s2 + $0x228] sm:$0xff]
  %v132 = vld [vmem:[%s2 + $0x230] sm:$0xff]
  %v133 = vld [vmem:[%s2 + $0x238] sm:$0xff]
  %v134 = vld [vmem:[%s2 + $0x240] sm:$0xff]
  %v135 = vld [vmem:[%s2 + $0x248] sm:$0xff]
  %v136 = vld [vmem:[%s2 + $0x250] sm:$0xff]
  %v137 = vld [vmem:[%s2 + $0x258] sm:$0xff]
  %v138 = vld [vmem:[%s2 + $0x260] sm:$0xff]
  %v139 = vld [vmem:[%s2 + $0x268] sm:$0xff]
  %v140 = vld [vmem:[%s2 + $0x270] sm:$0xff]
  %v141 = vld [vmem:[%s2 + $0x278] sm:$0xff]
  %v142 = vld [vmem:[%s2 + $0x280] sm:$0xff]
  %v143 = vld [vmem:[%s2 + $0x288] sm:$0xff]
  %v144 = vld [vmem:[%s2 + $0x290] sm:$0xff]
  %v145 = vld [vmem:[%s2 + $0x298] sm:$0xff]
  %v146 = vld [vmem:[%s2 + $0x2a0] sm:$0xff]
  %v147 = vld [vmem:[%s2 + $0x2a8] sm:$0xff]
  %v148 = vld [vmem:[%s2 + $0x2b0] sm:$0xff]
  %v149 = vld [vmem:[%s2 + $0x2b8] sm:$0xff]
  %v150 = vld [vmem:[%s2 + $0x2c0] sm:$0xff]
  %v151 = vld [vmem:[%s2 + $0x2c8] sm:$0xff]
  %v152 = vld [vmem:[%s2 + $0x2d0] sm:$0xff]
  %v153 = vld [vmem:[%s2 + $0x2d8] sm:$0xff]
  %v154 = vld [vmem:[%s2 + $0x2e0] sm:$0xff]
  %v155 = vld [vmem:[%s2 + $0x2e8] sm:$0xff]
  %v156 = vld [vmem:[%s2 + $0x2f0] sm:$0xff]
  %v157 = vld [vmem:[%s2 + $0x2f8] sm:$0xff]
  %v158 = vld [vmem:[%s2 + $0x300] sm:$0xff]
  %v159 = vld [vmem:[%s2 + $0x308] sm:$0xff]
  %v160 = vld [vmem:[%s2 + $0x310] sm:$0xff]
  %v161 = vld [vmem:[%s2 + $0x318] sm:$0xff]
  %v162 = vld [vmem:[%s2 + $0x320] sm:$0xff]
  %v163 = vld [vmem:[%s2 + $0x328] sm:$0xff]
  %v164 = vld [vmem:[%s2 + $0x330] sm:$0xff]
  %v165 = vld [vmem:[%s2 + $0x338] sm:$0xff]
  %v166 = vld [vmem:[%s2 + $0x340] sm:$0xff]
  %v167 = vld [vmem:[%s2 + $0x348] sm:$0xff]
  %v168 = vld [vmem:[%s2 + $0x350] sm:$0xff]
  %v169 = vld [vmem:[%s2 + $0x358] sm:$0xff]
  %v170 = vld [vmem:[%s2 + $0x360] sm:$0xff]
  %v171 = vld [vmem:[%s2 + $0x368] sm:$0xff]
  %v172 = vld [vmem:[%s2 + $0x370] sm:$0xff]
  %v173 = vld [vmem:[%s2 + $0x378] sm:$0xff]
  %v174 = vld [vmem:[%s2 + $0x380] sm:$0xff]
  %v175 = vld [vmem:[%s2 + $0x388] sm:$0xff]
  %v176 = vld [vmem:[%s2 + $0x390] sm:$0xff]
  %v177 = vld [vmem:[%s2 + $0x398] sm:$0xff]
  %v178 = vld [vmem:[%s2 + $0x3a0] sm:$0xff]
  %v179 = vld [vmem:[%s2 + $0x3a8] sm:$0xff]
  %v180 = vld [vmem:[%s2 + $0x3b0] sm:$0xff]
  %v181 = vld [vmem:[%s2 + $0x3b8] sm:$0xff]
  %v182 = vld [vmem:[%s2 + $0x3c0] sm:$0xff]
  %v183 = vld [vmem:[%s2 + $0x3c8] sm:$0xff]
  %v184 = vld [vmem:[%s2 + $0x3d0] sm:$0xff]
  %v185 = vld [vmem:[%s2 + $0x3d8] sm:$0xff]
  %v186 = vld [vmem:[%s2 + $0x3e0] sm:$0xff]
  %v187 = vld [vmem:[%s2 + $0x3e8] sm:$0xff]
  %v188 = vld [vmem:[%s2 + $0x3f0] sm:$0xff]
  %v189 = vld [vmem:[%s2 + $0x3f8] sm:$0xff]
  %v190 = vld [vmem:[%s2 + $0x400] sm:$0xff]
  %v191 = vld [vmem:[%s2 + $0x408] sm:$0xff]
  %v192 = vld [vmem:[%s2 + $0x410] sm:$0xff]
  %v193 = vld [vmem:[%s2 + $0x418] sm:$0xff]
  %v194 = vld [vmem:[%s2 + $0x420] sm:$0xff]
  %v195 = vld [vmem:[%s2 + $0x428] sm:$0xff]
  %v196 = vld [vmem:[%s2 + $0x430] sm:$0xff]
  %v197 = vld [vmem:[%s2 + $0x438] sm:$0xff]
  %v198 = vld [vmem:[%s2 + $0x440] sm:$0xff]
  %v199 = vld [vmem:[%s2 + $0x448] sm:$0xff]
  %v200 = vld [vmem:[%s2 + $0x450] sm:$0xff]
  %v201 = vld [vmem:[%s2 + $0x458] sm:$0xff]
  %v202 = vld [vmem:[%s2 + $0x460] sm:$0xff]
  %v203 = vld [vmem:[%s2 + $0x468] sm:$0xff]
  %v204 = vld [vmem:[%s2 + $0x470] sm:$0xff]
  %v205 = vld [vmem:[%s2 + $0x478] sm:$0xff]
  %v206 = vld [vmem:[%s2 + $0x480] sm:$0xff]
  %v207 = vld [vmem:[%s2 + $0x488] sm:$0xff]
  %v208 = vld [vmem:[%s2 + $0x490] sm:$0xff]
  %v209 = vld [vmem:[%s2 + $0x498] sm:$0xff]
  %v210 = vld [vmem:[%s2 + $0x4a0] sm:$0xff]
  %v211 = vld [vmem:[%s2 + $0x4a8] sm:$0xff]
  %v212 = vld [vmem:[%s2 + $0x4b0] sm:$0xff]
  %v213 = vld [vmem:[%s2 + $0x4b8] sm:$0xff]
  %v214 = vld [vmem:[%s2 + $0x4c0] sm:$0xff]
  %v215 = vld [vmem:[%s2 + $0x4c8] sm:$0xff]
  %v216 = vld [vmem:[%s2 + $0x4d0] sm:$0xff]
  %v217 = vld [vmem:[%s2 + $0x4d8] sm:$0xff]
  %v218 = vld [vmem:[%s2 + $0x4e0] sm:$0xff]
  %v219 = vld [vmem:[%s2 + $0x4e8] sm:$0xff]
  %v220 = vld [vmem:[%s2 + $0x4f0] sm:$0xff]
  %v221 = vld [vmem:[%s2 + $0x4f8] sm:$0xff]
  %v222 = vld [vmem:[%s2 + $0x500] sm:$0xff]
  %v223 = vld [vmem:[%s2 + $0x508] sm:$0xff]
  %v224 = vld [vmem:[%s2 + $0x510] sm:$0xff]
  %v225 = vld [vmem:[%s2 + $0x518] sm:$0xff]
  %v226 = vld [vmem:[%s2 + $0x520] sm:$0xff]
  %v227 = vld [vmem:[%s2 + $0x528] sm:$0xff]
  %v228 = vld [vmem:[%s2 + $0x530] sm:$0xff]
  %v229 = vld [vmem:[%s2 + $0x538] sm:$0xff]
  %v230 = vld [vmem:[%s2 + $0x540] sm:$0xff]
  %v231 = vld [vmem:[%s2 + $0x548] sm:$0xff]
  %v232 = vld [vmem:[%s2 + $0x550] sm:$0xff]
  %v233 = vld [vmem:[%s2 + $0x558] sm:$0xff]
  %v234 = vld [vmem:[%s2 + $0x560] sm:$0xff]
  %v235 = vld [vmem:[%s2 + $0x568] sm:$0xff]
  %v236 = vld [vmem:[%s2 + $0x570] sm:$0xff]
  %v237 = vld [vmem:[%s2 + $0x578] sm:$0xff]
  %v238 = vld [vmem:[%s2 + $0x580] sm:$0xff]
  %v239 = vld [vmem:[%s2 + $0x588] sm:$0xff]
  %v240 = vld [vmem:[%s2 + $0x590] sm:$0xff]
  %v241 = vld [vmem:[%s2 + $0x598] sm:$0xff]
  %v242 = vld [vmem:[%s2 + $0x5a0] sm:$0xff]
  %v243 = vld [vmem:[%s2 + $0x5a8] sm:$0xff]
  %v244 = vld [vmem:[%s2 + $0x5b0] sm:$0xff]
  %v245 = vld [vmem:[%s2 + $0x5b8] sm:$0xff]
  %v246 = vld [vmem:[%s2 + $0x5c0] sm:$0xff]
  %v247 = vld [vmem:[%s2 + $0x5c8] sm:$0xff]
  %v248 = vld [vmem:[%s2 + $0x5d0] sm:$0xff]
  %v249 = vld [vmem:[%s2 + $0x5d8] sm:$0xff]
  %v250 = vld [vmem:[%s2 + $0x5e0] sm:$0xff]
  %v251 = vld [vmem:[%s2 + $0x5e8] sm:$0xff]
  %v252 = vld [vmem:[%s2 + $0x5f0] sm:$0xff]
  %v253 = vld [vmem:[%s2 + $0x5f8] sm:$0xff]
  %v254 = vld [vmem:[%s2 + $0x600] sm:$0xff]
  %v255 = vld [vmem:[%s2 + $0x608] sm:$0xff]
  %v256 = vld [vmem:[%s2 + $0x610] sm:$0xff]
  %v257 = vld [vmem:[%s2 + $0x618] sm:$0xff]
  %v258 = vld [vmem:[%s2 + $0x620] sm:$0xff]
  %v259 = vld [vmem:[%s2 + $0x628] sm:$0xff]
  %v260 = vld [vmem:[%s2 + $0x630] sm:$0xff]
  %v261 = vld [vmem:[%s2 + $0x638] sm:$0xff]
  %v262 = vld [vmem:[%s2 + $0x640] sm:$0xff]
  %v263 = vld [vmem:[%s2 + $0x648] sm:$0xff]
  %v264 = vld [vmem:[%s2 + $0x650] sm:$0xff]
  %v265 = vld [vmem:[%s2 + $0x658] sm:$0xff]
  %v266 = vld [vmem:[%s2 + $0x660] sm:$0xff]
  %v267 = vld [vmem:[%s2 + $0x668] sm:$0xff]
  %v268 = vld [vmem:[%s2 + $0x670] sm:$0xff]
  %v269 = vld [vmem:[%s2 + $0x678] sm:$0xff]
  %v270 = vld [vmem:[%s2 + $0x680] sm:$0xff]
  %v271 = vld [vmem:[%s2 + $0x688] sm:$0xff]
  %v272 = vld [vmem:[%s2 + $0x690] sm:$0xff]
  %v273 = vld [vmem:[%s2 + $0x698] sm:$0xff]
  %v274 = vld [vmem:[%s2 + $0x6a0] sm:$0xff]
  %v275 = vld [vmem:[%s2 + $0x6a8] sm:$0xff]
  %v276 = vld [vmem:[%s2 + $0x6b0] sm:$0xff]
  %v277 = vld [vmem:[%s2 + $0x6b8] sm:$0xff]
  %v278 = vld [vmem:[%s2 + $0x6c0] sm:$0xff]
  %v279 = vld [vmem:[%s2 + $0x6c8] sm:$0xff]
  %v280 = vld [vmem:[%s2 + $0x6d0] sm:$0xff]
  %v281 = vld [vmem:[%s2 + $0x6d8] sm:$0xff]
  %v282 = vld [vmem:[%s2 + $0x6e0] sm:$0xff]
  %v283 = vld [vmem:[%s2 + $0x6e8] sm:$0xff]
  %v284 = vld [vmem:[%s2 + $0x6f0] sm:$0xff]
  %v285 = vld [vmem:[%s2 + $0x6f8] sm:$0xff]
  %v286 = vld [vmem:[%s2 + $0x700] sm:$0xff]
  %v287 = vld [vmem:[%s2 + $0x708] sm:$0xff]
  %v288 = vld [vmem:[%s2 + $0x710] sm:$0xff]
  %v289 = vld [vmem:[%s2 + $0x718] sm:$0xff]
  %v290 = vld [vmem:[%s2 + $0x720] sm:$0xff]
  %v291 = vld [vmem:[%s2 + $0x728] sm:$0xff]
  %v292 = vld [vmem:[%s2 + $0x730] sm:$0xff]
  %v293 = vld [vmem:[%s2 + $0x738] sm:$0xff]
  %v294 = vld [vmem:[%s2 + $0x740] sm:$0xff]
  %v295 = vld [vmem:[%s2 + $0x748] sm:$0xff]
  %v296 = vld [vmem:[%s2 + $0x750] sm:$0xff]
  %v297 = vld [vmem:[%s2 + $0x758] sm:$0xff]
  %v298 = vld [vmem:[%s2 + $0x760] sm:$0xff]
  %v299 = vld [vmem:[%s2 + $0x768] sm:$0xff]
  %v300 = vld [vmem:[%s2 + $0x770] sm:$0xff]
  %v301 = vld [vmem:[%s2 + $0x778] sm:$0xff]
  %v302 = vld [vmem:[%s2 + $0x780] sm:$0xff]
  %v303 = vld [vmem:[%s2 + $0x788] sm:$0xff]
  %v304 = vld [vmem:[%s2 + $0x790] sm:$0xff]
  %v305 = vld [vmem:[%s2 + $0x798] sm:$0xff]
  %v306 = vld [vmem:[%s2 + $0x7a0] sm:$0xff]
  %v307 = vld [vmem:[%s2 + $0x7a8] sm:$0xff]
  %v308 = vld [vmem:[%s2 + $0x7b0] sm:$0xff]
  %v309 = vld [vmem:[%s2 + $0x7b8] sm:$0xff]
  %v310 = vld [vmem:[%s2 + $0x7c0] sm:$0xff]
  %v311 = vld [vmem:[%s2 + $0x7c8] sm:$0xff]
  %v312 = vld [vmem:[%s2 + $0x7d0] sm:$0xff]
  %v313 = vld [vmem:[%s2 + $0x7d8] sm:$0xff]
  %v314 = vld [vmem:[%s2 + $0x7e0] sm:$0xff]
  %v315 = vld [vmem:[%s2 + $0x7e8] sm:$0xff]
  %v316 = vld [vmem:[%s2 + $0x7f0] sm:$0xff]
  %v317 = vld [vmem:[%s2 + $0x7f8] sm:$0xff]
  %v318 = vld [vmem:[%s2 + $0x800] sm:$0xff]
  %v319 = vld [vmem:[%s2 + $0x808] sm:$0xff]
  %v320 = vld [vmem:[%s2 + $0x810] sm:$0xff]
  %v321 = vld [vmem:[%s2 + $0x818] sm:$0xff]
  %v322 = vld [vmem:[%s2 + $0x820] sm:$0xff]
  %v323 = vld [vmem:[%s2 + $0x828] sm:$0xff]
  %v324 = vld [vmem:[%s2 + $0x830] sm:$0xff]
  %v325 = vld [vmem:[%s2 + $0x838] sm:$0xff]
  %v326 = vld [vmem:[%s2 + $0x840] sm:$0xff]
  %v327 = vld [vmem:[%s2 + $0x848] sm:$0xff]
  %v328 = vld [vmem:[%s2 + $0x850] sm:$0xff]
  %v329 = vld [vmem:[%s2 + $0x858] sm:$0xff]
  %v330 = vld [vmem:[%s2 + $0x860] sm:$0xff]
  %v331 = vld [vmem:[%s2 + $0x868] sm:$0xff]
  %v332 = vld [vmem:[%s2 + $0x870] sm:$0xff]
  %v333 = vld [vmem:[%s2 + $0x878] sm:$0xff]
  %v334 = vld [vmem:[%s2 + $0x880] sm:$0xff]
  %v335 = vld [vmem:[%s2 + $0x888] sm:$0xff]
  %v336 = vld [vmem:[%s2 + $0x890] sm:$0xff]
  %v337 = vld [vmem:[%s2 + $0x898] sm:$0xff]
  %v338 = vld [vmem:[%s2 + $0x8a0] sm:$0xff]
  %v339 = vld [vmem:[%s2 + $0x8a8] sm:$0xff]
  %v340 = vld [vmem:[%s2 + $0x8b0] sm:$0xff]
  %v341 = vld [vmem:[%s2 + $0x8b8] sm:$0xff]
  %v342 = vld [vmem:[%s2 + $0x8c0] sm:$0xff]
  %v343 = vld [vmem:[%s2 + $0x8c8] sm:$0xff]
  %v344 = vld [vmem:[%s2 + $0x8d0] sm:$0xff]
  %v345 = vld [vmem:[%s2 + $0x8d8] sm:$0xff]
  %v346 = vld [vmem:[%s2 + $0x8e0] sm:$0xff]
  %v347 = vld [vmem:[%s2 + $0x8e8] sm:$0xff]
  %v348 = vld [vmem:[%s2 + $0x8f0] sm:$0xff]
  %v349 = vld [vmem:[%s2 + $0x8f8] sm:$0xff]
  %v350 = vld [vmem:[%s2 + $0x900] sm:$0xff]
  %v351 = vld [vmem:[%s2 + $0x908] sm:$0xff]
  %v352 = vld [vmem:[%s2 + $0x910] sm:$0xff]
  %v353 = vld [vmem:[%s2 + $0x918] sm:$0xff]
  %v354 = vld [vmem:[%s2 + $0x920] sm:$0xff]
  %v355 = vld [vmem:[%s2 + $0x928] sm:$0xff]
  %v356 = vld [vmem:[%s2 + $0x930] sm:$0xff]
  %v357 = vld [vmem:[%s2 + $0x938] sm:$0xff]
  %v358 = vld [vmem:[%s2 + $0x940] sm:$0xff]
  %v359 = vld [vmem:[%s2 + $0x948] sm:$0xff]
  %v360 = vld [vmem:[%s2 + $0x950] sm:$0xff]
  %v361 = vld [vmem:[%s2 + $0x958] sm:$0xff]
  %v362 = vld [vmem:[%s2 + $0x960] sm:$0xff]
  %v363 = vld [vmem:[%s2 + $0x968] sm:$0xff]
  %v364 = vld [vmem:[%s2 + $0x970] sm:$0xff]
  %v365 = vld [vmem:[%s2 + $0x978] sm:$0xff]
  %v366 = vld [vmem:[%s2 + $0x980] sm:$0xff]
  %v367 = vld [vmem:[%s2 + $0x988] sm:$0xff]
  %v368 = vld [vmem:[%s2 + $0x990] sm:$0xff]
  %v369 = vld [vmem:[%s2 + $0x998] sm:$0xff]
  %v370 = vld [vmem:[%s2 + $0x9a0] sm:$0xff]
  %v371 = vld [vmem:[%s2 + $0x9a8] sm:$0xff]
  %v372 = vld [vmem:[%s2 + $0x9b0] sm:$0xff]
  %v373 = vld [vmem:[%s2 + $0x9b8] sm:$0xff]
  %v374 = vld [vmem:[%s2 + $0x9c0] sm:$0xff]
  %v375 = vld [vmem:[%s2 + $0x9c8] sm:$0xff]
  %v376 = vld [vmem:[%s2 + $0x9d0] sm:$0xff]
  %v377 = vld [vmem:[%s2 + $0x9d8] sm:$0xff]
  %v378 = vld [vmem:[%s2 + $0x9e0] sm:$0xff]
  %v379 = vld [vmem:[%s2 + $0x9e8] sm:$0xff]
  %v380 = vld [vmem:[%s2 + $0x9f0] sm:$0xff]
  %v381 = vld [vmem:[%s2 + $0x9f8] sm:$0xff]
  %v382 = vld [vmem:[%s2 + $0xa00] sm:$0xff]
  %v383 = vld [vmem:[%s2 + $0xa08] sm:$0xff]
  %v384 = vld [vmem:[%s2 + $0xa10] sm:$0xff]
  %v385 = vld [vmem:[%s2 + $0xa18] sm:$0xff]
  %v386 = vld [vmem:[%s2 + $0xa20] sm:$0xff]
  %v387 = vld [vmem:[%s2 + $0xa28] sm:$0xff]
  %v388 = vld [vmem:[%s2 + $0xa30] sm:$0xff]
  %v389 = vld [vmem:[%s2 + $0xa38] sm:$0xff]
  %v390 = vld [vmem:[%s2 + $0xa40] sm:$0xff]
  %v391 = vld [vmem:[%s2 + $0xa48] sm:$0xff]
  %v392 = vld [vmem:[%s2 + $0xa50] sm:$0xff]
  %v393 = vld [vmem:[%s2 + $0xa58] sm:$0xff]
  %v394 = vld [vmem:[%s2 + $0xa60] sm:$0xff]
  %v395 = vld [vmem:[%s2 + $0xa68] sm:$0xff]
  %v396 = vld [vmem:[%s2 + $0xa70] sm:$0xff]
  %v397 = vld [vmem:[%s2 + $0xa78] sm:$0xff]
  %v398 = vld [vmem:[%s2 + $0xa80] sm:$0xff]
  %v399 = vld [vmem:[%s2 + $0xa88] sm:$0xff]
  %v400 = vld [vmem:[%s2 + $0xa90] sm:$0xff]
  %v401 = vld [vmem:[%s2 + $0xa98] sm:$0xff]
  %v402 = vld [vmem:[%s2 + $0xaa0] sm:$0xff]
  %v403 = vld [vmem:[%s2 + $0xaa8] sm:$0xff]
  %v404 = vld [vmem:[%s2 + $0xab0] sm:$0xff]
  %v405 = vld [vmem:[%s2 + $0xab8] sm:$0xff]
  %v406 = vld [vmem:[%s2 + $0xac0] sm:$0xff]
  %v407 = vld [vmem:[%s2 + $0xac8] sm:$0xff]
  %v408 = vld [vmem:[%s2 + $0xad0] sm:$0xff]
  %v409 = vld [vmem:[%s2 + $0xad8] sm:$0xff]
  %v410 = vld [vmem:[%s2 + $0xae0] sm:$0xff]
  %v411 = vld [vmem:[%s2 + $0xae8] sm:$0xff]
  %v412 = vld [vmem:[%s2 + $0xaf0] sm:$0xff]
  %v413 = vld [vmem:[%s2 + $0xaf8] sm:$0xff]
  %v414 = vld [vmem:[%s2 + $0xb00] sm:$0xff]
  %v415 = vld [vmem:[%s2 + $0xb08] sm:$0xff]
  %v416 = vld [vmem:[%s2 + $0xb10] sm:$0xff]
  %v417 = vld [vmem:[%s2 + $0xb18] sm:$0xff]
  %v418 = vld [vmem:[%s2 + $0xb20] sm:$0xff]
  %v419 = vld [vmem:[%s2 + $0xb28] sm:$0xff]
  %v420 = vld [vmem:[%s2 + $0xb30] sm:$0xff]
  %v421 = vld [vmem:[%s2 + $0xb38] sm:$0xff]
  %v422 = vld [vmem:[%s2 + $0xb40] sm:$0xff]
  %v423 = vld [vmem:[%s2 + $0xb48] sm:$0xff]
  %v424 = vld [vmem:[%s2 + $0xb50] sm:$0xff]
  %v425 = vld [vmem:[%s2 + $0xb58] sm:$0xff]
  %v426 = vld [vmem:[%s2 + $0xb60] sm:$0xff]
  %v427 = vld [vmem:[%s2 + $0xb68] sm:$0xff]
  %v428 = vld [vmem:[%s2 + $0xb70] sm:$0xff]
  %v429 = vld [vmem:[%s2 + $0xb78] sm:$0xff]
  %v430 = vld [vmem:[%s2 + $0xb80] sm:$0xff]
  %v431 = vld [vmem:[%s2 + $0xb88] sm:$0xff]
  %v432 = vld [vmem:[%s2 + $0xb90] sm:$0xff]
  %v433 = vld [vmem:[%s2 + $0xb98] sm:$0xff]
  %v434 = vld [vmem:[%s2 + $0xba0] sm:$0xff]
  %v435 = vld [vmem:[%s2 + $0xba8] sm:$0xff]
  %v436 = vld [vmem:[%s2 + $0xbb0] sm:$0xff]
  %v437 = vld [vmem:[%s2 + $0xbb8] sm:$0xff]
  %v438 = vld [vmem:[%s2 + $0xbc0] sm:$0xff]
  %v439 = vld [vmem:[%s2 + $0xbc8] sm:$0xff]
  %v440 = vld [vmem:[%s2 + $0xbd0] sm:$0xff]
  %v441 = vld [vmem:[%s2 + $0xbd8] sm:$0xff]
  %v442 = vld [vmem:[%s2 + $0xbe0] sm:$0xff]
  %v443 = vld [vmem:[%s2 + $0xbe8] sm:$0xff]
  %v444 = vld [vmem:[%s2 + $0xbf0] sm:$0xff]
  %v445 = vld [vmem:[%s2 + $0xbf8] sm:$0xff]
  %v446 = vld [vmem:[%s3] sm:$0x3f]
  %v448 = vlaneseq
  %v449 = vshrl.u32 %v448, 7
  %v450 = vsub.s32 0, %v449
  %v451 = vrot.slane %v446, %v450
  %v452 = vlaneseq
  %v453 = vshrl.u32 %v452, 7
  %v454 = vsub.s32 1, %v453
  %v455 = vrot.slane %v446, %v454
  %v456 = vlaneseq
  %v457 = vshrl.u32 %v456, 7
  %v458 = vsub.s32 2, %v457
  %v459 = vrot.slane %v446, %v458
  %v460 = vlaneseq
  %v461 = vshrl.u32 %v460, 7
  %v462 = vsub.s32 3, %v461
  %v463 = vrot.slane %v446, %v462
  %v464 = vlaneseq
  %v465 = vshrl.u32 %v464, 7
  %v466 = vsub.s32 4, %v465
  %v467 = vrot.slane %v446, %v466
  %v468 = vlaneseq
  %v469 = vshrl.u32 %v468, 7
  %v470 = vsub.s32 5, %v469
  %v471 = vrot.slane %v446, %v470
  %v510 = vunpack.c.l.b16 %v30
  %v511 = vunpack.c.h.b16 %v30
  %v512 = vunpack.c.l.b16 %v31
  %v513 = vunpack.c.h.b16 %v31
  %v514 = vunpack.c.l.b16 %v32
  %v515 = vunpack.c.h.b16 %v32
  %v516 = vunpack.c.l.b16 %v33
  %v517 = vunpack.c.h.b16 %v33
  %v518 = vunpack.c.l.b16 %v34
  %v519 = vunpack.c.h.b16 %v34
  %v520 = vunpack.c.l.b16 %v35
  %v521 = vunpack.c.h.b16 %v35
  %v522 = vunpack.c.l.b16 %v36
  %v523 = vunpack.c.h.b16 %v36
  %v524 = vunpack.c.l.b16 %v37
  %v525 = vunpack.c.h.b16 %v37
  %v526 = vunpack.c.l.b16 %v38
  %v527 = vunpack.c.h.b16 %v38
  %v528 = vunpack.c.l.b16 %v39
  %v529 = vunpack.c.h.b16 %v39
  %v530 = vunpack.c.l.b16 %v40
  %v531 = vunpack.c.h.b16 %v40
  %v532 = vunpack.c.l.b16 %v41
  %v533 = vunpack.c.h.b16 %v41
  %v534 = vunpack.c.l.b16 %v42
  %v535 = vunpack.c.h.b16 %v42
  %v536 = vunpack.c.l.b16 %v43
  %v537 = vunpack.c.h.b16 %v43
  %v538 = vunpack.c.l.b16 %v44
  %v539 = vunpack.c.h.b16 %v44
  %v540 = vunpack.c.l.b16 %v45
  %v541 = vunpack.c.h.b16 %v45
  %v542 = vunpack.c.l.b16 %v46
  %v543 = vunpack.c.h.b16 %v46
  %v544 = vunpack.c.l.b16 %v47
  %v545 = vunpack.c.h.b16 %v47
  %v546 = vunpack.c.l.b16 %v48
  %v547 = vunpack.c.h.b16 %v48
  %v548 = vunpack.c.l.b16 %v49
  %v549 = vunpack.c.h.b16 %v49
  %v550 = vunpack.c.l.b16 %v50
  %v551 = vunpack.c.h.b16 %v50
  %v552 = vunpack.c.l.b16 %v51
  %v553 = vunpack.c.h.b16 %v51
  %v554 = vunpack.c.l.b16 %v52
  %v555 = vunpack.c.h.b16 %v52
  %v556 = vunpack.c.l.b16 %v53
  %v557 = vunpack.c.h.b16 %v53
  %v558 = vunpack.c.l.b16 %v54
  %v559 = vunpack.c.h.b16 %v54
  %v560 = vunpack.c.l.b16 %v55
  %v561 = vunpack.c.h.b16 %v55
  %v562 = vunpack.c.l.b16 %v56
  %v563 = vunpack.c.h.b16 %v56
  %v564 = vunpack.c.l.b16 %v57
  %v565 = vunpack.c.h.b16 %v57
  %v566 = vunpack.c.l.b16 %v58
  %v567 = vunpack.c.h.b16 %v58
  %v568 = vunpack.c.l.b16 %v59
  %v569 = vunpack.c.h.b16 %v59
  %v570 = vunpack.c.l.b16 %v60
  %v571 = vunpack.c.h.b16 %v60
  %v572 = vunpack.c.l.b16 %v61
  %v573 = vunpack.c.h.b16 %v61
  %v574 = vpack.c.b16 %v518, %v510
  %v575 = vpack.c.b16 %v519, %v511
  %v576 = vpack.c.b16 %v520, %v512
  %v577 = vpack.c.b16 %v521, %v513
  %v578 = vpack.c.b16 %v522, %v514
  %v579 = vpack.c.b16 %v523, %v515
  %v580 = vpack.c.b16 %v524, %v516
  %v581 = vpack.c.b16 %v525, %v517
  %v582 = vpack.c.b16 %v534, %v526
  %v583 = vpack.c.b16 %v535, %v527
  %v584 = vpack.c.b16 %v536, %v528
  %v585 = vpack.c.b16 %v537, %v529
  %v586 = vpack.c.b16 %v538, %v530
  %v587 = vpack.c.b16 %v539, %v531
  %v588 = vpack.c.b16 %v540, %v532
  %v589 = vpack.c.b16 %v541, %v533
  %v590 = vpack.c.b16 %v550, %v542
  %v591 = vpack.c.b16 %v551, %v543
  %v592 = vpack.c.b16 %v552, %v544
  %v593 = vpack.c.b16 %v553, %v545
  %v594 = vpack.c.b16 %v554, %v546
  %v595 = vpack.c.b16 %v555, %v547
  %v596 = vpack.c.b16 %v556, %v548
  %v597 = vpack.c.b16 %v557, %v549
  %v598 = vpack.c.b16 %v566, %v558
  %v599 = vpack.c.b16 %v567, %v559
  %v600 = vpack.c.b16 %v568, %v560
  %v601 = vpack.c.b16 %v569, %v561
  %v602 = vpack.c.b16 %v570, %v562
  %v603 = vpack.c.b16 %v571, %v563
  %v604 = vpack.c.b16 %v572, %v564
  %v605 = vpack.c.b16 %v573, %v565
  %v1022 = vunpack.c.l.b16 %v62
  %v1023 = vunpack.c.h.b16 %v62
  %v1024 = vunpack.c.l.b16 %v63
  %v1025 = vunpack.c.h.b16 %v63
  %v1026 = vunpack.c.l.b16 %v64
  %v1027 = vunpack.c.h.b16 %v64
  %v1028 = vunpack.c.l.b16 %v65
  %v1029 = vunpack.c.h.b16 %v65
  %v1030 = vunpack.c.l.b16 %v66
  %v1031 = vunpack.c.h.b16 %v66
  %v1032 = vunpack.c.l.b16 %v67
  %v1033 = vunpack.c.h.b16 %v67
  %v1034 = vunpack.c.l.b16 %v68
  %v1035 = vunpack.c.h.b16 %v68
  %v1036 = vunpack.c.l.b16 %v69
  %v1037 = vunpack.c.h.b16 %v69
  %v1038 = vunpack.c.l.b16 %v70
  %v1039 = vunpack.c.h.b16 %v70
  %v1040 = vunpack.c.l.b16 %v71
  %v1041 = vunpack.c.h.b16 %v71
  %v1042 = vunpack.c.l.b16 %v72
  %v1043 = vunpack.c.h.b16 %v72
  %v1044 = vunpack.c.l.b16 %v73
  %v1045 = vunpack.c.h.b16 %v73
  %v1046 = vunpack.c.l.b16 %v74
  %v1047 = vunpack.c.h.b16 %v74
  %v1048 = vunpack.c.l.b16 %v75
  %v1049 = vunpack.c.h.b16 %v75
  %v1050 = vunpack.c.l.b16 %v76
  %v1051 = vunpack.c.h.b16 %v76
  %v1052 = vunpack.c.l.b16 %v77
  %v1053 = vunpack.c.h.b16 %v77
  %v1054 = vunpack.c.l.b16 %v78
  %v1055 = vunpack.c.h.b16 %v78
  %v1056 = vunpack.c.l.b16 %v79
  %v1057 = vunpack.c.h.b16 %v79
  %v1058 = vunpack.c.l.b16 %v80
  %v1059 = vunpack.c.h.b16 %v80
  %v1060 = vunpack.c.l.b16 %v81
  %v1061 = vunpack.c.h.b16 %v81
  %v1062 = vunpack.c.l.b16 %v82
  %v1063 = vunpack.c.h.b16 %v82
  %v1064 = vunpack.c.l.b16 %v83
  %v1065 = vunpack.c.h.b16 %v83
  %v1066 = vunpack.c.l.b16 %v84
  %v1067 = vunpack.c.h.b16 %v84
  %v1068 = vunpack.c.l.b16 %v85
  %v1069 = vunpack.c.h.b16 %v85
  %v1070 = vunpack.c.l.b16 %v86
  %v1071 = vunpack.c.h.b16 %v86
  %v1072 = vunpack.c.l.b16 %v87
  %v1073 = vunpack.c.h.b16 %v87
  %v1074 = vunpack.c.l.b16 %v88
  %v1075 = vunpack.c.h.b16 %v88
  %v1076 = vunpack.c.l.b16 %v89
  %v1077 = vunpack.c.h.b16 %v89
  %v1078 = vunpack.c.l.b16 %v90
  %v1079 = vunpack.c.h.b16 %v90
  %v1080 = vunpack.c.l.b16 %v91
  %v1081 = vunpack.c.h.b16 %v91
  %v1082 = vunpack.c.l.b16 %v92
  %v1083 = vunpack.c.h.b16 %v92
  %v1084 = vunpack.c.l.b16 %v93
  %v1085 = vunpack.c.h.b16 %v93
  %v1086 = vunpack.c.l.b16 %v94
  %v1087 = vunpack.c.h.b16 %v94
  %v1088 = vunpack.c.l.b16 %v95
  %v1089 = vunpack.c.h.b16 %v95
  %v1090 = vunpack.c.l.b16 %v96
  %v1091 = vunpack.c.h.b16 %v96
  %v1092 = vunpack.c.l.b16 %v97
  %v1093 = vunpack.c.h.b16 %v97
  %v1094 = vunpack.c.l.b16 %v98
  %v1095 = vunpack.c.h.b16 %v98
  %v1096 = vunpack.c.l.b16 %v99
  %v1097 = vunpack.c.h.b16 %v99
  %v1098 = vunpack.c.l.b16 %v100
  %v1099 = vunpack.c.h.b16 %v100
  %v1100 = vunpack.c.l.b16 %v101
  %v1101 = vunpack.c.h.b16 %v101
  %v1102 = vunpack.c.l.b16 %v102
  %v1103 = vunpack.c.h.b16 %v102
  %v1104 = vunpack.c.l.b16 %v103
  %v1105 = vunpack.c.h.b16 %v103
  %v1106 = vunpack.c.l.b16 %v104
  %v1107 = vunpack.c.h.b16 %v104
  %v1108 = vunpack.c.l.b16 %v105
  %v1109 = vunpack.c.h.b16 %v105
  %v1110 = vunpack.c.l.b16 %v106
  %v1111 = vunpack.c.h.b16 %v106
  %v1112 = vunpack.c.l.b16 %v107
  %v1113 = vunpack.c.h.b16 %v107
  %v1114 = vunpack.c.l.b16 %v108
  %v1115 = vunpack.c.h.b16 %v108
  %v1116 = vunpack.c.l.b16 %v109
  %v1117 = vunpack.c.h.b16 %v109
  %v1118 = vunpack.c.l.b16 %v110
  %v1119 = vunpack.c.h.b16 %v110
  %v1120 = vunpack.c.l.b16 %v111
  %v1121 = vunpack.c.h.b16 %v111
  %v1122 = vunpack.c.l.b16 %v112
  %v1123 = vunpack.c.h.b16 %v112
  %v1124 = vunpack.c.l.b16 %v113
  %v1125 = vunpack.c.h.b16 %v113
  %v1126 = vunpack.c.l.b16 %v114
  %v1127 = vunpack.c.h.b16 %v114
  %v1128 = vunpack.c.l.b16 %v115
  %v1129 = vunpack.c.h.b16 %v115
  %v1130 = vunpack.c.l.b16 %v116
  %v1131 = vunpack.c.h.b16 %v116
  %v1132 = vunpack.c.l.b16 %v117
  %v1133 = vunpack.c.h.b16 %v117
  %v1134 = vunpack.c.l.b16 %v118
  %v1135 = vunpack.c.h.b16 %v118
  %v1136 = vunpack.c.l.b16 %v119
  %v1137 = vunpack.c.h.b16 %v119
  %v1138 = vunpack.c.l.b16 %v120
  %v1139 = vunpack.c.h.b16 %v120
  %v1140 = vunpack.c.l.b16 %v121
  %v1141 = vunpack.c.h.b16 %v121
  %v1142 = vunpack.c.l.b16 %v122
  %v1143 = vunpack.c.h.b16 %v122
  %v1144 = vunpack.c.l.b16 %v123
  %v1145 = vunpack.c.h.b16 %v123
  %v1146 = vunpack.c.l.b16 %v124
  %v1147 = vunpack.c.h.b16 %v124
  %v1148 = vunpack.c.l.b16 %v125
  %v1149 = vunpack.c.h.b16 %v125
  %v1150 = vunpack.c.l.b16 %v126
  %v1151 = vunpack.c.h.b16 %v126
  %v1152 = vunpack.c.l.b16 %v127
  %v1153 = vunpack.c.h.b16 %v127
  %v1154 = vunpack.c.l.b16 %v128
  %v1155 = vunpack.c.h.b16 %v128
  %v1156 = vunpack.c.l.b16 %v129
  %v1157 = vunpack.c.h.b16 %v129
  %v1158 = vunpack.c.l.b16 %v130
  %v1159 = vunpack.c.h.b16 %v130
  %v1160 = vunpack.c.l.b16 %v131
  %v1161 = vunpack.c.h.b16 %v131
  %v1162 = vunpack.c.l.b16 %v132
  %v1163 = vunpack.c.h.b16 %v132
  %v1164 = vunpack.c.l.b16 %v133
  %v1165 = vunpack.c.h.b16 %v133
  %v1166 = vunpack.c.l.b16 %v134
  %v1167 = vunpack.c.h.b16 %v134
  %v1168 = vunpack.c.l.b16 %v135
  %v1169 = vunpack.c.h.b16 %v135
  %v1170 = vunpack.c.l.b16 %v136
  %v1171 = vunpack.c.h.b16 %v136
  %v1172 = vunpack.c.l.b16 %v137
  %v1173 = vunpack.c.h.b16 %v137
  %v1174 = vunpack.c.l.b16 %v138
  %v1175 = vunpack.c.h.b16 %v138
  %v1176 = vunpack.c.l.b16 %v139
  %v1177 = vunpack.c.h.b16 %v139
  %v1178 = vunpack.c.l.b16 %v140
  %v1179 = vunpack.c.h.b16 %v140
  %v1180 = vunpack.c.l.b16 %v141
  %v1181 = vunpack.c.h.b16 %v141
  %v1182 = vunpack.c.l.b16 %v142
  %v1183 = vunpack.c.h.b16 %v142
  %v1184 = vunpack.c.l.b16 %v143
  %v1185 = vunpack.c.h.b16 %v143
  %v1186 = vunpack.c.l.b16 %v144
  %v1187 = vunpack.c.h.b16 %v144
  %v1188 = vunpack.c.l.b16 %v145
  %v1189 = vunpack.c.h.b16 %v145
  %v1190 = vunpack.c.l.b16 %v146
  %v1191 = vunpack.c.h.b16 %v146
  %v1192 = vunpack.c.l.b16 %v147
  %v1193 = vunpack.c.h.b16 %v147
  %v1194 = vunpack.c.l.b16 %v148
  %v1195 = vunpack.c.h.b16 %v148
  %v1196 = vunpack.c.l.b16 %v149
  %v1197 = vunpack.c.h.b16 %v149
  %v1198 = vunpack.c.l.b16 %v150
  %v1199 = vunpack.c.h.b16 %v150
  %v1200 = vunpack.c.l.b16 %v151
  %v1201 = vunpack.c.h.b16 %v151
  %v1202 = vunpack.c.l.b16 %v152
  %v1203 = vunpack.c.h.b16 %v152
  %v1204 = vunpack.c.l.b16 %v153
  %v1205 = vunpack.c.h.b16 %v153
  %v1206 = vunpack.c.l.b16 %v154
  %v1207 = vunpack.c.h.b16 %v154
  %v1208 = vunpack.c.l.b16 %v155
  %v1209 = vunpack.c.h.b16 %v155
  %v1210 = vunpack.c.l.b16 %v156
  %v1211 = vunpack.c.h.b16 %v156
  %v1212 = vunpack.c.l.b16 %v157
  %v1213 = vunpack.c.h.b16 %v157
  %v1214 = vunpack.c.l.b16 %v158
  %v1215 = vunpack.c.h.b16 %v158
  %v1216 = vunpack.c.l.b16 %v159
  %v1217 = vunpack.c.h.b16 %v159
  %v1218 = vunpack.c.l.b16 %v160
  %v1219 = vunpack.c.h.b16 %v160
  %v1220 = vunpack.c.l.b16 %v161
  %v1221 = vunpack.c.h.b16 %v161
  %v1222 = vunpack.c.l.b16 %v162
  %v1223 = vunpack.c.h.b16 %v162
  %v1224 = vunpack.c.l.b16 %v163
  %v1225 = vunpack.c.h.b16 %v163
  %v1226 = vunpack.c.l.b16 %v164
  %v1227 = vunpack.c.h.b16 %v164
  %v1228 = vunpack.c.l.b16 %v165
  %v1229 = vunpack.c.h.b16 %v165
  %v1230 = vunpack.c.l.b16 %v166
  %v1231 = vunpack.c.h.b16 %v166
  %v1232 = vunpack.c.l.b16 %v167
  %v1233 = vunpack.c.h.b16 %v167
  %v1234 = vunpack.c.l.b16 %v168
  %v1235 = vunpack.c.h.b16 %v168
  %v1236 = vunpack.c.l.b16 %v169
  %v1237 = vunpack.c.h.b16 %v169
  %v1238 = vunpack.c.l.b16 %v170
  %v1239 = vunpack.c.h.b16 %v170
  %v1240 = vunpack.c.l.b16 %v171
  %v1241 = vunpack.c.h.b16 %v171
  %v1242 = vunpack.c.l.b16 %v172
  %v1243 = vunpack.c.h.b16 %v172
  %v1244 = vunpack.c.l.b16 %v173
  %v1245 = vunpack.c.h.b16 %v173
  %v1246 = vunpack.c.l.b16 %v174
  %v1247 = vunpack.c.h.b16 %v174
  %v1248 = vunpack.c.l.b16 %v175
  %v1249 = vunpack.c.h.b16 %v175
  %v1250 = vunpack.c.l.b16 %v176
  %v1251 = vunpack.c.h.b16 %v176
  %v1252 = vunpack.c.l.b16 %v177
  %v1253 = vunpack.c.h.b16 %v177
  %v1254 = vunpack.c.l.b16 %v178
  %v1255 = vunpack.c.h.b16 %v178
  %v1256 = vunpack.c.l.b16 %v179
  %v1257 = vunpack.c.h.b16 %v179
  %v1258 = vunpack.c.l.b16 %v180
  %v1259 = vunpack.c.h.b16 %v180
  %v1260 = vunpack.c.l.b16 %v181
  %v1261 = vunpack.c.h.b16 %v181
  %v1262 = vunpack.c.l.b16 %v182
  %v1263 = vunpack.c.h.b16 %v182
  %v1264 = vunpack.c.l.b16 %v183
  %v1265 = vunpack.c.h.b16 %v183
  %v1266 = vunpack.c.l.b16 %v184
  %v1267 = vunpack.c.h.b16 %v184
  %v1268 = vunpack.c.l.b16 %v185
  %v1269 = vunpack.c.h.b16 %v185
  %v1270 = vunpack.c.l.b16 %v186
  %v1271 = vunpack.c.h.b16 %v186
  %v1272 = vunpack.c.l.b16 %v187
  %v1273 = vunpack.c.h.b16 %v187
  %v1274 = vunpack.c.l.b16 %v188
  %v1275 = vunpack.c.h.b16 %v188
  %v1276 = vunpack.c.l.b16 %v189
  %v1277 = vunpack.c.h.b16 %v189
  %v1278 = vunpack.c.l.b16 %v190
  %v1279 = vunpack.c.h.b16 %v190
  %v1280 = vunpack.c.l.b16 %v191
  %v1281 = vunpack.c.h.b16 %v191
  %v1282 = vunpack.c.l.b16 %v192
  %v1283 = vunpack.c.h.b16 %v192
  %v1284 = vunpack.c.l.b16 %v193
  %v1285 = vunpack.c.h.b16 %v193
  %v1286 = vunpack.c.l.b16 %v194
  %v1287 = vunpack.c.h.b16 %v194
  %v1288 = vunpack.c.l.b16 %v195
  %v1289 = vunpack.c.h.b16 %v195
  %v1290 = vunpack.c.l.b16 %v196
  %v1291 = vunpack.c.h.b16 %v196
  %v1292 = vunpack.c.l.b16 %v197
  %v1293 = vunpack.c.h.b16 %v197
  %v1294 = vunpack.c.l.b16 %v198
  %v1295 = vunpack.c.h.b16 %v198
  %v1296 = vunpack.c.l.b16 %v199
  %v1297 = vunpack.c.h.b16 %v199
  %v1298 = vunpack.c.l.b16 %v200
  %v1299 = vunpack.c.h.b16 %v200
  %v1300 = vunpack.c.l.b16 %v201
  %v1301 = vunpack.c.h.b16 %v201
  %v1302 = vunpack.c.l.b16 %v202
  %v1303 = vunpack.c.h.b16 %v202
  %v1304 = vunpack.c.l.b16 %v203
  %v1305 = vunpack.c.h.b16 %v203
  %v1306 = vunpack.c.l.b16 %v204
  %v1307 = vunpack.c.h.b16 %v204
  %v1308 = vunpack.c.l.b16 %v205
  %v1309 = vunpack.c.h.b16 %v205
  %v1310 = vunpack.c.l.b16 %v206
  %v1311 = vunpack.c.h.b16 %v206
  %v1312 = vunpack.c.l.b16 %v207
  %v1313 = vunpack.c.h.b16 %v207
  %v1314 = vunpack.c.l.b16 %v208
  %v1315 = vunpack.c.h.b16 %v208
  %v1316 = vunpack.c.l.b16 %v209
  %v1317 = vunpack.c.h.b16 %v209
  %v1318 = vunpack.c.l.b16 %v210
  %v1319 = vunpack.c.h.b16 %v210
  %v1320 = vunpack.c.l.b16 %v211
  %v1321 = vunpack.c.h.b16 %v211
  %v1322 = vunpack.c.l.b16 %v212
  %v1323 = vunpack.c.h.b16 %v212
  %v1324 = vunpack.c.l.b16 %v213
  %v1325 = vunpack.c.h.b16 %v213
  %v1326 = vunpack.c.l.b16 %v214
  %v1327 = vunpack.c.h.b16 %v214
  %v1328 = vunpack.c.l.b16 %v215
  %v1329 = vunpack.c.h.b16 %v215
  %v1330 = vunpack.c.l.b16 %v216
  %v1331 = vunpack.c.h.b16 %v216
  %v1332 = vunpack.c.l.b16 %v217
  %v1333 = vunpack.c.h.b16 %v217
  %v1334 = vunpack.c.l.b16 %v218
  %v1335 = vunpack.c.h.b16 %v218
  %v1336 = vunpack.c.l.b16 %v219
  %v1337 = vunpack.c.h.b16 %v219
  %v1338 = vunpack.c.l.b16 %v220
  %v1339 = vunpack.c.h.b16 %v220
  %v1340 = vunpack.c.l.b16 %v221
  %v1341 = vunpack.c.h.b16 %v221
  %v1342 = vunpack.c.l.b16 %v222
  %v1343 = vunpack.c.h.b16 %v222
  %v1344 = vunpack.c.l.b16 %v223
  %v1345 = vunpack.c.h.b16 %v223
  %v1346 = vunpack.c.l.b16 %v224
  %v1347 = vunpack.c.h.b16 %v224
  %v1348 = vunpack.c.l.b16 %v225
  %v1349 = vunpack.c.h.b16 %v225
  %v1350 = vunpack.c.l.b16 %v226
  %v1351 = vunpack.c.h.b16 %v226
  %v1352 = vunpack.c.l.b16 %v227
  %v1353 = vunpack.c.h.b16 %v227
  %v1354 = vunpack.c.l.b16 %v228
  %v1355 = vunpack.c.h.b16 %v228
  %v1356 = vunpack.c.l.b16 %v229
  %v1357 = vunpack.c.h.b16 %v229
  %v1358 = vunpack.c.l.b16 %v230
  %v1359 = vunpack.c.h.b16 %v230
  %v1360 = vunpack.c.l.b16 %v231
  %v1361 = vunpack.c.h.b16 %v231
  %v1362 = vunpack.c.l.b16 %v232
  %v1363 = vunpack.c.h.b16 %v232
  %v1364 = vunpack.c.l.b16 %v233
  %v1365 = vunpack.c.h.b16 %v233
  %v1366 = vunpack.c.l.b16 %v234
  %v1367 = vunpack.c.h.b16 %v234
  %v1368 = vunpack.c.l.b16 %v235
  %v1369 = vunpack.c.h.b16 %v235
  %v1370 = vunpack.c.l.b16 %v236
  %v1371 = vunpack.c.h.b16 %v236
  %v1372 = vunpack.c.l.b16 %v237
  %v1373 = vunpack.c.h.b16 %v237
  %v1374 = vunpack.c.l.b16 %v238
  %v1375 = vunpack.c.h.b16 %v238
  %v1376 = vunpack.c.l.b16 %v239
  %v1377 = vunpack.c.h.b16 %v239
  %v1378 = vunpack.c.l.b16 %v240
  %v1379 = vunpack.c.h.b16 %v240
  %v1380 = vunpack.c.l.b16 %v241
  %v1381 = vunpack.c.h.b16 %v241
  %v1382 = vunpack.c.l.b16 %v242
  %v1383 = vunpack.c.h.b16 %v242
  %v1384 = vunpack.c.l.b16 %v243
  %v1385 = vunpack.c.h.b16 %v243
  %v1386 = vunpack.c.l.b16 %v244
  %v1387 = vunpack.c.h.b16 %v244
  %v1388 = vunpack.c.l.b16 %v245
  %v1389 = vunpack.c.h.b16 %v245
  %v1390 = vunpack.c.l.b16 %v246
  %v1391 = vunpack.c.h.b16 %v246
  %v1392 = vunpack.c.l.b16 %v247
  %v1393 = vunpack.c.h.b16 %v247
  %v1394 = vunpack.c.l.b16 %v248
  %v1395 = vunpack.c.h.b16 %v248
  %v1396 = vunpack.c.l.b16 %v249
  %v1397 = vunpack.c.h.b16 %v249
  %v1398 = vunpack.c.l.b16 %v250
  %v1399 = vunpack.c.h.b16 %v250
  %v1400 = vunpack.c.l.b16 %v251
  %v1401 = vunpack.c.h.b16 %v251
  %v1402 = vunpack.c.l.b16 %v252
  %v1403 = vunpack.c.h.b16 %v252
  %v1404 = vunpack.c.l.b16 %v253
  %v1405 = vunpack.c.h.b16 %v253
  %v1406 = vunpack.c.l.b16 %v254
  %v1407 = vunpack.c.h.b16 %v254
  %v1408 = vunpack.c.l.b16 %v255
  %v1409 = vunpack.c.h.b16 %v255
  %v1410 = vunpack.c.l.b16 %v256
  %v1411 = vunpack.c.h.b16 %v256
  %v1412 = vunpack.c.l.b16 %v257
  %v1413 = vunpack.c.h.b16 %v257
  %v1414 = vunpack.c.l.b16 %v258
  %v1415 = vunpack.c.h.b16 %v258
  %v1416 = vunpack.c.l.b16 %v259
  %v1417 = vunpack.c.h.b16 %v259
  %v1418 = vunpack.c.l.b16 %v260
  %v1419 = vunpack.c.h.b16 %v260
  %v1420 = vunpack.c.l.b16 %v261
  %v1421 = vunpack.c.h.b16 %v261
  %v1422 = vunpack.c.l.b16 %v262
  %v1423 = vunpack.c.h.b16 %v262
  %v1424 = vunpack.c.l.b16 %v263
  %v1425 = vunpack.c.h.b16 %v263
  %v1426 = vunpack.c.l.b16 %v264
  %v1427 = vunpack.c.h.b16 %v264
  %v1428 = vunpack.c.l.b16 %v265
  %v1429 = vunpack.c.h.b16 %v265
  %v1430 = vunpack.c.l.b16 %v266
  %v1431 = vunpack.c.h.b16 %v266
  %v1432 = vunpack.c.l.b16 %v267
  %v1433 = vunpack.c.h.b16 %v267
  %v1434 = vunpack.c.l.b16 %v268
  %v1435 = vunpack.c.h.b16 %v268
  %v1436 = vunpack.c.l.b16 %v269
  %v1437 = vunpack.c.h.b16 %v269
  %v1438 = vunpack.c.l.b16 %v270
  %v1439 = vunpack.c.h.b16 %v270
  %v1440 = vunpack.c.l.b16 %v271
  %v1441 = vunpack.c.h.b16 %v271
  %v1442 = vunpack.c.l.b16 %v272
  %v1443 = vunpack.c.h.b16 %v272
  %v1444 = vunpack.c.l.b16 %v273
  %v1445 = vunpack.c.h.b16 %v273
  %v1446 = vunpack.c.l.b16 %v274
  %v1447 = vunpack.c.h.b16 %v274
  %v1448 = vunpack.c.l.b16 %v275
  %v1449 = vunpack.c.h.b16 %v275
  %v1450 = vunpack.c.l.b16 %v276
  %v1451 = vunpack.c.h.b16 %v276
  %v1452 = vunpack.c.l.b16 %v277
  %v1453 = vunpack.c.h.b16 %v277
  %v1454 = vunpack.c.l.b16 %v278
  %v1455 = vunpack.c.h.b16 %v278
  %v1456 = vunpack.c.l.b16 %v279
  %v1457 = vunpack.c.h.b16 %v279
  %v1458 = vunpack.c.l.b16 %v280
  %v1459 = vunpack.c.h.b16 %v280
  %v1460 = vunpack.c.l.b16 %v281
  %v1461 = vunpack.c.h.b16 %v281
  %v1462 = vunpack.c.l.b16 %v282
  %v1463 = vunpack.c.h.b16 %v282
  %v1464 = vunpack.c.l.b16 %v283
  %v1465 = vunpack.c.h.b16 %v283
  %v1466 = vunpack.c.l.b16 %v284
  %v1467 = vunpack.c.h.b16 %v284
  %v1468 = vunpack.c.l.b16 %v285
  %v1469 = vunpack.c.h.b16 %v285
  %v1470 = vunpack.c.l.b16 %v286
  %v1471 = vunpack.c.h.b16 %v286
  %v1472 = vunpack.c.l.b16 %v287
  %v1473 = vunpack.c.h.b16 %v287
  %v1474 = vunpack.c.l.b16 %v288
  %v1475 = vunpack.c.h.b16 %v288
  %v1476 = vunpack.c.l.b16 %v289
  %v1477 = vunpack.c.h.b16 %v289
  %v1478 = vunpack.c.l.b16 %v290
  %v1479 = vunpack.c.h.b16 %v290
  %v1480 = vunpack.c.l.b16 %v291
  %v1481 = vunpack.c.h.b16 %v291
  %v1482 = vunpack.c.l.b16 %v292
  %v1483 = vunpack.c.h.b16 %v292
  %v1484 = vunpack.c.l.b16 %v293
  %v1485 = vunpack.c.h.b16 %v293
  %v1486 = vunpack.c.l.b16 %v294
  %v1487 = vunpack.c.h.b16 %v294
  %v1488 = vunpack.c.l.b16 %v295
  %v1489 = vunpack.c.h.b16 %v295
  %v1490 = vunpack.c.l.b16 %v296
  %v1491 = vunpack.c.h.b16 %v296
  %v1492 = vunpack.c.l.b16 %v297
  %v1493 = vunpack.c.h.b16 %v297
  %v1494 = vunpack.c.l.b16 %v298
  %v1495 = vunpack.c.h.b16 %v298
  %v1496 = vunpack.c.l.b16 %v299
  %v1497 = vunpack.c.h.b16 %v299
  %v1498 = vunpack.c.l.b16 %v300
  %v1499 = vunpack.c.h.b16 %v300
  %v1500 = vunpack.c.l.b16 %v301
  %v1501 = vunpack.c.h.b16 %v301
  %v1502 = vunpack.c.l.b16 %v302
  %v1503 = vunpack.c.h.b16 %v302
  %v1504 = vunpack.c.l.b16 %v303
  %v1505 = vunpack.c.h.b16 %v303
  %v1506 = vunpack.c.l.b16 %v304
  %v1507 = vunpack.c.h.b16 %v304
  %v1508 = vunpack.c.l.b16 %v305
  %v1509 = vunpack.c.h.b16 %v305
  %v1510 = vunpack.c.l.b16 %v306
  %v1511 = vunpack.c.h.b16 %v306
  %v1512 = vunpack.c.l.b16 %v307
  %v1513 = vunpack.c.h.b16 %v307
  %v1514 = vunpack.c.l.b16 %v308
  %v1515 = vunpack.c.h.b16 %v308
  %v1516 = vunpack.c.l.b16 %v309
  %v1517 = vunpack.c.h.b16 %v309
  %v1518 = vunpack.c.l.b16 %v310
  %v1519 = vunpack.c.h.b16 %v310
  %v1520 = vunpack.c.l.b16 %v311
  %v1521 = vunpack.c.h.b16 %v311
  %v1522 = vunpack.c.l.b16 %v312
  %v1523 = vunpack.c.h.b16 %v312
  %v1524 = vunpack.c.l.b16 %v313
  %v1525 = vunpack.c.h.b16 %v313
  %v1526 = vunpack.c.l.b16 %v314
  %v1527 = vunpack.c.h.b16 %v314
  %v1528 = vunpack.c.l.b16 %v315
  %v1529 = vunpack.c.h.b16 %v315
  %v1530 = vunpack.c.l.b16 %v316
  %v1531 = vunpack.c.h.b16 %v316
  %v1532 = vunpack.c.l.b16 %v317
  %v1533 = vunpack.c.h.b16 %v317
  %v1534 = vunpack.c.l.b16 %v318
  %v1535 = vunpack.c.h.b16 %v318
  %v1536 = vunpack.c.l.b16 %v319
  %v1537 = vunpack.c.h.b16 %v319
  %v1538 = vunpack.c.l.b16 %v320
  %v1539 = vunpack.c.h.b16 %v320
  %v1540 = vunpack.c.l.b16 %v321
  %v1541 = vunpack.c.h.b16 %v321
  %v1542 = vunpack.c.l.b16 %v322
  %v1543 = vunpack.c.h.b16 %v322
  %v1544 = vunpack.c.l.b16 %v323
  %v1545 = vunpack.c.h.b16 %v323
  %v1546 = vunpack.c.l.b16 %v324
  %v1547 = vunpack.c.h.b16 %v324
  %v1548 = vunpack.c.l.b16 %v325
  %v1549 = vunpack.c.h.b16 %v325
  %v1550 = vunpack.c.l.b16 %v326
  %v1551 = vunpack.c.h.b16 %v326
  %v1552 = vunpack.c.l.b16 %v327
  %v1553 = vunpack.c.h.b16 %v327
  %v1554 = vunpack.c.l.b16 %v328
  %v1555 = vunpack.c.h.b16 %v328
  %v1556 = vunpack.c.l.b16 %v329
  %v1557 = vunpack.c.h.b16 %v329
  %v1558 = vunpack.c.l.b16 %v330
  %v1559 = vunpack.c.h.b16 %v330
  %v1560 = vunpack.c.l.b16 %v331
  %v1561 = vunpack.c.h.b16 %v331
  %v1562 = vunpack.c.l.b16 %v332
  %v1563 = vunpack.c.h.b16 %v332
  %v1564 = vunpack.c.l.b16 %v333
  %v1565 = vunpack.c.h.b16 %v333
  %v1566 = vunpack.c.l.b16 %v334
  %v1567 = vunpack.c.h.b16 %v334
  %v1568 = vunpack.c.l.b16 %v335
  %v1569 = vunpack.c.h.b16 %v335
  %v1570 = vunpack.c.l.b16 %v336
  %v1571 = vunpack.c.h.b16 %v336
  %v1572 = vunpack.c.l.b16 %v337
  %v1573 = vunpack.c.h.b16 %v337
  %v1574 = vunpack.c.l.b16 %v338
  %v1575 = vunpack.c.h.b16 %v338
  %v1576 = vunpack.c.l.b16 %v339
  %v1577 = vunpack.c.h.b16 %v339
  %v1578 = vunpack.c.l.b16 %v340
  %v1579 = vunpack.c.h.b16 %v340
  %v1580 = vunpack.c.l.b16 %v341
  %v1581 = vunpack.c.h.b16 %v341
  %v1582 = vunpack.c.l.b16 %v342
  %v1583 = vunpack.c.h.b16 %v342
  %v1584 = vunpack.c.l.b16 %v343
  %v1585 = vunpack.c.h.b16 %v343
  %v1586 = vunpack.c.l.b16 %v344
  %v1587 = vunpack.c.h.b16 %v344
  %v1588 = vunpack.c.l.b16 %v345
  %v1589 = vunpack.c.h.b16 %v345
  %v1590 = vunpack.c.l.b16 %v346
  %v1591 = vunpack.c.h.b16 %v346
  %v1592 = vunpack.c.l.b16 %v347
  %v1593 = vunpack.c.h.b16 %v347
  %v1594 = vunpack.c.l.b16 %v348
  %v1595 = vunpack.c.h.b16 %v348
  %v1596 = vunpack.c.l.b16 %v349
  %v1597 = vunpack.c.h.b16 %v349
  %v1598 = vunpack.c.l.b16 %v350
  %v1599 = vunpack.c.h.b16 %v350
  %v1600 = vunpack.c.l.b16 %v351
  %v1601 = vunpack.c.h.b16 %v351
  %v1602 = vunpack.c.l.b16 %v352
  %v1603 = vunpack.c.h.b16 %v352
  %v1604 = vunpack.c.l.b16 %v353
  %v1605 = vunpack.c.h.b16 %v353
  %v1606 = vunpack.c.l.b16 %v354
  %v1607 = vunpack.c.h.b16 %v354
  %v1608 = vunpack.c.l.b16 %v355
  %v1609 = vunpack.c.h.b16 %v355
  %v1610 = vunpack.c.l.b16 %v356
  %v1611 = vunpack.c.h.b16 %v356
  %v1612 = vunpack.c.l.b16 %v357
  %v1613 = vunpack.c.h.b16 %v357
  %v1614 = vunpack.c.l.b16 %v358
  %v1615 = vunpack.c.h.b16 %v358
  %v1616 = vunpack.c.l.b16 %v359
  %v1617 = vunpack.c.h.b16 %v359
  %v1618 = vunpack.c.l.b16 %v360
  %v1619 = vunpack.c.h.b16 %v360
  %v1620 = vunpack.c.l.b16 %v361
  %v1621 = vunpack.c.h.b16 %v361
  %v1622 = vunpack.c.l.b16 %v362
  %v1623 = vunpack.c.h.b16 %v362
  %v1624 = vunpack.c.l.b16 %v363
  %v1625 = vunpack.c.h.b16 %v363
  %v1626 = vunpack.c.l.b16 %v364
  %v1627 = vunpack.c.h.b16 %v364
  %v1628 = vunpack.c.l.b16 %v365
  %v1629 = vunpack.c.h.b16 %v365
  %v1630 = vunpack.c.l.b16 %v366
  %v1631 = vunpack.c.h.b16 %v366
  %v1632 = vunpack.c.l.b16 %v367
  %v1633 = vunpack.c.h.b16 %v367
  %v1634 = vunpack.c.l.b16 %v368
  %v1635 = vunpack.c.h.b16 %v368
  %v1636 = vunpack.c.l.b16 %v369
  %v1637 = vunpack.c.h.b16 %v369
  %v1638 = vunpack.c.l.b16 %v370
  %v1639 = vunpack.c.h.b16 %v370
  %v1640 = vunpack.c.l.b16 %v371
  %v1641 = vunpack.c.h.b16 %v371
  %v1642 = vunpack.c.l.b16 %v372
  %v1643 = vunpack.c.h.b16 %v372
  %v1644 = vunpack.c.l.b16 %v373
  %v1645 = vunpack.c.h.b16 %v373
  %v1646 = vunpack.c.l.b16 %v374
  %v1647 = vunpack.c.h.b16 %v374
  %v1648 = vunpack.c.l.b16 %v375
  %v1649 = vunpack.c.h.b16 %v375
  %v1650 = vunpack.c.l.b16 %v376
  %v1651 = vunpack.c.h.b16 %v376
  %v1652 = vunpack.c.l.b16 %v377
  %v1653 = vunpack.c.h.b16 %v377
  %v1654 = vunpack.c.l.b16 %v378
  %v1655 = vunpack.c.h.b16 %v378
  %v1656 = vunpack.c.l.b16 %v379
  %v1657 = vunpack.c.h.b16 %v379
  %v1658 = vunpack.c.l.b16 %v380
  %v1659 = vunpack.c.h.b16 %v380
  %v1660 = vunpack.c.l.b16 %v381
  %v1661 = vunpack.c.h.b16 %v381
  %v1662 = vunpack.c.l.b16 %v382
  %v1663 = vunpack.c.h.b16 %v382
  %v1664 = vunpack.c.l.b16 %v383
  %v1665 = vunpack.c.h.b16 %v383
  %v1666 = vunpack.c.l.b16 %v384
  %v1667 = vunpack.c.h.b16 %v384
  %v1668 = vunpack.c.l.b16 %v385
  %v1669 = vunpack.c.h.b16 %v385
  %v1670 = vunpack.c.l.b16 %v386
  %v1671 = vunpack.c.h.b16 %v386
  %v1672 = vunpack.c.l.b16 %v387
  %v1673 = vunpack.c.h.b16 %v387
  %v1674 = vunpack.c.l.b16 %v388
  %v1675 = vunpack.c.h.b16 %v388
  %v1676 = vunpack.c.l.b16 %v389
  %v1677 = vunpack.c.h.b16 %v389
  %v1678 = vunpack.c.l.b16 %v390
  %v1679 = vunpack.c.h.b16 %v390
  %v1680 = vunpack.c.l.b16 %v391
  %v1681 = vunpack.c.h.b16 %v391
  %v1682 = vunpack.c.l.b16 %v392
  %v1683 = vunpack.c.h.b16 %v392
  %v1684 = vunpack.c.l.b16 %v393
  %v1685 = vunpack.c.h.b16 %v393
  %v1686 = vunpack.c.l.b16 %v394
  %v1687 = vunpack.c.h.b16 %v394
  %v1688 = vunpack.c.l.b16 %v395
  %v1689 = vunpack.c.h.b16 %v395
  %v1690 = vunpack.c.l.b16 %v396
  %v1691 = vunpack.c.h.b16 %v396
  %v1692 = vunpack.c.l.b16 %v397
  %v1693 = vunpack.c.h.b16 %v397
  %v1694 = vunpack.c.l.b16 %v398
  %v1695 = vunpack.c.h.b16 %v398
  %v1696 = vunpack.c.l.b16 %v399
  %v1697 = vunpack.c.h.b16 %v399
  %v1698 = vunpack.c.l.b16 %v400
  %v1699 = vunpack.c.h.b16 %v400
  %v1700 = vunpack.c.l.b16 %v401
  %v1701 = vunpack.c.h.b16 %v401
  %v1702 = vunpack.c.l.b16 %v402
  %v1703 = vunpack.c.h.b16 %v402
  %v1704 = vunpack.c.l.b16 %v403
  %v1705 = vunpack.c.h.b16 %v403
  %v1706 = vunpack.c.l.b16 %v404
  %v1707 = vunpack.c.h.b16 %v404
  %v1708 = vunpack.c.l.b16 %v405
  %v1709 = vunpack.c.h.b16 %v405
  %v1710 = vunpack.c.l.b16 %v406
  %v1711 = vunpack.c.h.b16 %v406
  %v1712 = vunpack.c.l.b16 %v407
  %v1713 = vunpack.c.h.b16 %v407
  %v1714 = vunpack.c.l.b16 %v408
  %v1715 = vunpack.c.h.b16 %v408
  %v1716 = vunpack.c.l.b16 %v409
  %v1717 = vunpack.c.h.b16 %v409
  %v1718 = vunpack.c.l.b16 %v410
  %v1719 = vunpack.c.h.b16 %v410
  %v1720 = vunpack.c.l.b16 %v411
  %v1721 = vunpack.c.h.b16 %v411
  %v1722 = vunpack.c.l.b16 %v412
  %v1723 = vunpack.c.h.b16 %v412
  %v1724 = vunpack.c.l.b16 %v413
  %v1725 = vunpack.c.h.b16 %v413
  %v1726 = vunpack.c.l.b16 %v414
  %v1727 = vunpack.c.h.b16 %v414
  %v1728 = vunpack.c.l.b16 %v415
  %v1729 = vunpack.c.h.b16 %v415
  %v1730 = vunpack.c.l.b16 %v416
  %v1731 = vunpack.c.h.b16 %v416
  %v1732 = vunpack.c.l.b16 %v417
  %v1733 = vunpack.c.h.b16 %v417
  %v1734 = vunpack.c.l.b16 %v418
  %v1735 = vunpack.c.h.b16 %v418
  %v1736 = vunpack.c.l.b16 %v419
  %v1737 = vunpack.c.h.b16 %v419
  %v1738 = vunpack.c.l.b16 %v420
  %v1739 = vunpack.c.h.b16 %v420
  %v1740 = vunpack.c.l.b16 %v421
  %v1741 = vunpack.c.h.b16 %v421
  %v1742 = vunpack.c.l.b16 %v422
  %v1743 = vunpack.c.h.b16 %v422
  %v1744 = vunpack.c.l.b16 %v423
  %v1745 = vunpack.c.h.b16 %v423
  %v1746 = vunpack.c.l.b16 %v424
  %v1747 = vunpack.c.h.b16 %v424
  %v1748 = vunpack.c.l.b16 %v425
  %v1749 = vunpack.c.h.b16 %v425
  %v1750 = vunpack.c.l.b16 %v426
  %v1751 = vunpack.c.h.b16 %v426
  %v1752 = vunpack.c.l.b16 %v427
  %v1753 = vunpack.c.h.b16 %v427
  %v1754 = vunpack.c.l.b16 %v428
  %v1755 = vunpack.c.h.b16 %v428
  %v1756 = vunpack.c.l.b16 %v429
  %v1757 = vunpack.c.h.b16 %v429
  %v1758 = vunpack.c.l.b16 %v430
  %v1759 = vunpack.c.h.b16 %v430
  %v1760 = vunpack.c.l.b16 %v431
  %v1761 = vunpack.c.h.b16 %v431
  %v1762 = vunpack.c.l.b16 %v432
  %v1763 = vunpack.c.h.b16 %v432
  %v1764 = vunpack.c.l.b16 %v433
  %v1765 = vunpack.c.h.b16 %v433
  %v1766 = vunpack.c.l.b16 %v434
  %v1767 = vunpack.c.h.b16 %v434
  %v1768 = vunpack.c.l.b16 %v435
  %v1769 = vunpack.c.h.b16 %v435
  %v1770 = vunpack.c.l.b16 %v436
  %v1771 = vunpack.c.h.b16 %v436
  %v1772 = vunpack.c.l.b16 %v437
  %v1773 = vunpack.c.h.b16 %v437
  %v1774 = vunpack.c.l.b16 %v438
  %v1775 = vunpack.c.h.b16 %v438
  %v1776 = vunpack.c.l.b16 %v439
  %v1777 = vunpack.c.h.b16 %v439
  %v1778 = vunpack.c.l.b16 %v440
  %v1779 = vunpack.c.h.b16 %v440
  %v1780 = vunpack.c.l.b16 %v441
  %v1781 = vunpack.c.h.b16 %v441
  %v1782 = vunpack.c.l.b16 %v442
  %v1783 = vunpack.c.h.b16 %v442
  %v1784 = vunpack.c.l.b16 %v443
  %v1785 = vunpack.c.h.b16 %v443
  %v1786 = vunpack.c.l.b16 %v444
  %v1787 = vunpack.c.h.b16 %v444
  %v1788 = vunpack.c.l.b16 %v445
  %v1789 = vunpack.c.h.b16 %v445
  %v1790 = vpack.c.b16 %v1028, %v1022
  %v1791 = vpack.c.b16 %v1029, %v1023
  %v1792 = vpack.c.b16 %v1030, %v1024
  %v1793 = vpack.c.b16 %v1031, %v1025
  %v1794 = vpack.c.b16 %v1032, %v1026
  %v1795 = vpack.c.b16 %v1033, %v1027
  %v1796 = vpack.c.b16 %v1040, %v1034
  %v1797 = vpack.c.b16 %v1041, %v1035
  %v1798 = vpack.c.b16 %v1042, %v1036
  %v1799 = vpack.c.b16 %v1043, %v1037
  %v1800 = vpack.c.b16 %v1044, %v1038
  %v1801 = vpack.c.b16 %v1045, %v1039
  %v1802 = vpack.c.b16 %v1052, %v1046
  %v1803 = vpack.c.b16 %v1053, %v1047
  %v1804 = vpack.c.b16 %v1054, %v1048
  %v1805 = vpack.c.b16 %v1055, %v1049
  %v1806 = vpack.c.b16 %v1056, %v1050
  %v1807 = vpack.c.b16 %v1057, %v1051
  %v1808 = vpack.c.b16 %v1064, %v1058
  %v1809 = vpack.c.b16 %v1065, %v1059
  %v1810 = vpack.c.b16 %v1066, %v1060
  %v1811 = vpack.c.b16 %v1067, %v1061
  %v1812 = vpack.c.b16 %v1068, %v1062
  %v1813 = vpack.c.b16 %v1069, %v1063
  %v1814 = vpack.c.b16 %v1076, %v1070
  %v1815 = vpack.c.b16 %v1077, %v1071
  %v1816 = vpack.c.b16 %v1078, %v1072
  %v1817 = vpack.c.b16 %v1079, %v1073
  %v1818 = vpack.c.b16 %v1080, %v1074
  %v1819 = vpack.c.b16 %v1081, %v1075
  %v1820 = vpack.c.b16 %v1088, %v1082
  %v1821 = vpack.c.b16 %v1089, %v1083
  %v1822 = vpack.c.b16 %v1090, %v1084
  %v1823 = vpack.c.b16 %v1091, %v1085
  %v1824 = vpack.c.b16 %v1092, %v1086
  %v1825 = vpack.c.b16 %v1093, %v1087
  %v1826 = vpack.c.b16 %v1100, %v1094
  %v1827 = vpack.c.b16 %v1101, %v1095
  %v1828 = vpack.c.b16 %v1102, %v1096
  %v1829 = vpack.c.b16 %v1103, %v1097
  %v1830 = vpack.c.b16 %v1104, %v1098
  %v1831 = vpack.c.b16 %v1105, %v1099
  %v1832 = vpack.c.b16 %v1112, %v1106
  %v1833 = vpack.c.b16 %v1113, %v1107
  %v1834 = vpack.c.b16 %v1114, %v1108
  %v1835 = vpack.c.b16 %v1115, %v1109
  %v1836 = vpack.c.b16 %v1116, %v1110
  %v1837 = vpack.c.b16 %v1117, %v1111
  %v1838 = vpack.c.b16 %v1124, %v1118
  %v1839 = vpack.c.b16 %v1125, %v1119
  %v1840 = vpack.c.b16 %v1126, %v1120
  %v1841 = vpack.c.b16 %v1127, %v1121
  %v1842 = vpack.c.b16 %v1128, %v1122
  %v1843 = vpack.c.b16 %v1129, %v1123
  %v1844 = vpack.c.b16 %v1136, %v1130
  %v1845 = vpack.c.b16 %v1137, %v1131
  %v1846 = vpack.c.b16 %v1138, %v1132
  %v1847 = vpack.c.b16 %v1139, %v1133
  %v1848 = vpack.c.b16 %v1140, %v1134
  %v1849 = vpack.c.b16 %v1141, %v1135
  %v1850 = vpack.c.b16 %v1148, %v1142
  %v1851 = vpack.c.b16 %v1149, %v1143
  %v1852 = vpack.c.b16 %v1150, %v1144
  %v1853 = vpack.c.b16 %v1151, %v1145
  %v1854 = vpack.c.b16 %v1152, %v1146
  %v1855 = vpack.c.b16 %v1153, %v1147
  %v1856 = vpack.c.b16 %v1160, %v1154
  %v1857 = vpack.c.b16 %v1161, %v1155
  %v1858 = vpack.c.b16 %v1162, %v1156
  %v1859 = vpack.c.b16 %v1163, %v1157
  %v1860 = vpack.c.b16 %v1164, %v1158
  %v1861 = vpack.c.b16 %v1165, %v1159
  %v1862 = vpack.c.b16 %v1172, %v1166
  %v1863 = vpack.c.b16 %v1173, %v1167
  %v1864 = vpack.c.b16 %v1174, %v1168
  %v1865 = vpack.c.b16 %v1175, %v1169
  %v1866 = vpack.c.b16 %v1176, %v1170
  %v1867 = vpack.c.b16 %v1177, %v1171
  %v1868 = vpack.c.b16 %v1184, %v1178
  %v1869 = vpack.c.b16 %v1185, %v1179
  %v1870 = vpack.c.b16 %v1186, %v1180
  %v1871 = vpack.c.b16 %v1187, %v1181
  %v1872 = vpack.c.b16 %v1188, %v1182
  %v1873 = vpack.c.b16 %v1189, %v1183
  %v1874 = vpack.c.b16 %v1196, %v1190
  %v1875 = vpack.c.b16 %v1197, %v1191
  %v1876 = vpack.c.b16 %v1198, %v1192
  %v1877 = vpack.c.b16 %v1199, %v1193
  %v1878 = vpack.c.b16 %v1200, %v1194
  %v1879 = vpack.c.b16 %v1201, %v1195
  %v1880 = vpack.c.b16 %v1208, %v1202
  %v1881 = vpack.c.b16 %v1209, %v1203
  %v1882 = vpack.c.b16 %v1210, %v1204
  %v1883 = vpack.c.b16 %v1211, %v1205
  %v1884 = vpack.c.b16 %v1212, %v1206
  %v1885 = vpack.c.b16 %v1213, %v1207
  %v1886 = vpack.c.b16 %v1220, %v1214
  %v1887 = vpack.c.b16 %v1221, %v1215
  %v1888 = vpack.c.b16 %v1222, %v1216
  %v1889 = vpack.c.b16 %v1223, %v1217
  %v1890 = vpack.c.b16 %v1224, %v1218
  %v1891 = vpack.c.b16 %v1225, %v1219
  %v1892 = vpack.c.b16 %v1232, %v1226
  %v1893 = vpack.c.b16 %v1233, %v1227
  %v1894 = vpack.c.b16 %v1234, %v1228
  %v1895 = vpack.c.b16 %v1235, %v1229
  %v1896 = vpack.c.b16 %v1236, %v1230
  %v1897 = vpack.c.b16 %v1237, %v1231
  %v1898 = vpack.c.b16 %v1244, %v1238
  %v1899 = vpack.c.b16 %v1245, %v1239
  %v1900 = vpack.c.b16 %v1246, %v1240
  %v1901 = vpack.c.b16 %v1247, %v1241
  %v1902 = vpack.c.b16 %v1248, %v1242
  %v1903 = vpack.c.b16 %v1249, %v1243
  %v1904 = vpack.c.b16 %v1256, %v1250
  %v1905 = vpack.c.b16 %v1257, %v1251
  %v1906 = vpack.c.b16 %v1258, %v1252
  %v1907 = vpack.c.b16 %v1259, %v1253
  %v1908 = vpack.c.b16 %v1260, %v1254
  %v1909 = vpack.c.b16 %v1261, %v1255
  %v1910 = vpack.c.b16 %v1268, %v1262
  %v1911 = vpack.c.b16 %v1269, %v1263
  %v1912 = vpack.c.b16 %v1270, %v1264
  %v1913 = vpack.c.b16 %v1271, %v1265
  %v1914 = vpack.c.b16 %v1272, %v1266
  %v1915 = vpack.c.b16 %v1273, %v1267
  %v1916 = vpack.c.b16 %v1280, %v1274
  %v1917 = vpack.c.b16 %v1281, %v1275
  %v1918 = vpack.c.b16 %v1282, %v1276
  %v1919 = vpack.c.b16 %v1283, %v1277
  %v1920 = vpack.c.b16 %v1284, %v1278
  %v1921 = vpack.c.b16 %v1285, %v1279
  %v1922 = vpack.c.b16 %v1292, %v1286
  %v1923 = vpack.c.b16 %v1293, %v1287
  %v1924 = vpack.c.b16 %v1294, %v1288
  %v1925 = vpack.c.b16 %v1295, %v1289
  %v1926 = vpack.c.b16 %v1296, %v1290
  %v1927 = vpack.c.b16 %v1297, %v1291
  %v1928 = vpack.c.b16 %v1304, %v1298
  %v1929 = vpack.c.b16 %v1305, %v1299
  %v1930 = vpack.c.b16 %v1306, %v1300
  %v1931 = vpack.c.b16 %v1307, %v1301
  %v1932 = vpack.c.b16 %v1308, %v1302
  %v1933 = vpack.c.b16 %v1309, %v1303
  %v1934 = vpack.c.b16 %v1316, %v1310
  %v1935 = vpack.c.b16 %v1317, %v1311
  %v1936 = vpack.c.b16 %v1318, %v1312
  %v1937 = vpack.c.b16 %v1319, %v1313
  %v1938 = vpack.c.b16 %v1320, %v1314
  %v1939 = vpack.c.b16 %v1321, %v1315
  %v1940 = vpack.c.b16 %v1328, %v1322
  %v1941 = vpack.c.b16 %v1329, %v1323
  %v1942 = vpack.c.b16 %v1330, %v1324
  %v1943 = vpack.c.b16 %v1331, %v1325
  %v1944 = vpack.c.b16 %v1332, %v1326
  %v1945 = vpack.c.b16 %v1333, %v1327
  %v1946 = vpack.c.b16 %v1340, %v1334
  %v1947 = vpack.c.b16 %v1341, %v1335
  %v1948 = vpack.c.b16 %v1342, %v1336
  %v1949 = vpack.c.b16 %v1343, %v1337
  %v1950 = vpack.c.b16 %v1344, %v1338
  %v1951 = vpack.c.b16 %v1345, %v1339
  %v1952 = vpack.c.b16 %v1352, %v1346
  %v1953 = vpack.c.b16 %v1353, %v1347
  %v1954 = vpack.c.b16 %v1354, %v1348
  %v1955 = vpack.c.b16 %v1355, %v1349
  %v1956 = vpack.c.b16 %v1356, %v1350
  %v1957 = vpack.c.b16 %v1357, %v1351
  %v1958 = vpack.c.b16 %v1364, %v1358
  %v1959 = vpack.c.b16 %v1365, %v1359
  %v1960 = vpack.c.b16 %v1366, %v1360
  %v1961 = vpack.c.b16 %v1367, %v1361
  %v1962 = vpack.c.b16 %v1368, %v1362
  %v1963 = vpack.c.b16 %v1369, %v1363
  %v1964 = vpack.c.b16 %v1376, %v1370
  %v1965 = vpack.c.b16 %v1377, %v1371
  %v1966 = vpack.c.b16 %v1378, %v1372
  %v1967 = vpack.c.b16 %v1379, %v1373
  %v1968 = vpack.c.b16 %v1380, %v1374
  %v1969 = vpack.c.b16 %v1381, %v1375
  %v1970 = vpack.c.b16 %v1388, %v1382
  %v1971 = vpack.c.b16 %v1389, %v1383
  %v1972 = vpack.c.b16 %v1390, %v1384
  %v1973 = vpack.c.b16 %v1391, %v1385
  %v1974 = vpack.c.b16 %v1392, %v1386
  %v1975 = vpack.c.b16 %v1393, %v1387
  %v1976 = vpack.c.b16 %v1400, %v1394
  %v1977 = vpack.c.b16 %v1401, %v1395
  %v1978 = vpack.c.b16 %v1402, %v1396
  %v1979 = vpack.c.b16 %v1403, %v1397
  %v1980 = vpack.c.b16 %v1404, %v1398
  %v1981 = vpack.c.b16 %v1405, %v1399
  %v1982 = vpack.c.b16 %v1412, %v1406
  %v1983 = vpack.c.b16 %v1413, %v1407
  %v1984 = vpack.c.b16 %v1414, %v1408
  %v1985 = vpack.c.b16 %v1415, %v1409
  %v1986 = vpack.c.b16 %v1416, %v1410
  %v1987 = vpack.c.b16 %v1417, %v1411
  %v1988 = vpack.c.b16 %v1424, %v1418
  %v1989 = vpack.c.b16 %v1425, %v1419
  %v1990 = vpack.c.b16 %v1426, %v1420
  %v1991 = vpack.c.b16 %v1427, %v1421
  %v1992 = vpack.c.b16 %v1428, %v1422
  %v1993 = vpack.c.b16 %v1429, %v1423
  %v1994 = vpack.c.b16 %v1436, %v1430
  %v1995 = vpack.c.b16 %v1437, %v1431
  %v1996 = vpack.c.b16 %v1438, %v1432
  %v1997 = vpack.c.b16 %v1439, %v1433
  %v1998 = vpack.c.b16 %v1440, %v1434
  %v1999 = vpack.c.b16 %v1441, %v1435
  %v2000 = vpack.c.b16 %v1448, %v1442
  %v2001 = vpack.c.b16 %v1449, %v1443
  %v2002 = vpack.c.b16 %v1450, %v1444
  %v2003 = vpack.c.b16 %v1451, %v1445
  %v2004 = vpack.c.b16 %v1452, %v1446
  %v2005 = vpack.c.b16 %v1453, %v1447
  %v2006 = vpack.c.b16 %v1460, %v1454
  %v2007 = vpack.c.b16 %v1461, %v1455
  %v2008 = vpack.c.b16 %v1462, %v1456
  %v2009 = vpack.c.b16 %v1463, %v1457
  %v2010 = vpack.c.b16 %v1464, %v1458
  %v2011 = vpack.c.b16 %v1465, %v1459
  %v2012 = vpack.c.b16 %v1472, %v1466
  %v2013 = vpack.c.b16 %v1473, %v1467
  %v2014 = vpack.c.b16 %v1474, %v1468
  %v2015 = vpack.c.b16 %v1475, %v1469
  %v2016 = vpack.c.b16 %v1476, %v1470
  %v2017 = vpack.c.b16 %v1477, %v1471
  %v2018 = vpack.c.b16 %v1484, %v1478
  %v2019 = vpack.c.b16 %v1485, %v1479
  %v2020 = vpack.c.b16 %v1486, %v1480
  %v2021 = vpack.c.b16 %v1487, %v1481
  %v2022 = vpack.c.b16 %v1488, %v1482
  %v2023 = vpack.c.b16 %v1489, %v1483
  %v2024 = vpack.c.b16 %v1496, %v1490
  %v2025 = vpack.c.b16 %v1497, %v1491
  %v2026 = vpack.c.b16 %v1498, %v1492
  %v2027 = vpack.c.b16 %v1499, %v1493
  %v2028 = vpack.c.b16 %v1500, %v1494
  %v2029 = vpack.c.b16 %v1501, %v1495
  %v2030 = vpack.c.b16 %v1508, %v1502
  %v2031 = vpack.c.b16 %v1509, %v1503
  %v2032 = vpack.c.b16 %v1510, %v1504
  %v2033 = vpack.c.b16 %v1511, %v1505
  %v2034 = vpack.c.b16 %v1512, %v1506
  %v2035 = vpack.c.b16 %v1513, %v1507
  %v2036 = vpack.c.b16 %v1520, %v1514
  %v2037 = vpack.c.b16 %v1521, %v1515
  %v2038 = vpack.c.b16 %v1522, %v1516
  %v2039 = vpack.c.b16 %v1523, %v1517
  %v2040 = vpack.c.b16 %v1524, %v1518
  %v2041 = vpack.c.b16 %v1525, %v1519
  %v2042 = vpack.c.b16 %v1532, %v1526
  %v2043 = vpack.c.b16 %v1533, %v1527
  %v2044 = vpack.c.b16 %v1534, %v1528
  %v2045 = vpack.c.b16 %v1535, %v1529
  %v2046 = vpack.c.b16 %v1536, %v1530
  %v2047 = vpack.c.b16 %v1537, %v1531
  %v2048 = vpack.c.b16 %v1544, %v1538
  %v2049 = vpack.c.b16 %v1545, %v1539
  %v2050 = vpack.c.b16 %v1546, %v1540
  %v2051 = vpack.c.b16 %v1547, %v1541
  %v2052 = vpack.c.b16 %v1548, %v1542
  %v2053 = vpack.c.b16 %v1549, %v1543
  %v2054 = vpack.c.b16 %v1556, %v1550
  %v2055 = vpack.c.b16 %v1557, %v1551
  %v2056 = vpack.c.b16 %v1558, %v1552
  %v2057 = vpack.c.b16 %v1559, %v1553
  %v2058 = vpack.c.b16 %v1560, %v1554
  %v2059 = vpack.c.b16 %v1561, %v1555
  %v2060 = vpack.c.b16 %v1568, %v1562
  %v2061 = vpack.c.b16 %v1569, %v1563
  %v2062 = vpack.c.b16 %v1570, %v1564
  %v2063 = vpack.c.b16 %v1571, %v1565
  %v2064 = vpack.c.b16 %v1572, %v1566
  %v2065 = vpack.c.b16 %v1573, %v1567
  %v2066 = vpack.c.b16 %v1580, %v1574
  %v2067 = vpack.c.b16 %v1581, %v1575
  %v2068 = vpack.c.b16 %v1582, %v1576
  %v2069 = vpack.c.b16 %v1583, %v1577
  %v2070 = vpack.c.b16 %v1584, %v1578
  %v2071 = vpack.c.b16 %v1585, %v1579
  %v2072 = vpack.c.b16 %v1592, %v1586
  %v2073 = vpack.c.b16 %v1593, %v1587
  %v2074 = vpack.c.b16 %v1594, %v1588
  %v2075 = vpack.c.b16 %v1595, %v1589
  %v2076 = vpack.c.b16 %v1596, %v1590
  %v2077 = vpack.c.b16 %v1597, %v1591
  %v2078 = vpack.c.b16 %v1604, %v1598
  %v2079 = vpack.c.b16 %v1605, %v1599
  %v2080 = vpack.c.b16 %v1606, %v1600
  %v2081 = vpack.c.b16 %v1607, %v1601
  %v2082 = vpack.c.b16 %v1608, %v1602
  %v2083 = vpack.c.b16 %v1609, %v1603
  %v2084 = vpack.c.b16 %v1616, %v1610
  %v2085 = vpack.c.b16 %v1617, %v1611
  %v2086 = vpack.c.b16 %v1618, %v1612
  %v2087 = vpack.c.b16 %v1619, %v1613
  %v2088 = vpack.c.b16 %v1620, %v1614
  %v2089 = vpack.c.b16 %v1621, %v1615
  %v2090 = vpack.c.b16 %v1628, %v1622
  %v2091 = vpack.c.b16 %v1629, %v1623
  %v2092 = vpack.c.b16 %v1630, %v1624
  %v2093 = vpack.c.b16 %v1631, %v1625
  %v2094 = vpack.c.b16 %v1632, %v1626
  %v2095 = vpack.c.b16 %v1633, %v1627
  %v2096 = vpack.c.b16 %v1640, %v1634
  %v2097 = vpack.c.b16 %v1641, %v1635
  %v2098 = vpack.c.b16 %v1642, %v1636
  %v2099 = vpack.c.b16 %v1643, %v1637
  %v2100 = vpack.c.b16 %v1644, %v1638
  %v2101 = vpack.c.b16 %v1645, %v1639
  %v2102 = vpack.c.b16 %v1652, %v1646
  %v2103 = vpack.c.b16 %v1653, %v1647
  %v2104 = vpack.c.b16 %v1654, %v1648
  %v2105 = vpack.c.b16 %v1655, %v1649
  %v2106 = vpack.c.b16 %v1656, %v1650
  %v2107 = vpack.c.b16 %v1657, %v1651
  %v2108 = vpack.c.b16 %v1664, %v1658
  %v2109 = vpack.c.b16 %v1665, %v1659
  %v2110 = vpack.c.b16 %v1666, %v1660
  %v2111 = vpack.c.b16 %v1667, %v1661
  %v2112 = vpack.c.b16 %v1668, %v1662
  %v2113 = vpack.c.b16 %v1669, %v1663
  %v2114 = vpack.c.b16 %v1676, %v1670
  %v2115 = vpack.c.b16 %v1677, %v1671
  %v2116 = vpack.c.b16 %v1678, %v1672
  %v2117 = vpack.c.b16 %v1679, %v1673
  %v2118 = vpack.c.b16 %v1680, %v1674
  %v2119 = vpack.c.b16 %v1681, %v1675
  %v2120 = vpack.c.b16 %v1688, %v1682
  %v2121 = vpack.c.b16 %v1689, %v1683
  %v2122 = vpack.c.b16 %v1690, %v1684
  %v2123 = vpack.c.b16 %v1691, %v1685
  %v2124 = vpack.c.b16 %v1692, %v1686
  %v2125 = vpack.c.b16 %v1693, %v1687
  %v2126 = vpack.c.b16 %v1700, %v1694
  %v2127 = vpack.c.b16 %v1701, %v1695
  %v2128 = vpack.c.b16 %v1702, %v1696
  %v2129 = vpack.c.b16 %v1703, %v1697
  %v2130 = vpack.c.b16 %v1704, %v1698
  %v2131 = vpack.c.b16 %v1705, %v1699
  %v2132 = vpack.c.b16 %v1712, %v1706
  %v2133 = vpack.c.b16 %v1713, %v1707
  %v2134 = vpack.c.b16 %v1714, %v1708
  %v2135 = vpack.c.b16 %v1715, %v1709
  %v2136 = vpack.c.b16 %v1716, %v1710
  %v2137 = vpack.c.b16 %v1717, %v1711
  %v2138 = vpack.c.b16 %v1724, %v1718
  %v2139 = vpack.c.b16 %v1725, %v1719
  %v2140 = vpack.c.b16 %v1726, %v1720
  %v2141 = vpack.c.b16 %v1727, %v1721
  %v2142 = vpack.c.b16 %v1728, %v1722
  %v2143 = vpack.c.b16 %v1729, %v1723
  %v2144 = vpack.c.b16 %v1736, %v1730
  %v2145 = vpack.c.b16 %v1737, %v1731
  %v2146 = vpack.c.b16 %v1738, %v1732
  %v2147 = vpack.c.b16 %v1739, %v1733
  %v2148 = vpack.c.b16 %v1740, %v1734
  %v2149 = vpack.c.b16 %v1741, %v1735
  %v2150 = vpack.c.b16 %v1748, %v1742
  %v2151 = vpack.c.b16 %v1749, %v1743
  %v2152 = vpack.c.b16 %v1750, %v1744
  %v2153 = vpack.c.b16 %v1751, %v1745
  %v2154 = vpack.c.b16 %v1752, %v1746
  %v2155 = vpack.c.b16 %v1753, %v1747
  %v2156 = vpack.c.b16 %v1760, %v1754
  %v2157 = vpack.c.b16 %v1761, %v1755
  %v2158 = vpack.c.b16 %v1762, %v1756
  %v2159 = vpack.c.b16 %v1763, %v1757
  %v2160 = vpack.c.b16 %v1764, %v1758
  %v2161 = vpack.c.b16 %v1765, %v1759
  %v2162 = vpack.c.b16 %v1772, %v1766
  %v2163 = vpack.c.b16 %v1773, %v1767
  %v2164 = vpack.c.b16 %v1774, %v1768
  %v2165 = vpack.c.b16 %v1775, %v1769
  %v2166 = vpack.c.b16 %v1776, %v1770
  %v2167 = vpack.c.b16 %v1777, %v1771
  %v2168 = vpack.c.b16 %v1784, %v1778
  %v2169 = vpack.c.b16 %v1785, %v1779
  %v2170 = vpack.c.b16 %v1786, %v1780
  %v2171 = vpack.c.b16 %v1787, %v1781
  %v2172 = vpack.c.b16 %v1788, %v1782
  %v2173 = vpack.c.b16 %v1789, %v1783
  %2558 = vmatprep.subr.bf16.mxu0 %v1791
  %2559 = vmatpush1.bf16.msra.mxu0 %v1790
  %2560 = vmatprep.subr.bf16.mxu0 %v1797
  %2561 = vmatpush1.bf16.msra.mxu0 %v1796
  %2562 = vmatprep.subr.bf16.mxu0 %v1803
  %2563 = vmatpush1.bf16.msra.mxu0 %v1802
  %2564 = vmatprep.subr.bf16.mxu0 %v1809
  %2565 = vmatpush1.bf16.msra.mxu0 %v1808
  %2566 = vmatprep.subr.bf16.mxu0 %v1815
  %2567 = vmatpush1.bf16.msra.mxu0 %v1814
  %2568 = vmatprep.subr.bf16.mxu0 %v1821
  %2569 = vmatpush1.bf16.msra.mxu0 %v1820
  %2570 = vmatprep.subr.bf16.mxu0 %v1827
  %2571 = vmatpush1.bf16.msra.mxu0 %v1826
  %2572 = vmatprep.subr.bf16.mxu0 %v1833
  %2573 = vmatpush1.bf16.msra.mxu0 %v1832
  %2574 = vmatprep.subr.bf16.mxu0 %v1839
  %2575 = vmatpush1.bf16.msra.mxu0 %v1838
  %2576 = vmatprep.subr.bf16.mxu0 %v1845
  %2577 = vmatpush1.bf16.msra.mxu0 %v1844
  %2578 = vmatprep.subr.bf16.mxu0 %v1851
  %2579 = vmatpush1.bf16.msra.mxu0 %v1850
  %2580 = vmatprep.subr.bf16.mxu0 %v1857
  %2581 = vmatpush1.bf16.msra.mxu0 %v1856
  %2582 = vmatprep.subr.bf16.mxu0 %v1863
  %2583 = vmatpush1.bf16.msra.mxu0 %v1862
  %2584 = vmatprep.subr.bf16.mxu0 %v1869
  %2585 = vmatpush1.bf16.msra.mxu0 %v1868
  %2586 = vmatprep.subr.bf16.mxu0 %v1875
  %2587 = vmatpush1.bf16.msra.mxu0 %v1874
  %2588 = vmatprep.subr.bf16.mxu0 %v1881
  %2589 = vmatpush1.bf16.msra.mxu0 %v1880
  %2590 = vmatprep.mubr.bf16.mxu0 %v575
  %2591 = vmatmul.mubr.bf16.gmra.mrb[0].mxu0 %v574
  %v2592 = vpop.f32.mrb[0].mxu0
  %v2593 = vadd.f32 %v451, %v2592
  %v2594 = vpop.f32.mrb[0].mxu0
  %v2595 = vadd.f32 %v455, %v2594
  %v2596 = vpop.f32.mrb[0].mxu0
  %v2597 = vadd.f32 %v451, %v2596
  %v2598 = vpop.f32.mrb[0].mxu0
  %v2599 = vadd.f32 %v455, %v2598
  %2600 = vmatprep.mubr.bf16.mxu0 %v583
  %2601 = vmatmul.mubr.bf16.gmra.mrb[0].mxu0 %v582
  %v2602 = vpop.f32.mrb[0].mxu0
  %v2603 = vadd.f32 %v451, %v2602
  %v2604 = vpop.f32.mrb[0].mxu0
  %v2605 = vadd.f32 %v455, %v2604
  %v2606 = vpop.f32.mrb[0].mxu0
  %v2607 = vadd.f32 %v451, %v2606
  %v2608 = vpop.f32.mrb[0].mxu0
  %v2609 = vadd.f32 %v455, %v2608
  %2610 = vmatprep.mubr.bf16.mxu0 %v591
  %2611 = vmatmul.mubr.bf16.gmra.mrb[0].mxu0 %v590
  %v2612 = vpop.f32.mrb[0].mxu0
  %v2613 = vadd.f32 %v451, %v2612
  %v2614 = vpop.f32.mrb[0].mxu0
  %v2615 = vadd.f32 %v455, %v2614
  %v2616 = vpop.f32.mrb[0].mxu0
  %v2617 = vadd.f32 %v451, %v2616
  %v2618 = vpop.f32.mrb[0].mxu0
  %v2619 = vadd.f32 %v455, %v2618
  %2620 = vmatprep.mubr.bf16.mxu0 %v599
  %2621 = vmatmul.mubr.bf16.gmra.mrb[0].mxu0 %v598
  %v2622 = vpop.f32.mrb[0].mxu0
  %v2623 = vadd.f32 %v451, %v2622
  %v2624 = vpop.f32.mrb[0].mxu0
  %v2625 = vadd.f32 %v455, %v2624
  %v2626 = vpop.f32.mrb[0].mxu0
  %v2627 = vadd.f32 %v451, %v2626
  %v2628 = vpop.f32.mrb[0].mxu0
  %v2629 = vadd.f32 %v455, %v2628
  %2630 = vdwg.mxu0
  %2631 = vmatprep.subr.bf16.mxu0 %v1887
  %2632 = vmatpush1.bf16.msra.mxu0 %v1886
  %2633 = vmatprep.subr.bf16.mxu0 %v1893
  %2634 = vmatpush1.bf16.msra.mxu0 %v1892
  %2635 = vmatprep.subr.bf16.mxu0 %v1899
  %2636 = vmatpush1.bf16.msra.mxu0 %v1898
  %2637 = vmatprep.subr.bf16.mxu0 %v1905
  %2638 = vmatpush1.bf16.msra.mxu0 %v1904
  %2639 = vmatprep.subr.bf16.mxu0 %v1911
  %2640 = vmatpush1.bf16.msra.mxu0 %v1910
  %2641 = vmatprep.subr.bf16.mxu0 %v1917
  %2642 = vmatpush1.bf16.msra.mxu0 %v1916
  %2643 = vmatprep.subr.bf16.mxu0 %v1923
  %2644 = vmatpush1.bf16.msra.mxu0 %v1922
  %2645 = vmatprep.subr.bf16.mxu0 %v1929
  %2646 = vmatpush1.bf16.msra.mxu0 %v1928
  %2647 = vmatprep.subr.bf16.mxu0 %v1935
  %2648 = vmatpush1.bf16.msra.mxu0 %v1934
  %2649 = vmatprep.subr.bf16.mxu0 %v1941
  %2650 = vmatpush1.bf16.msra.mxu0 %v1940
  %2651 = vmatprep.subr.bf16.mxu0 %v1947
  %2652 = vmatpush1.bf16.msra.mxu0 %v1946
  %2653 = vmatprep.subr.bf16.mxu0 %v1953
  %2654 = vmatpush1.bf16.msra.mxu0 %v1952
  %2655 = vmatprep.subr.bf16.mxu0 %v1959
  %2656 = vmatpush1.bf16.msra.mxu0 %v1958
  %2657 = vmatprep.subr.bf16.mxu0 %v1965
  %2658 = vmatpush1.bf16.msra.mxu0 %v1964
  %2659 = vmatprep.subr.bf16.mxu0 %v1971
  %2660 = vmatpush1.bf16.msra.mxu0 %v1970
  %2661 = vmatprep.subr.bf16.mxu0 %v1977
  %2662 = vmatpush1.bf16.msra.mxu0 %v1976
  %2663 = vmatprep.mubr.bf16.mxu0 %v577
  %2664 = vmatmul.mubr.bf16.gmra.mrb[0].mxu0 %v576
  %v2665 = vpop.f32.mrb[0].mxu0
  %v2666 = vadd.f32 %v2593, %v2665
  %v2667 = vpop.f32.mrb[0].mxu0
  %v2668 = vadd.f32 %v2595, %v2667
  %v2669 = vpop.f32.mrb[0].mxu0
  %v2670 = vadd.f32 %v2597, %v2669
  %v2671 = vpop.f32.mrb[0].mxu0
  %v2672 = vadd.f32 %v2599, %v2671
  %2673 = vmatprep.mubr.bf16.mxu0 %v585
  %2674 = vmatmul.mubr.bf16.gmra.mrb[0].mxu0 %v584
  %v2675 = vpop.f32.mrb[0].mxu0
  %v2676 = vadd.f32 %v2603, %v2675
  %v2677 = vpop.f32.mrb[0].mxu0
  %v2678 = vadd.f32 %v2605, %v2677
  %v2679 = vpop.f32.mrb[0].mxu0
  %v2680 = vadd.f32 %v2607, %v2679
  %v2681 = vpop.f32.mrb[0].mxu0
  %v2682 = vadd.f32 %v2609, %v2681
  %2683 = vmatprep.mubr.bf16.mxu0 %v593
  %2684 = vmatmul.mubr.bf16.gmra.mrb[0].mxu0 %v592
  %v2685 = vpop.f32.mrb[0].mxu0
  %v2686 = vadd.f32 %v2613, %v2685
  %v2687 = vpop.f32.mrb[0].mxu0
  %v2688 = vadd.f32 %v2615, %v2687
  %v2689 = vpop.f32.mrb[0].mxu0
  %v2690 = vadd.f32 %v2617, %v2689
  %v2691 = vpop.f32.mrb[0].mxu0
  %v2692 = vadd.f32 %v2619, %v2691
  %2693 = vmatprep.mubr.bf16.mxu0 %v601
  %2694 = vmatmul.mubr.bf16.gmra.mrb[0].mxu0 %v600
  %v2695 = vpop.f32.mrb[0].mxu0
  %v2696 = vadd.f32 %v2623, %v2695
  %v2697 = vpop.f32.mrb[0].mxu0
  %v2698 = vadd.f32 %v2625, %v2697
  %v2699 = vpop.f32.mrb[0].mxu0
  %v2700 = vadd.f32 %v2627, %v2699
  %v2701 = vpop.f32.mrb[0].mxu0
  %v2702 = vadd.f32 %v2629, %v2701
  %2703 = vdwg.mxu0
  %2704 = vmatprep.subr.bf16.mxu0 %v1983
  %2705 = vmatpush1.bf16.msra.mxu0 %v1982
  %2706 = vmatprep.subr.bf16.mxu0 %v1989
  %2707 = vmatpush1.bf16.msra.mxu0 %v1988
  %2708 = vmatprep.subr.bf16.mxu0 %v1995
  %2709 = vmatpush1.bf16.msra.mxu0 %v1994
  %2710 = vmatprep.subr.bf16.mxu0 %v2001
  %2711 = vmatpush1.bf16.msra.mxu0 %v2000
  %2712 = vmatprep.subr.bf16.mxu0 %v2007
  %2713 = vmatpush1.bf16.msra.mxu0 %v2006
  %2714 = vmatprep.subr.bf16.mxu0 %v2013
  %2715 = vmatpush1.bf16.msra.mxu0 %v2012
  %2716 = vmatprep.subr.bf16.mxu0 %v2019
  %2717 = vmatpush1.bf16.msra.mxu0 %v2018
  %2718 = vmatprep.subr.bf16.mxu0 %v2025
  %2719 = vmatpush1.bf16.msra.mxu0 %v2024
  %2720 = vmatprep.subr.bf16.mxu0 %v2031
  %2721 = vmatpush1.bf16.msra.mxu0 %v2030
  %2722 = vmatprep.subr.bf16.mxu0 %v2037
  %2723 = vmatpush1.bf16.msra.mxu0 %v2036
  %2724 = vmatprep.subr.bf16.mxu0 %v2043
  %2725 = vmatpush1.bf16.msra.mxu0 %v2042
  %2726 = vmatprep.subr.bf16.mxu0 %v2049
  %2727 = vmatpush1.bf16.msra.mxu0 %v2048
  %2728 = vmatprep.subr.bf16.mxu0 %v2055
  %2729 = vmatpush1.bf16.msra.mxu0 %v2054
  %2730 = vmatprep.subr.bf16.mxu0 %v2061
  %2731 = vmatpush1.bf16.msra.mxu0 %v2060
  %2732 = vmatprep.subr.bf16.mxu0 %v2067
  %2733 = vmatpush1.bf16.msra.mxu0 %v2066
  %2734 = vmatprep.subr.bf16.mxu0 %v2073
  %2735 = vmatpush1.bf16.msra.mxu0 %v2072
  %2736 = vmatprep.mubr.bf16.mxu0 %v579
  %2737 = vmatmul.mubr.bf16.gmra.mrb[0].mxu0 %v578
  %v2738 = vpop.f32.mrb[0].mxu0
  %v2739 = vadd.f32 %v2666, %v2738
  %v2740 = vpop.f32.mrb[0].mxu0
  %v2741 = vadd.f32 %v2668, %v2740
  %v2742 = vpop.f32.mrb[0].mxu0
  %v2743 = vadd.f32 %v2670, %v2742
  %v2744 = vpop.f32.mrb[0].mxu0
  %v2745 = vadd.f32 %v2672, %v2744
  %2746 = vmatprep.mubr.bf16.mxu0 %v587
  %2747 = vmatmul.mubr.bf16.gmra.mrb[0].mxu0 %v586
  %v2748 = vpop.f32.mrb[0].mxu0
  %v2749 = vadd.f32 %v2676, %v2748
  %v2750 = vpop.f32.mrb[0].mxu0
  %v2751 = vadd.f32 %v2678, %v2750
  %v2752 = vpop.f32.mrb[0].mxu0
  %v2753 = vadd.f32 %v2680, %v2752
  %v2754 = vpop.f32.mrb[0].mxu0
  %v2755 = vadd.f32 %v2682, %v2754
  %2756 = vmatprep.mubr.bf16.mxu0 %v595
  %2757 = vmatmul.mubr.bf16.gmra.mrb[0].mxu0 %v594
  %v2758 = vpop.f32.mrb[0].mxu0
  %v2759 = vadd.f32 %v2686, %v2758
  %v2760 = vpop.f32.mrb[0].mxu0
  %v2761 = vadd.f32 %v2688, %v2760
  %v2762 = vpop.f32.mrb[0].mxu0
  %v2763 = vadd.f32 %v2690, %v2762
  %v2764 = vpop.f32.mrb[0].mxu0
  %v2765 = vadd.f32 %v2692, %v2764
  %2766 = vmatprep.mubr.bf16.mxu0 %v603
  %2767 = vmatmul.mubr.bf16.gmra.mrb[0].mxu0 %v602
  %v2768 = vpop.f32.mrb[0].mxu0
  %v2769 = vadd.f32 %v2696, %v2768
  %v2770 = vpop.f32.mrb[0].mxu0
  %v2771 = vadd.f32 %v2698, %v2770
  %v2772 = vpop.f32.mrb[0].mxu0
  %v2773 = vadd.f32 %v2700, %v2772
  %v2774 = vpop.f32.mrb[0].mxu0
  %v2775 = vadd.f32 %v2702, %v2774
  %2776 = vdwg.mxu0
  %2777 = vmatprep.subr.bf16.mxu0 %v2079
  %2778 = vmatpush1.bf16.msra.mxu0 %v2078
  %2779 = vmatprep.subr.bf16.mxu0 %v2085
  %2780 = vmatpush1.bf16.msra.mxu0 %v2084
  %2781 = vmatprep.subr.bf16.mxu0 %v2091
  %2782 = vmatpush1.bf16.msra.mxu0 %v2090
  %2783 = vmatprep.subr.bf16.mxu0 %v2097
  %2784 = vmatpush1.bf16.msra.mxu0 %v2096
  %2785 = vmatprep.subr.bf16.mxu0 %v2103
  %2786 = vmatpush1.bf16.msra.mxu0 %v2102
  %2787 = vmatprep.subr.bf16.mxu0 %v2109
  %2788 = vmatpush1.bf16.msra.mxu0 %v2108
  %2789 = vmatprep.subr.bf16.mxu0 %v2115
  %2790 = vmatpush1.bf16.msra.mxu0 %v2114
  %2791 = vmatprep.subr.bf16.mxu0 %v2121
  %2792 = vmatpush1.bf16.msra.mxu0 %v2120
  %2793 = vmatprep.subr.bf16.mxu0 %v2127
  %2794 = vmatpush1.bf16.msra.mxu0 %v2126
  %2795 = vmatprep.subr.bf16.mxu0 %v2133
  %2796 = vmatpush1.bf16.msra.mxu0 %v2132
  %2797 = vmatprep.subr.bf16.mxu0 %v2139
  %2798 = vmatpush1.bf16.msra.mxu0 %v2138
  %2799 = vmatprep.subr.bf16.mxu0 %v2145
  %2800 = vmatpush1.bf16.msra.mxu0 %v2144
  %2801 = vmatprep.subr.bf16.mxu0 %v2151
  %2802 = vmatpush1.bf16.msra.mxu0 %v2150
  %2803 = vmatprep.subr.bf16.mxu0 %v2157
  %2804 = vmatpush1.bf16.msra.mxu0 %v2156
  %2805 = vmatprep.subr.bf16.mxu0 %v2163
  %2806 = vmatpush1.bf16.msra.mxu0 %v2162
  %2807 = vmatprep.subr.bf16.mxu0 %v2169
  %2808 = vmatpush1.bf16.msra.mxu0 %v2168
  %2809 = vmatprep.mubr.bf16.mxu0 %v581
  %2810 = vmatmul.mubr.bf16.gmra.mrb[0].mxu0 %v580
  %v2811 = vpop.f32.mrb[0].mxu0
  %v2812 = vadd.f32 %v2739, %v2811
  %v2813 = vpop.f32.mrb[0].mxu0
  %v2814 = vadd.f32 %v2741, %v2813
  %v2815 = vpop.f32.mrb[0].mxu0
  %v2816 = vadd.f32 %v2743, %v2815
  %v2817 = vpop.f32.mrb[0].mxu0
  %v2818 = vadd.f32 %v2745, %v2817
  %2819 = vmatprep.mubr.bf16.mxu0 %v589
  %2820 = vmatmul.mubr.bf16.gmra.mrb[0].mxu0 %v588
  %v2821 = vpop.f32.mrb[0].mxu0
  %v2822 = vadd.f32 %v2749, %v2821
  %v2823 = vpop.f32.mrb[0].mxu0
  %v2824 = vadd.f32 %v2751, %v2823
  %v2825 = vpop.f32.mrb[0].mxu0
  %v2826 = vadd.f32 %v2753, %v2825
  %v2827 = vpop.f32.mrb[0].mxu0
  %v2828 = vadd.f32 %v2755, %v2827
  %2829 = vmatprep.mubr.bf16.mxu0 %v597
  %2830 = vmatmul.mubr.bf16.gmra.mrb[0].mxu0 %v596
  %v2831 = vpop.f32.mrb[0].mxu0
  %v2832 = vadd.f32 %v2759, %v2831
  %v2833 = vpop.f32.mrb[0].mxu0
  %v2834 = vadd.f32 %v2761, %v2833
  %v2835 = vpop.f32.mrb[0].mxu0
  %v2836 = vadd.f32 %v2763, %v2835
  %v2837 = vpop.f32.mrb[0].mxu0
  %v2838 = vadd.f32 %v2765, %v2837
  %2839 = vmatprep.mubr.bf16.mxu0 %v605
  %2840 = vmatmul.mubr.bf16.gmra.mrb[0].mxu0 %v604
  %v2841 = vpop.f32.mrb[0].mxu0
  %v2842 = vadd.f32 %v2769, %v2841
  %v2843 = vpop.f32.mrb[0].mxu0
  %v2844 = vadd.f32 %v2771, %v2843
  %v2845 = vpop.f32.mrb[0].mxu0
  %v2846 = vadd.f32 %v2773, %v2845
  %v2847 = vpop.f32.mrb[0].mxu0
  %v2848 = vadd.f32 %v2775, %v2847
  %2849 = vdwg.mxu0
  %2850 = vmatprep.subr.bf16.mxu0 %v1793
  %2851 = vmatpush1.bf16.msra.mxu0 %v1792
  %2852 = vmatprep.subr.bf16.mxu0 %v1799
  %2853 = vmatpush1.bf16.msra.mxu0 %v1798
  %2854 = vmatprep.subr.bf16.mxu0 %v1805
  %2855 = vmatpush1.bf16.msra.mxu0 %v1804
  %2856 = vmatprep.subr.bf16.mxu0 %v1811
  %2857 = vmatpush1.bf16.msra.mxu0 %v1810
  %2858 = vmatprep.subr.bf16.mxu0 %v1817
  %2859 = vmatpush1.bf16.msra.mxu0 %v1816
  %2860 = vmatprep.subr.bf16.mxu0 %v1823
  %2861 = vmatpush1.bf16.msra.mxu0 %v1822
  %2862 = vmatprep.subr.bf16.mxu0 %v1829
  %2863 = vmatpush1.bf16.msra.mxu0 %v1828
  %2864 = vmatprep.subr.bf16.mxu0 %v1835
  %2865 = vmatpush1.bf16.msra.mxu0 %v1834
  %2866 = vmatprep.subr.bf16.mxu0 %v1841
  %2867 = vmatpush1.bf16.msra.mxu0 %v1840
  %2868 = vmatprep.subr.bf16.mxu0 %v1847
  %2869 = vmatpush1.bf16.msra.mxu0 %v1846
  %2870 = vmatprep.subr.bf16.mxu0 %v1853
  %2871 = vmatpush1.bf16.msra.mxu0 %v1852
  %2872 = vmatprep.subr.bf16.mxu0 %v1859
  %2873 = vmatpush1.bf16.msra.mxu0 %v1858
  %2874 = vmatprep.subr.bf16.mxu0 %v1865
  %2875 = vmatpush1.bf16.msra.mxu0 %v1864
  %2876 = vmatprep.subr.bf16.mxu0 %v1871
  %2877 = vmatpush1.bf16.msra.mxu0 %v1870
  %2878 = vmatprep.subr.bf16.mxu0 %v1877
  %2879 = vmatpush1.bf16.msra.mxu0 %v1876
  %2880 = vmatprep.subr.bf16.mxu0 %v1883
  %2881 = vmatpush1.bf16.msra.mxu0 %v1882
  %2882 = vmatprep.mubr.bf16.mxu0 %v575
  %2883 = vmatmul.mubr.bf16.gmra.mrb[0].mxu0 %v574
  %v2884 = vpop.f32.mrb[0].mxu0
  %v2885 = vadd.f32 %v459, %v2884
  %v2886 = vpop.f32.mrb[0].mxu0
  %v2887 = vadd.f32 %v463, %v2886
  %v2888 = vpop.f32.mrb[0].mxu0
  %v2889 = vadd.f32 %v459, %v2888
  %v2890 = vpop.f32.mrb[0].mxu0
  %v2891 = vadd.f32 %v463, %v2890
  %2892 = vmatprep.mubr.bf16.mxu0 %v583
  %2893 = vmatmul.mubr.bf16.gmra.mrb[0].mxu0 %v582
  %v2894 = vpop.f32.mrb[0].mxu0
  %v2895 = vadd.f32 %v459, %v2894
  %v2896 = vpop.f32.mrb[0].mxu0
  %v2897 = vadd.f32 %v463, %v2896
  %v2898 = vpop.f32.mrb[0].mxu0
  %v2899 = vadd.f32 %v459, %v2898
  %v2900 = vpop.f32.mrb[0].mxu0
  %v2901 = vadd.f32 %v463, %v2900
  %2902 = vmatprep.mubr.bf16.mxu0 %v591
  %2903 = vmatmul.mubr.bf16.gmra.mrb[0].mxu0 %v590
  %v2904 = vpop.f32.mrb[0].mxu0
  %v2905 = vadd.f32 %v459, %v2904
  %v2906 = vpop.f32.mrb[0].mxu0
  %v2907 = vadd.f32 %v463, %v2906
  %v2908 = vpop.f32.mrb[0].mxu0
  %v2909 = vadd.f32 %v459, %v2908
  %v2910 = vpop.f32.mrb[0].mxu0
  %v2911 = vadd.f32 %v463, %v2910
  %2912 = vmatprep.mubr.bf16.mxu0 %v599
  %2913 = vmatmul.mubr.bf16.gmra.mrb[0].mxu0 %v598
  %v2914 = vpop.f32.mrb[0].mxu0
  %v2915 = vadd.f32 %v459, %v2914
  %v2916 = vpop.f32.mrb[0].mxu0
  %v2917 = vadd.f32 %v463, %v2916
  %v2918 = vpop.f32.mrb[0].mxu0
  %v2919 = vadd.f32 %v459, %v2918
  %v2920 = vpop.f32.mrb[0].mxu0
  %v2921 = vadd.f32 %v463, %v2920
  %2922 = vdwg.mxu0
  %2923 = vmatprep.subr.bf16.mxu0 %v1889
  %2924 = vmatpush1.bf16.msra.mxu0 %v1888
  %2925 = vmatprep.subr.bf16.mxu0 %v1895
  %2926 = vmatpush1.bf16.msra.mxu0 %v1894
  %2927 = vmatprep.subr.bf16.mxu0 %v1901
  %2928 = vmatpush1.bf16.msra.mxu0 %v1900
  %2929 = vmatprep.subr.bf16.mxu0 %v1907
  %2930 = vmatpush1.bf16.msra.mxu0 %v1906
  %2931 = vmatprep.subr.bf16.mxu0 %v1913
  %2932 = vmatpush1.bf16.msra.mxu0 %v1912
  %2933 = vmatprep.subr.bf16.mxu0 %v1919
  %2934 = vmatpush1.bf16.msra.mxu0 %v1918
  %2935 = vmatprep.subr.bf16.mxu0 %v1925
  %2936 = vmatpush1.bf16.msra.mxu0 %v1924
  %2937 = vmatprep.subr.bf16.mxu0 %v1931
  %2938 = vmatpush1.bf16.msra.mxu0 %v1930
  %2939 = vmatprep.subr.bf16.mxu0 %v1937
  %2940 = vmatpush1.bf16.msra.mxu0 %v1936
  %2941 = vmatprep.subr.bf16.mxu0 %v1943
  %2942 = vmatpush1.bf16.msra.mxu0 %v1942
  %2943 = vmatprep.subr.bf16.mxu0 %v1949
  %2944 = vmatpush1.bf16.msra.mxu0 %v1948
  %2945 = vmatprep.subr.bf16.mxu0 %v1955
  %2946 = vmatpush1.bf16.msra.mxu0 %v1954
  %2947 = vmatprep.subr.bf16.mxu0 %v1961
  %2948 = vmatpush1.bf16.msra.mxu0 %v1960
  %2949 = vmatprep.subr.bf16.mxu0 %v1967
  %2950 = vmatpush1.bf16.msra.mxu0 %v1966
  %2951 = vmatprep.subr.bf16.mxu0 %v1973
  %2952 = vmatpush1.bf16.msra.mxu0 %v1972
  %2953 = vmatprep.subr.bf16.mxu0 %v1979
  %2954 = vmatpush1.bf16.msra.mxu0 %v1978
  %2955 = vmatprep.mubr.bf16.mxu0 %v577
  %2956 = vmatmul.mubr.bf16.gmra.mrb[0].mxu0 %v576
  %v2957 = vpop.f32.mrb[0].mxu0
  %v2958 = vadd.f32 %v2885, %v2957
  %v2959 = vpop.f32.mrb[0].mxu0
  %v2960 = vadd.f32 %v2887, %v2959
  %v2961 = vpop.f32.mrb[0].mxu0
  %v2962 = vadd.f32 %v2889, %v2961
  %v2963 = vpop.f32.mrb[0].mxu0
  %v2964 = vadd.f32 %v2891, %v2963
  %2965 = vmatprep.mubr.bf16.mxu0 %v585
  %2966 = vmatmul.mubr.bf16.gmra.mrb[0].mxu0 %v584
  %v2967 = vpop.f32.mrb[0].mxu0
  %v2968 = vadd.f32 %v2895, %v2967
  %v2969 = vpop.f32.mrb[0].mxu0
  %v2970 = vadd.f32 %v2897, %v2969
  %v2971 = vpop.f32.mrb[0].mxu0
  %v2972 = vadd.f32 %v2899, %v2971
  %v2973 = vpop.f32.mrb[0].mxu0
  %v2974 = vadd.f32 %v2901, %v2973
  %2975 = vmatprep.mubr.bf16.mxu0 %v593
  %2976 = vmatmul.mubr.bf16.gmra.mrb[0].mxu0 %v592
  %v2977 = vpop.f32.mrb[0].mxu0
  %v2978 = vadd.f32 %v2905, %v2977
  %v2979 = vpop.f32.mrb[0].mxu0
  %v2980 = vadd.f32 %v2907, %v2979
  %v2981 = vpop.f32.mrb[0].mxu0
  %v2982 = vadd.f32 %v2909, %v2981
  %v2983 = vpop.f32.mrb[0].mxu0
  %v2984 = vadd.f32 %v2911, %v2983
  %2985 = vmatprep.mubr.bf16.mxu0 %v601
  %2986 = vmatmul.mubr.bf16.gmra.mrb[0].mxu0 %v600
  %v2987 = vpop.f32.mrb[0].mxu0
  %v2988 = vadd.f32 %v2915, %v2987
  %v2989 = vpop.f32.mrb[0].mxu0
  %v2990 = vadd.f32 %v2917, %v2989
  %v2991 = vpop.f32.mrb[0].mxu0
  %v2992 = vadd.f32 %v2919, %v2991
  %v2993 = vpop.f32.mrb[0].mxu0
  %v2994 = vadd.f32 %v2921, %v2993
  %2995 = vdwg.mxu0
  %2996 = vmatprep.subr.bf16.mxu0 %v1985
  %2997 = vmatpush1.bf16.msra.mxu0 %v1984
  %2998 = vmatprep.subr.bf16.mxu0 %v1991
  %2999 = vmatpush1.bf16.msra.mxu0 %v1990
  %3000 = vmatprep.subr.bf16.mxu0 %v1997
  %3001 = vmatpush1.bf16.msra.mxu0 %v1996
  %3002 = vmatprep.subr.bf16.mxu0 %v2003
  %3003 = vmatpush1.bf16.msra.mxu0 %v2002
  %3004 = vmatprep.subr.bf16.mxu0 %v2009
  %3005 = vmatpush1.bf16.msra.mxu0 %v2008
  %3006 = vmatprep.subr.bf16.mxu0 %v2015
  %3007 = vmatpush1.bf16.msra.mxu0 %v2014
  %3008 = vmatprep.subr.bf16.mxu0 %v2021
  %3009 = vmatpush1.bf16.msra.mxu0 %v2020
  %3010 = vmatprep.subr.bf16.mxu0 %v2027
  %3011 = vmatpush1.bf16.msra.mxu0 %v2026
  %3012 = vmatprep.subr.bf16.mxu0 %v2033
  %3013 = vmatpush1.bf16.msra.mxu0 %v2032
  %3014 = vmatprep.subr.bf16.mxu0 %v2039
  %3015 = vmatpush1.bf16.msra.mxu0 %v2038
  %3016 = vmatprep.subr.bf16.mxu0 %v2045
  %3017 = vmatpush1.bf16.msra.mxu0 %v2044
  %3018 = vmatprep.subr.bf16.mxu0 %v2051
  %3019 = vmatpush1.bf16.msra.mxu0 %v2050
  %3020 = vmatprep.subr.bf16.mxu0 %v2057
  %3021 = vmatpush1.bf16.msra.mxu0 %v2056
  %3022 = vmatprep.subr.bf16.mxu0 %v2063
  %3023 = vmatpush1.bf16.msra.mxu0 %v2062
  %3024 = vmatprep.subr.bf16.mxu0 %v2069
  %3025 = vmatpush1.bf16.msra.mxu0 %v2068
  %3026 = vmatprep.subr.bf16.mxu0 %v2075
  %3027 = vmatpush1.bf16.msra.mxu0 %v2074
  %3028 = vmatprep.mubr.bf16.mxu0 %v579
  %3029 = vmatmul.mubr.bf16.gmra.mrb[0].mxu0 %v578
  %v3030 = vpop.f32.mrb[0].mxu0
  %v3031 = vadd.f32 %v2958, %v3030
  %v3032 = vpop.f32.mrb[0].mxu0
  %v3033 = vadd.f32 %v2960, %v3032
  %v3034 = vpop.f32.mrb[0].mxu0
  %v3035 = vadd.f32 %v2962, %v3034
  %v3036 = vpop.f32.mrb[0].mxu0
  %v3037 = vadd.f32 %v2964, %v3036
  %3038 = vmatprep.mubr.bf16.mxu0 %v587
  %3039 = vmatmul.mubr.bf16.gmra.mrb[0].mxu0 %v586
  %v3040 = vpop.f32.mrb[0].mxu0
  %v3041 = vadd.f32 %v2968, %v3040
  %v3042 = vpop.f32.mrb[0].mxu0
  %v3043 = vadd.f32 %v2970, %v3042
  %v3044 = vpop.f32.mrb[0].mxu0
  %v3045 = vadd.f32 %v2972, %v3044
  %v3046 = vpop.f32.mrb[0].mxu0
  %v3047 = vadd.f32 %v2974, %v3046
  %3048 = vmatprep.mubr.bf16.mxu0 %v595
  %3049 = vmatmul.mubr.bf16.gmra.mrb[0].mxu0 %v594
  %v3050 = vpop.f32.mrb[0].mxu0
  %v3051 = vadd.f32 %v2978, %v3050
  %v3052 = vpop.f32.mrb[0].mxu0
  %v3053 = vadd.f32 %v2980, %v3052
  %v3054 = vpop.f32.mrb[0].mxu0
  %v3055 = vadd.f32 %v2982, %v3054
  %v3056 = vpop.f32.mrb[0].mxu0
  %v3057 = vadd.f32 %v2984, %v3056
  %3058 = vmatprep.mubr.bf16.mxu0 %v603
  %3059 = vmatmul.mubr.bf16.gmra.mrb[0].mxu0 %v602
  %v3060 = vpop.f32.mrb[0].mxu0
  %v3061 = vadd.f32 %v2988, %v3060
  %v3062 = vpop.f32.mrb[0].mxu0
  %v3063 = vadd.f32 %v2990, %v3062
  %v3064 = vpop.f32.mrb[0].mxu0
  %v3065 = vadd.f32 %v2992, %v3064
  %v3066 = vpop.f32.mrb[0].mxu0
  %v3067 = vadd.f32 %v2994, %v3066
  %3068 = vdwg.mxu0
  %3069 = vmatprep.subr.bf16.mxu0 %v2081
  %3070 = vmatpush1.bf16.msra.mxu0 %v2080
  %3071 = vmatprep.subr.bf16.mxu0 %v2087
  %3072 = vmatpush1.bf16.msra.mxu0 %v2086
  %3073 = vmatprep.subr.bf16.mxu0 %v2093
  %3074 = vmatpush1.bf16.msra.mxu0 %v2092
  %3075 = vmatprep.subr.bf16.mxu0 %v2099
  %3076 = vmatpush1.bf16.msra.mxu0 %v2098
  %3077 = vmatprep.subr.bf16.mxu0 %v2105
  %3078 = vmatpush1.bf16.msra.mxu0 %v2104
  %3079 = vmatprep.subr.bf16.mxu0 %v2111
  %3080 = vmatpush1.bf16.msra.mxu0 %v2110
  %3081 = vmatprep.subr.bf16.mxu0 %v2117
  %3082 = vmatpush1.bf16.msra.mxu0 %v2116
  %3083 = vmatprep.subr.bf16.mxu0 %v2123
  %3084 = vmatpush1.bf16.msra.mxu0 %v2122
  %3085 = vmatprep.subr.bf16.mxu0 %v2129
  %3086 = vmatpush1.bf16.msra.mxu0 %v2128
  %3087 = vmatprep.subr.bf16.mxu0 %v2135
  %3088 = vmatpush1.bf16.msra.mxu0 %v2134
  %3089 = vmatprep.subr.bf16.mxu0 %v2141
  %3090 = vmatpush1.bf16.msra.mxu0 %v2140
  %3091 = vmatprep.subr.bf16.mxu0 %v2147
  %3092 = vmatpush1.bf16.msra.mxu0 %v2146
  %3093 = vmatprep.subr.bf16.mxu0 %v2153
  %3094 = vmatpush1.bf16.msra.mxu0 %v2152
  %3095 = vmatprep.subr.bf16.mxu0 %v2159
  %3096 = vmatpush1.bf16.msra.mxu0 %v2158
  %3097 = vmatprep.subr.bf16.mxu0 %v2165
  %3098 = vmatpush1.bf16.msra.mxu0 %v2164
  %3099 = vmatprep.subr.bf16.mxu0 %v2171
  %3100 = vmatpush1.bf16.msra.mxu0 %v2170
  %3101 = vmatprep.mubr.bf16.mxu0 %v581
  %3102 = vmatmul.mubr.bf16.gmra.mrb[0].mxu0 %v580
  %v3103 = vpop.f32.mrb[0].mxu0
  %v3104 = vadd.f32 %v3031, %v3103
  %v3105 = vpop.f32.mrb[0].mxu0
  %v3106 = vadd.f32 %v3033, %v3105
  %v3107 = vpop.f32.mrb[0].mxu0
  %v3108 = vadd.f32 %v3035, %v3107
  %v3109 = vpop.f32.mrb[0].mxu0
  %v3110 = vadd.f32 %v3037, %v3109
  %3111 = vmatprep.mubr.bf16.mxu0 %v589
  %3112 = vmatmul.mubr.bf16.gmra.mrb[0].mxu0 %v588
  %v3113 = vpop.f32.mrb[0].mxu0
  %v3114 = vadd.f32 %v3041, %v3113
  %v3115 = vpop.f32.mrb[0].mxu0
  %v3116 = vadd.f32 %v3043, %v3115
  %v3117 = vpop.f32.mrb[0].mxu0
  %v3118 = vadd.f32 %v3045, %v3117
  %v3119 = vpop.f32.mrb[0].mxu0
  %v3120 = vadd.f32 %v3047, %v3119
  %3121 = vmatprep.mubr.bf16.mxu0 %v597
  %3122 = vmatmul.mubr.bf16.gmra.mrb[0].mxu0 %v596
  %v3123 = vpop.f32.mrb[0].mxu0
  %v3124 = vadd.f32 %v3051, %v3123
  %v3125 = vpop.f32.mrb[0].mxu0
  %v3126 = vadd.f32 %v3053, %v3125
  %v3127 = vpop.f32.mrb[0].mxu0
  %v3128 = vadd.f32 %v3055, %v3127
  %v3129 = vpop.f32.mrb[0].mxu0
  %v3130 = vadd.f32 %v3057, %v3129
  %3131 = vmatprep.mubr.bf16.mxu0 %v605
  %3132 = vmatmul.mubr.bf16.gmra.mrb[0].mxu0 %v604
  %v3133 = vpop.f32.mrb[0].mxu0
  %v3134 = vadd.f32 %v3061, %v3133
  %v3135 = vpop.f32.mrb[0].mxu0
  %v3136 = vadd.f32 %v3063, %v3135
  %v3137 = vpop.f32.mrb[0].mxu0
  %v3138 = vadd.f32 %v3065, %v3137
  %v3139 = vpop.f32.mrb[0].mxu0
  %v3140 = vadd.f32 %v3067, %v3139
  %3141 = vdwg.mxu0
  %3142 = vmatprep.subr.bf16.mxu0 %v1795
  %3143 = vmatpush1.bf16.msra.mxu0 %v1794
  %3144 = vmatprep.subr.bf16.mxu0 %v1801
  %3145 = vmatpush1.bf16.msra.mxu0 %v1800
  %3146 = vmatprep.subr.bf16.mxu0 %v1807
  %3147 = vmatpush1.bf16.msra.mxu0 %v1806
  %3148 = vmatprep.subr.bf16.mxu0 %v1813
  %3149 = vmatpush1.bf16.msra.mxu0 %v1812
  %3150 = vmatprep.subr.bf16.mxu0 %v1819
  %3151 = vmatpush1.bf16.msra.mxu0 %v1818
  %3152 = vmatprep.subr.bf16.mxu0 %v1825
  %3153 = vmatpush1.bf16.msra.mxu0 %v1824
  %3154 = vmatprep.subr.bf16.mxu0 %v1831
  %3155 = vmatpush1.bf16.msra.mxu0 %v1830
  %3156 = vmatprep.subr.bf16.mxu0 %v1837
  %3157 = vmatpush1.bf16.msra.mxu0 %v1836
  %3158 = vmatprep.subr.bf16.mxu0 %v1843
  %3159 = vmatpush1.bf16.msra.mxu0 %v1842
  %3160 = vmatprep.subr.bf16.mxu0 %v1849
  %3161 = vmatpush1.bf16.msra.mxu0 %v1848
  %3162 = vmatprep.subr.bf16.mxu0 %v1855
  %3163 = vmatpush1.bf16.msra.mxu0 %v1854
  %3164 = vmatprep.subr.bf16.mxu0 %v1861
  %3165 = vmatpush1.bf16.msra.mxu0 %v1860
  %3166 = vmatprep.subr.bf16.mxu0 %v1867
  %3167 = vmatpush1.bf16.msra.mxu0 %v1866
  %3168 = vmatprep.subr.bf16.mxu0 %v1873
  %3169 = vmatpush1.bf16.msra.mxu0 %v1872
  %3170 = vmatprep.subr.bf16.mxu0 %v1879
  %3171 = vmatpush1.bf16.msra.mxu0 %v1878
  %3172 = vmatprep.subr.bf16.mxu0 %v1885
  %3173 = vmatpush1.bf16.msra.mxu0 %v1884
  %3174 = vmatprep.mubr.bf16.mxu0 %v575
  %3175 = vmatmul.mubr.bf16.gmra.mrb[0].mxu0 %v574
  %v3176 = vpop.f32.mrb[0].mxu0
  %v3177 = vadd.f32 %v467, %v3176
  %v3178 = vpop.f32.mrb[0].mxu0
  %v3179 = vadd.f32 %v471, %v3178
  %v3180 = vpop.f32.mrb[0].mxu0
  %v3181 = vadd.f32 %v467, %v3180
  %v3182 = vpop.f32.mrb[0].mxu0
  %v3183 = vadd.f32 %v471, %v3182
  %3184 = vmatprep.mubr.bf16.mxu0 %v583
  %3185 = vmatmul.mubr.bf16.gmra.mrb[0].mxu0 %v582
  %v3186 = vpop.f32.mrb[0].mxu0
  %v3187 = vadd.f32 %v467, %v3186
  %v3188 = vpop.f32.mrb[0].mxu0
  %v3189 = vadd.f32 %v471, %v3188
  %v3190 = vpop.f32.mrb[0].mxu0
  %v3191 = vadd.f32 %v467, %v3190
  %v3192 = vpop.f32.mrb[0].mxu0
  %v3193 = vadd.f32 %v471, %v3192
  %3194 = vmatprep.mubr.bf16.mxu0 %v591
  %3195 = vmatmul.mubr.bf16.gmra.mrb[0].mxu0 %v590
  %v3196 = vpop.f32.mrb[0].mxu0
  %v3197 = vadd.f32 %v467, %v3196
  %v3198 = vpop.f32.mrb[0].mxu0
  %v3199 = vadd.f32 %v471, %v3198
  %v3200 = vpop.f32.mrb[0].mxu0
  %v3201 = vadd.f32 %v467, %v3200
  %v3202 = vpop.f32.mrb[0].mxu0
  %v3203 = vadd.f32 %v471, %v3202
  %3204 = vmatprep.mubr.bf16.mxu0 %v599
  %3205 = vmatmul.mubr.bf16.gmra.mrb[0].mxu0 %v598
  %v3206 = vpop.f32.mrb[0].mxu0
  %v3207 = vadd.f32 %v467, %v3206
  %v3208 = vpop.f32.mrb[0].mxu0
  %v3209 = vadd.f32 %v471, %v3208
  %v3210 = vpop.f32.mrb[0].mxu0
  %v3211 = vadd.f32 %v467, %v3210
  %v3212 = vpop.f32.mrb[0].mxu0
  %v3213 = vadd.f32 %v471, %v3212
  %3214 = vdwg.mxu0
  %3215 = vmatprep.subr.bf16.mxu0 %v1891
  %3216 = vmatpush1.bf16.msra.mxu0 %v1890
  %3217 = vmatprep.subr.bf16.mxu0 %v1897
  %3218 = vmatpush1.bf16.msra.mxu0 %v1896
  %3219 = vmatprep.subr.bf16.mxu0 %v1903
  %3220 = vmatpush1.bf16.msra.mxu0 %v1902
  %3221 = vmatprep.subr.bf16.mxu0 %v1909
  %3222 = vmatpush1.bf16.msra.mxu0 %v1908
  %3223 = vmatprep.subr.bf16.mxu0 %v1915
  %3224 = vmatpush1.bf16.msra.mxu0 %v1914
  %3225 = vmatprep.subr.bf16.mxu0 %v1921
  %3226 = vmatpush1.bf16.msra.mxu0 %v1920
  %3227 = vmatprep.subr.bf16.mxu0 %v1927
  %3228 = vmatpush1.bf16.msra.mxu0 %v1926
  %3229 = vmatprep.subr.bf16.mxu0 %v1933
  %3230 = vmatpush1.bf16.msra.mxu0 %v1932
  %3231 = vmatprep.subr.bf16.mxu0 %v1939
  %3232 = vmatpush1.bf16.msra.mxu0 %v1938
  %3233 = vmatprep.subr.bf16.mxu0 %v1945
  %3234 = vmatpush1.bf16.msra.mxu0 %v1944
  %3235 = vmatprep.subr.bf16.mxu0 %v1951
  %3236 = vmatpush1.bf16.msra.mxu0 %v1950
  %3237 = vmatprep.subr.bf16.mxu0 %v1957
  %3238 = vmatpush1.bf16.msra.mxu0 %v1956
  %3239 = vmatprep.subr.bf16.mxu0 %v1963
  %3240 = vmatpush1.bf16.msra.mxu0 %v1962
  %3241 = vmatprep.subr.bf16.mxu0 %v1969
  %3242 = vmatpush1.bf16.msra.mxu0 %v1968
  %3243 = vmatprep.subr.bf16.mxu0 %v1975
  %3244 = vmatpush1.bf16.msra.mxu0 %v1974
  %3245 = vmatprep.subr.bf16.mxu0 %v1981
  %3246 = vmatpush1.bf16.msra.mxu0 %v1980
  %3247 = vmatprep.mubr.bf16.mxu0 %v577
  %3248 = vmatmul.mubr.bf16.gmra.mrb[0].mxu0 %v576
  %v3249 = vpop.f32.mrb[0].mxu0
  %v3250 = vadd.f32 %v3177, %v3249
  %v3251 = vpop.f32.mrb[0].mxu0
  %v3252 = vadd.f32 %v3179, %v3251
  %v3253 = vpop.f32.mrb[0].mxu0
  %v3254 = vadd.f32 %v3181, %v3253
  %v3255 = vpop.f32.mrb[0].mxu0
  %v3256 = vadd.f32 %v3183, %v3255
  %3257 = vmatprep.mubr.bf16.mxu0 %v585
  %3258 = vmatmul.mubr.bf16.gmra.mrb[0].mxu0 %v584
  %v3259 = vpop.f32.mrb[0].mxu0
  %v3260 = vadd.f32 %v3187, %v3259
  %v3261 = vpop.f32.mrb[0].mxu0
  %v3262 = vadd.f32 %v3189, %v3261
  %v3263 = vpop.f32.mrb[0].mxu0
  %v3264 = vadd.f32 %v3191, %v3263
  %v3265 = vpop.f32.mrb[0].mxu0
  %v3266 = vadd.f32 %v3193, %v3265
  %3267 = vmatprep.mubr.bf16.mxu0 %v593
  %3268 = vmatmul.mubr.bf16.gmra.mrb[0].mxu0 %v592
  %v3269 = vpop.f32.mrb[0].mxu0
  %v3270 = vadd.f32 %v3197, %v3269
  %v3271 = vpop.f32.mrb[0].mxu0
  %v3272 = vadd.f32 %v3199, %v3271
  %v3273 = vpop.f32.mrb[0].mxu0
  %v3274 = vadd.f32 %v3201, %v3273
  %v3275 = vpop.f32.mrb[0].mxu0
  %v3276 = vadd.f32 %v3203, %v3275
  %3277 = vmatprep.mubr.bf16.mxu0 %v601
  %3278 = vmatmul.mubr.bf16.gmra.mrb[0].mxu0 %v600
  %v3279 = vpop.f32.mrb[0].mxu0
  %v3280 = vadd.f32 %v3207, %v3279
  %v3281 = vpop.f32.mrb[0].mxu0
  %v3282 = vadd.f32 %v3209, %v3281
  %v3283 = vpop.f32.mrb[0].mxu0
  %v3284 = vadd.f32 %v3211, %v3283
  %v3285 = vpop.f32.mrb[0].mxu0
  %v3286 = vadd.f32 %v3213, %v3285
  %3287 = vdwg.mxu0
  %3288 = vmatprep.subr.bf16.mxu0 %v1987
  %3289 = vmatpush1.bf16.msra.mxu0 %v1986
  %3290 = vmatprep.subr.bf16.mxu0 %v1993
  %3291 = vmatpush1.bf16.msra.mxu0 %v1992
  %3292 = vmatprep.subr.bf16.mxu0 %v1999
  %3293 = vmatpush1.bf16.msra.mxu0 %v1998
  %3294 = vmatprep.subr.bf16.mxu0 %v2005
  %3295 = vmatpush1.bf16.msra.mxu0 %v2004
  %3296 = vmatprep.subr.bf16.mxu0 %v2011
  %3297 = vmatpush1.bf16.msra.mxu0 %v2010
  %3298 = vmatprep.subr.bf16.mxu0 %v2017
  %3299 = vmatpush1.bf16.msra.mxu0 %v2016
  %3300 = vmatprep.subr.bf16.mxu0 %v2023
  %3301 = vmatpush1.bf16.msra.mxu0 %v2022
  %3302 = vmatprep.subr.bf16.mxu0 %v2029
  %3303 = vmatpush1.bf16.msra.mxu0 %v2028
  %3304 = vmatprep.subr.bf16.mxu0 %v2035
  %3305 = vmatpush1.bf16.msra.mxu0 %v2034
  %3306 = vmatprep.subr.bf16.mxu0 %v2041
  %3307 = vmatpush1.bf16.msra.mxu0 %v2040
  %3308 = vmatprep.subr.bf16.mxu0 %v2047
  %3309 = vmatpush1.bf16.msra.mxu0 %v2046
  %3310 = vmatprep.subr.bf16.mxu0 %v2053
  %3311 = vmatpush1.bf16.msra.mxu0 %v2052
  %3312 = vmatprep.subr.bf16.mxu0 %v2059
  %3313 = vmatpush1.bf16.msra.mxu0 %v2058
  %3314 = vmatprep.subr.bf16.mxu0 %v2065
  %3315 = vmatpush1.bf16.msra.mxu0 %v2064
  %3316 = vmatprep.subr.bf16.mxu0 %v2071
  %3317 = vmatpush1.bf16.msra.mxu0 %v2070
  %3318 = vmatprep.subr.bf16.mxu0 %v2077
  %3319 = vmatpush1.bf16.msra.mxu0 %v2076
  %3320 = vmatprep.mubr.bf16.mxu0 %v579
  %3321 = vmatmul.mubr.bf16.gmra.mrb[0].mxu0 %v578
  %v3322 = vpop.f32.mrb[0].mxu0
  %v3323 = vadd.f32 %v3250, %v3322
  %v3324 = vpop.f32.mrb[0].mxu0
  %v3325 = vadd.f32 %v3252, %v3324
  %v3326 = vpop.f32.mrb[0].mxu0
  %v3327 = vadd.f32 %v3254, %v3326
  %v3328 = vpop.f32.mrb[0].mxu0
  %v3329 = vadd.f32 %v3256, %v3328
  %3330 = vmatprep.mubr.bf16.mxu0 %v587
  %3331 = vmatmul.mubr.bf16.gmra.mrb[0].mxu0 %v586
  %v3332 = vpop.f32.mrb[0].mxu0
  %v3333 = vadd.f32 %v3260, %v3332
  %v3334 = vpop.f32.mrb[0].mxu0
  %v3335 = vadd.f32 %v3262, %v3334
  %v3336 = vpop.f32.mrb[0].mxu0
  %v3337 = vadd.f32 %v3264, %v3336
  %v3338 = vpop.f32.mrb[0].mxu0
  %v3339 = vadd.f32 %v3266, %v3338
  %3340 = vmatprep.mubr.bf16.mxu0 %v595
  %3341 = vmatmul.mubr.bf16.gmra.mrb[0].mxu0 %v594
  %v3342 = vpop.f32.mrb[0].mxu0
  %v3343 = vadd.f32 %v3270, %v3342
  %v3344 = vpop.f32.mrb[0].mxu0
  %v3345 = vadd.f32 %v3272, %v3344
  %v3346 = vpop.f32.mrb[0].mxu0
  %v3347 = vadd.f32 %v3274, %v3346
  %v3348 = vpop.f32.mrb[0].mxu0
  %v3349 = vadd.f32 %v3276, %v3348
  %3350 = vmatprep.mubr.bf16.mxu0 %v603
  %3351 = vmatmul.mubr.bf16.gmra.mrb[0].mxu0 %v602
  %v3352 = vpop.f32.mrb[0].mxu0
  %v3353 = vadd.f32 %v3280, %v3352
  %v3354 = vpop.f32.mrb[0].mxu0
  %v3355 = vadd.f32 %v3282, %v3354
  %v3356 = vpop.f32.mrb[0].mxu0
  %v3357 = vadd.f32 %v3284, %v3356
  %v3358 = vpop.f32.mrb[0].mxu0
  %v3359 = vadd.f32 %v3286, %v3358
  %3360 = vdwg.mxu0
  %3361 = vmatprep.subr.bf16.mxu0 %v2083
  %3362 = vmatpush1.bf16.msra.mxu0 %v2082
  %3363 = vmatprep.subr.bf16.mxu0 %v2089
  %3364 = vmatpush1.bf16.msra.mxu0 %v2088
  %3365 = vmatprep.subr.bf16.mxu0 %v2095
  %3366 = vmatpush1.bf16.msra.mxu0 %v2094
  %3367 = vmatprep.subr.bf16.mxu0 %v2101
  %3368 = vmatpush1.bf16.msra.mxu0 %v2100
  %3369 = vmatprep.subr.bf16.mxu0 %v2107
  %3370 = vmatpush1.bf16.msra.mxu0 %v2106
  %3371 = vmatprep.subr.bf16.mxu0 %v2113
  %3372 = vmatpush1.bf16.msra.mxu0 %v2112
  %3373 = vmatprep.subr.bf16.mxu0 %v2119
  %3374 = vmatpush1.bf16.msra.mxu0 %v2118
  %3375 = vmatprep.subr.bf16.mxu0 %v2125
  %3376 = vmatpush1.bf16.msra.mxu0 %v2124
  %3377 = vmatprep.subr.bf16.mxu0 %v2131
  %3378 = vmatpush1.bf16.msra.mxu0 %v2130
  %3379 = vmatprep.subr.bf16.mxu0 %v2137
  %3380 = vmatpush1.bf16.msra.mxu0 %v2136
  %3381 = vmatprep.subr.bf16.mxu0 %v2143
  %3382 = vmatpush1.bf16.msra.mxu0 %v2142
  %3383 = vmatprep.subr.bf16.mxu0 %v2149
  %3384 = vmatpush1.bf16.msra.mxu0 %v2148
  %3385 = vmatprep.subr.bf16.mxu0 %v2155
  %3386 = vmatpush1.bf16.msra.mxu0 %v2154
  %3387 = vmatprep.subr.bf16.mxu0 %v2161
  %3388 = vmatpush1.bf16.msra.mxu0 %v2160
  %3389 = vmatprep.subr.bf16.mxu0 %v2167
  %3390 = vmatpush1.bf16.msra.mxu0 %v2166
  %3391 = vmatprep.subr.bf16.mxu0 %v2173
  %3392 = vmatpush1.bf16.msra.mxu0 %v2172
  %3393 = vmatprep.mubr.bf16.mxu0 %v581
  %3394 = vmatmul.mubr.bf16.gmra.mrb[0].mxu0 %v580
  %v3395 = vpop.f32.mrb[0].mxu0
  %v3396 = vadd.f32 %v3323, %v3395
  %v3397 = vpop.f32.mrb[0].mxu0
  %v3398 = vadd.f32 %v3325, %v3397
  %v3399 = vpop.f32.mrb[0].mxu0
  %v3400 = vadd.f32 %v3327, %v3399
  %v3401 = vpop.f32.mrb[0].mxu0
  %v3402 = vadd.f32 %v3329, %v3401
  %3403 = vmatprep.mubr.bf16.mxu0 %v589
  %3404 = vmatmul.mubr.bf16.gmra.mrb[0].mxu0 %v588
  %v3405 = vpop.f32.mrb[0].mxu0
  %v3406 = vadd.f32 %v3333, %v3405
  %v3407 = vpop.f32.mrb[0].mxu0
  %v3408 = vadd.f32 %v3335, %v3407
  %v3409 = vpop.f32.mrb[0].mxu0
  %v3410 = vadd.f32 %v3337, %v3409
  %v3411 = vpop.f32.mrb[0].mxu0
  %v3412 = vadd.f32 %v3339, %v3411
  %3413 = vmatprep.mubr.bf16.mxu0 %v597
  %3414 = vmatmul.mubr.bf16.gmra.mrb[0].mxu0 %v596
  %v3415 = vpop.f32.mrb[0].mxu0
  %v3416 = vadd.f32 %v3343, %v3415
  %v3417 = vpop.f32.mrb[0].mxu0
  %v3418 = vadd.f32 %v3345, %v3417
  %v3419 = vpop.f32.mrb[0].mxu0
  %v3420 = vadd.f32 %v3347, %v3419
  %v3421 = vpop.f32.mrb[0].mxu0
  %v3422 = vadd.f32 %v3349, %v3421
  %3423 = vmatprep.mubr.bf16.mxu0 %v605
  %3424 = vmatmul.mubr.bf16.gmra.mrb[0].mxu0 %v604
  %v3425 = vpop.f32.mrb[0].mxu0
  %v3426 = vadd.f32 %v3353, %v3425
  %v3427 = vpop.f32.mrb[0].mxu0
  %v3428 = vadd.f32 %v3355, %v3427
  %v3429 = vpop.f32.mrb[0].mxu0
  %v3430 = vadd.f32 %v3357, %v3429
  %v3431 = vpop.f32.mrb[0].mxu0
  %v3432 = vadd.f32 %v3359, %v3431
  %3433 = vdwg.mxu0
  %v3434 = vmax.f32 %v2812, %v2822
  %v3435 = vmax.f32 %v2814, %v2824
  %v3436 = vmax.f32 %v3104, %v3114
  %v3437 = vmax.f32 %v3106, %v3116
  %v3438 = vmax.f32 %v3396, %v3406
  %v3439 = vmax.f32 %v3398, %v3408
  %v3440 = vmax.f32 %v2816, %v2826
  %v3441 = vmax.f32 %v2818, %v2828
  %v3442 = vmax.f32 %v3108, %v3118
  %v3443 = vmax.f32 %v3110, %v3120
  %v3444 = vmax.f32 %v3400, %v3410
  %v3445 = vmax.f32 %v3402, %v3412
  %v3446 = vmax.f32 %v2832, %v2842
  %v3447 = vmax.f32 %v2834, %v2844
  %v3448 = vmax.f32 %v3124, %v3134
  %v3449 = vmax.f32 %v3126, %v3136
  %v3450 = vmax.f32 %v3416, %v3426
  %v3451 = vmax.f32 %v3418, %v3428
  %v3452 = vmax.f32 %v2836, %v2846
  %v3453 = vmax.f32 %v2838, %v2848
  %v3454 = vmax.f32 %v3128, %v3138
  %v3455 = vmax.f32 %v3130, %v3140
  %v3456 = vmax.f32 %v3420, %v3430
  %v3457 = vmax.f32 %v3422, %v3432
  %v3458 = vmax.f32 %v3434, %v3446
  %v3459 = vmax.f32 %v3435, %v3447
  %v3460 = vmax.f32 %v3436, %v3448
  %v3461 = vmax.f32 %v3437, %v3449
  %v3462 = vmax.f32 %v3438, %v3450
  %v3463 = vmax.f32 %v3439, %v3451
  %v3464 = vmax.f32 %v3440, %v3452
  %v3465 = vmax.f32 %v3441, %v3453
  %v3466 = vmax.f32 %v3442, %v3454
  %v3467 = vmax.f32 %v3443, %v3455
  %v3468 = vmax.f32 %v3444, %v3456
  %v3469 = vmax.f32 %v3445, %v3457
  %v3470 = vmax.f32 %v3458, 0.0
  %v3471 = vmax.f32 %v3459, 0.0
  %v3472 = vmax.f32 %v3460, 0.0
  %v3473 = vmax.f32 %v3461, 0.0
  %v3474 = vmax.f32 %v3462, 0.0
  %v3475 = vmax.f32 %v3463, 0.0
  %v3476 = vmax.f32 %v3464, 0.0
  %v3477 = vmax.f32 %v3465, 0.0
  %v3478 = vmax.f32 %v3466, 0.0
  %v3479 = vmax.f32 %v3467, 0.0
  %v3480 = vmax.f32 %v3468, 0.0
  %v3481 = vmax.f32 %v3469, 0.0
  %v3482 = vpack.c.bf16 %v3476, %v3470
  %v3483 = vpack.c.bf16 %v3477, %v3471
  %v3484 = vpack.c.bf16 %v3478, %v3472
  %v3485 = vpack.c.bf16 %v3479, %v3473
  %v3486 = vpack.c.bf16 %v3480, %v3474
  %v3487 = vpack.c.bf16 %v3481, %v3475
  %v3488 = vld [vmem:[%s4] sm:$0xff]
  %v3489 = vld [vmem:[%s4 + $0x8] sm:$0xff]
  %v3490 = vld [vmem:[%s4 + $0x10] sm:$0xff]
  %v3491 = vld [vmem:[%s4 + $0x18] sm:$0xff]
  %v3492 = vld [vmem:[%s4 + $0x20] sm:$0xff]
  %v3493 = vld [vmem:[%s4 + $0x28] sm:$0xff]
  %v3494 = vld [vmem:[%s4 + $0x30] sm:$0xff]
  %v3495 = vld [vmem:[%s4 + $0x38] sm:$0xff]
  %v3496 = vld [vmem:[%s4 + $0x40] sm:$0xff]
  %v3497 = vld [vmem:[%s4 + $0x48] sm:$0xff]
  %v3498 = vld [vmem:[%s4 + $0x50] sm:$0xff]
  %v3499 = vld [vmem:[%s4 + $0x58] sm:$0xff]
  %v3500 = vld [vmem:[%s4 + $0x60] sm:$0xff]
  %v3501 = vld [vmem:[%s4 + $0x68] sm:$0xff]
  %v3502 = vld [vmem:[%s4 + $0x70] sm:$0xff]
  %v3503 = vld [vmem:[%s4 + $0x78] sm:$0xff]
  %v3504 = vld [vmem:[%s4 + $0x80] sm:$0xff]
  %v3505 = vld [vmem:[%s4 + $0x88] sm:$0xff]
  %v3506 = vld [vmem:[%s4 + $0x90] sm:$0xff]
  %v3507 = vld [vmem:[%s4 + $0x98] sm:$0xff]
  %v3508 = vld [vmem:[%s4 + $0xa0] sm:$0xff]
  %v3509 = vld [vmem:[%s4 + $0xa8] sm:$0xff]
  %v3510 = vld [vmem:[%s4 + $0xb0] sm:$0xff]
  %v3511 = vld [vmem:[%s4 + $0xb8] sm:$0xff]
  %v3512 = vld [vmem:[%s4 + $0xc0] sm:$0xff]
  %v3513 = vld [vmem:[%s4 + $0xc8] sm:$0xff]
  %v3514 = vld [vmem:[%s4 + $0xd0] sm:$0xff]
  %v3515 = vld [vmem:[%s4 + $0xd8] sm:$0xff]
  %v3516 = vld [vmem:[%s4 + $0xe0] sm:$0xff]
  %v3517 = vld [vmem:[%s4 + $0xe8] sm:$0xff]
  %v3518 = vld [vmem:[%s4 + $0xf0] sm:$0xff]
  %v3519 = vld [vmem:[%s4 + $0xf8] sm:$0xff]
  %v3520 = vld [vmem:[%s4 + $0x100] sm:$0xff]
  %v3521 = vld [vmem:[%s4 + $0x108] sm:$0xff]
  %v3522 = vld [vmem:[%s4 + $0x110] sm:$0xff]
  %v3523 = vld [vmem:[%s4 + $0x118] sm:$0xff]
  %v3524 = vld [vmem:[%s4 + $0x120] sm:$0xff]
  %v3525 = vld [vmem:[%s4 + $0x128] sm:$0xff]
  %v3526 = vld [vmem:[%s4 + $0x130] sm:$0xff]
  %v3527 = vld [vmem:[%s4 + $0x138] sm:$0xff]
  %v3528 = vld [vmem:[%s4 + $0x140] sm:$0xff]
  %v3529 = vld [vmem:[%s4 + $0x148] sm:$0xff]
  %v3530 = vld [vmem:[%s4 + $0x150] sm:$0xff]
  %v3531 = vld [vmem:[%s4 + $0x158] sm:$0xff]
  %v3532 = vld [vmem:[%s4 + $0x160] sm:$0xff]
  %v3533 = vld [vmem:[%s4 + $0x168] sm:$0xff]
  %v3534 = vld [vmem:[%s4 + $0x170] sm:$0xff]
  %v3535 = vld [vmem:[%s4 + $0x178] sm:$0xff]
  %v3536 = vld [vmem:[%s4 + $0x180] sm:$0xff]
  %v3537 = vld [vmem:[%s4 + $0x188] sm:$0xff]
  %v3538 = vld [vmem:[%s4 + $0x190] sm:$0xff]
  %v3539 = vld [vmem:[%s4 + $0x198] sm:$0xff]
  %v3540 = vld [vmem:[%s4 + $0x1a0] sm:$0xff]
  %v3541 = vld [vmem:[%s4 + $0x1a8] sm:$0xff]
  %v3542 = vld [vmem:[%s4 + $0x1b0] sm:$0xff]
  %v3543 = vld [vmem:[%s4 + $0x1b8] sm:$0xff]
  %v3544 = vld [vmem:[%s4 + $0x1c0] sm:$0xff]
  %v3545 = vld [vmem:[%s4 + $0x1c8] sm:$0xff]
  %v3546 = vld [vmem:[%s4 + $0x1d0] sm:$0xff]
  %v3547 = vld [vmem:[%s4 + $0x1d8] sm:$0xff]
  %v3548 = vld [vmem:[%s4 + $0x1e0] sm:$0xff]
  %v3549 = vld [vmem:[%s4 + $0x1e8] sm:$0xff]
  %v3550 = vld [vmem:[%s4 + $0x1f0] sm:$0xff]
  %v3551 = vld [vmem:[%s4 + $0x1f8] sm:$0xff]
  %v3552 = vld [vmem:[%s4 + $0x200] sm:$0xff]
  %v3553 = vld [vmem:[%s4 + $0x208] sm:$0xff]
  %v3554 = vld [vmem:[%s4 + $0x210] sm:$0xff]
  %v3555 = vld [vmem:[%s4 + $0x218] sm:$0xff]
  %v3556 = vld [vmem:[%s4 + $0x220] sm:$0xff]
  %v3557 = vld [vmem:[%s4 + $0x228] sm:$0xff]
  %v3558 = vld [vmem:[%s4 + $0x230] sm:$0xff]
  %v3559 = vld [vmem:[%s4 + $0x238] sm:$0xff]
  %v3560 = vld [vmem:[%s4 + $0x240] sm:$0xff]
  %v3561 = vld [vmem:[%s4 + $0x248] sm:$0xff]
  %v3562 = vld [vmem:[%s4 + $0x250] sm:$0xff]
  %v3563 = vld [vmem:[%s4 + $0x258] sm:$0xff]
  %v3564 = vld [vmem:[%s4 + $0x260] sm:$0xff]
  %v3565 = vld [vmem:[%s4 + $0x268] sm:$0xff]
  %v3566 = vld [vmem:[%s4 + $0x270] sm:$0xff]
  %v3567 = vld [vmem:[%s4 + $0x278] sm:$0xff]
  %v3568 = vld [vmem:[%s4 + $0x280] sm:$0xff]
  %v3569 = vld [vmem:[%s4 + $0x288] sm:$0xff]
  %v3570 = vld [vmem:[%s4 + $0x290] sm:$0xff]
  %v3571 = vld [vmem:[%s4 + $0x298] sm:$0xff]
  %v3572 = vld [vmem:[%s4 + $0x2a0] sm:$0xff]
  %v3573 = vld [vmem:[%s4 + $0x2a8] sm:$0xff]
  %v3574 = vld [vmem:[%s4 + $0x2b0] sm:$0xff]
  %v3575 = vld [vmem:[%s4 + $0x2b8] sm:$0xff]
  %v3576 = vld [vmem:[%s4 + $0x2c0] sm:$0xff]
  %v3577 = vld [vmem:[%s4 + $0x2c8] sm:$0xff]
  %v3578 = vld [vmem:[%s4 + $0x2d0] sm:$0xff]
  %v3579 = vld [vmem:[%s4 + $0x2d8] sm:$0xff]
  %v3580 = vld [vmem:[%s4 + $0x2e0] sm:$0xff]
  %v3581 = vld [vmem:[%s4 + $0x2e8] sm:$0xff]
  %v3582 = vld [vmem:[%s4 + $0x2f0] sm:$0xff]
  %v3583 = vld [vmem:[%s4 + $0x2f8] sm:$0xff]
  %v3584 = vld [vmem:[%s4 + $0x300] sm:$0xff]
  %v3585 = vld [vmem:[%s4 + $0x308] sm:$0xff]
  %v3586 = vld [vmem:[%s4 + $0x310] sm:$0xff]
  %v3587 = vld [vmem:[%s4 + $0x318] sm:$0xff]
  %v3588 = vld [vmem:[%s4 + $0x320] sm:$0xff]
  %v3589 = vld [vmem:[%s4 + $0x328] sm:$0xff]
  %v3590 = vld [vmem:[%s4 + $0x330] sm:$0xff]
  %v3591 = vld [vmem:[%s4 + $0x338] sm:$0xff]
  %v3592 = vld [vmem:[%s4 + $0x340] sm:$0xff]
  %v3593 = vld [vmem:[%s4 + $0x348] sm:$0xff]
  %v3594 = vld [vmem:[%s4 + $0x350] sm:$0xff]
  %v3595 = vld [vmem:[%s4 + $0x358] sm:$0xff]
  %v3596 = vld [vmem:[%s4 + $0x360] sm:$0xff]
  %v3597 = vld [vmem:[%s4 + $0x368] sm:$0xff]
  %v3598 = vld [vmem:[%s4 + $0x370] sm:$0xff]
  %v3599 = vld [vmem:[%s4 + $0x378] sm:$0xff]
  %v3600 = vld [vmem:[%s4 + $0x380] sm:$0xff]
  %v3601 = vld [vmem:[%s4 + $0x388] sm:$0xff]
  %v3602 = vld [vmem:[%s4 + $0x390] sm:$0xff]
  %v3603 = vld [vmem:[%s4 + $0x398] sm:$0xff]
  %v3604 = vld [vmem:[%s4 + $0x3a0] sm:$0xff]
  %v3605 = vld [vmem:[%s4 + $0x3a8] sm:$0xff]
  %v3606 = vld [vmem:[%s4 + $0x3b0] sm:$0xff]
  %v3607 = vld [vmem:[%s4 + $0x3b8] sm:$0xff]
  %v3608 = vld [vmem:[%s4 + $0x3c0] sm:$0xff]
  %v3609 = vld [vmem:[%s4 + $0x3c8] sm:$0xff]
  %v3610 = vld [vmem:[%s4 + $0x3d0] sm:$0xff]
  %v3611 = vld [vmem:[%s4 + $0x3d8] sm:$0xff]
  %v3612 = vld [vmem:[%s4 + $0x3e0] sm:$0xff]
  %v3613 = vld [vmem:[%s4 + $0x3e8] sm:$0xff]
  %v3614 = vld [vmem:[%s4 + $0x3f0] sm:$0xff]
  %v3615 = vld [vmem:[%s4 + $0x3f8] sm:$0xff]
  %v3616 = vld [vmem:[%s4 + $0x400] sm:$0xff]
  %v3617 = vld [vmem:[%s4 + $0x408] sm:$0xff]
  %v3618 = vld [vmem:[%s4 + $0x410] sm:$0xff]
  %v3619 = vld [vmem:[%s4 + $0x418] sm:$0xff]
  %v3620 = vld [vmem:[%s4 + $0x420] sm:$0xff]
  %v3621 = vld [vmem:[%s4 + $0x428] sm:$0xff]
  %v3622 = vld [vmem:[%s4 + $0x430] sm:$0xff]
  %v3623 = vld [vmem:[%s4 + $0x438] sm:$0xff]
  %v3624 = vld [vmem:[%s4 + $0x440] sm:$0xff]
  %v3625 = vld [vmem:[%s4 + $0x448] sm:$0xff]
  %v3626 = vld [vmem:[%s4 + $0x450] sm:$0xff]
  %v3627 = vld [vmem:[%s4 + $0x458] sm:$0xff]
  %v3628 = vld [vmem:[%s4 + $0x460] sm:$0xff]
  %v3629 = vld [vmem:[%s4 + $0x468] sm:$0xff]
  %v3630 = vld [vmem:[%s4 + $0x470] sm:$0xff]
  %v3631 = vld [vmem:[%s4 + $0x478] sm:$0xff]
  %v3632 = vld [vmem:[%s4 + $0x480] sm:$0xff]
  %v3633 = vld [vmem:[%s4 + $0x488] sm:$0xff]
  %v3634 = vld [vmem:[%s4 + $0x490] sm:$0xff]
  %v3635 = vld [vmem:[%s4 + $0x498] sm:$0xff]
  %v3636 = vld [vmem:[%s4 + $0x4a0] sm:$0xff]
  %v3637 = vld [vmem:[%s4 + $0x4a8] sm:$0xff]
  %v3638 = vld [vmem:[%s4 + $0x4b0] sm:$0xff]
  %v3639 = vld [vmem:[%s4 + $0x4b8] sm:$0xff]
  %v3640 = vld [vmem:[%s4 + $0x4c0] sm:$0xff]
  %v3641 = vld [vmem:[%s4 + $0x4c8] sm:$0xff]
  %v3642 = vld [vmem:[%s4 + $0x4d0] sm:$0xff]
  %v3643 = vld [vmem:[%s4 + $0x4d8] sm:$0xff]
  %v3644 = vld [vmem:[%s4 + $0x4e0] sm:$0xff]
  %v3645 = vld [vmem:[%s4 + $0x4e8] sm:$0xff]
  %v3646 = vld [vmem:[%s4 + $0x4f0] sm:$0xff]
  %v3647 = vld [vmem:[%s4 + $0x4f8] sm:$0xff]
  %v3648 = vld [vmem:[%s4 + $0x500] sm:$0xff]
  %v3649 = vld [vmem:[%s4 + $0x508] sm:$0xff]
  %v3650 = vld [vmem:[%s4 + $0x510] sm:$0xff]
  %v3651 = vld [vmem:[%s4 + $0x518] sm:$0xff]
  %v3652 = vld [vmem:[%s4 + $0x520] sm:$0xff]
  %v3653 = vld [vmem:[%s4 + $0x528] sm:$0xff]
  %v3654 = vld [vmem:[%s4 + $0x530] sm:$0xff]
  %v3655 = vld [vmem:[%s4 + $0x538] sm:$0xff]
  %v3656 = vld [vmem:[%s4 + $0x540] sm:$0xff]
  %v3657 = vld [vmem:[%s4 + $0x548] sm:$0xff]
  %v3658 = vld [vmem:[%s4 + $0x550] sm:$0xff]
  %v3659 = vld [vmem:[%s4 + $0x558] sm:$0xff]
  %v3660 = vld [vmem:[%s4 + $0x560] sm:$0xff]
  %v3661 = vld [vmem:[%s4 + $0x568] sm:$0xff]
  %v3662 = vld [vmem:[%s4 + $0x570] sm:$0xff]
  %v3663 = vld [vmem:[%s4 + $0x578] sm:$0xff]
  %v3664 = vld [vmem:[%s4 + $0x580] sm:$0xff]
  %v3665 = vld [vmem:[%s4 + $0x588] sm:$0xff]
  %v3666 = vld [vmem:[%s4 + $0x590] sm:$0xff]
  %v3667 = vld [vmem:[%s4 + $0x598] sm:$0xff]
  %v3668 = vld [vmem:[%s4 + $0x5a0] sm:$0xff]
  %v3669 = vld [vmem:[%s4 + $0x5a8] sm:$0xff]
  %v3670 = vld [vmem:[%s4 + $0x5b0] sm:$0xff]
  %v3671 = vld [vmem:[%s4 + $0x5b8] sm:$0xff]
  %v3672 = vld [vmem:[%s4 + $0x5c0] sm:$0xff]
  %v3673 = vld [vmem:[%s4 + $0x5c8] sm:$0xff]
  %v3674 = vld [vmem:[%s4 + $0x5d0] sm:$0xff]
  %v3675 = vld [vmem:[%s4 + $0x5d8] sm:$0xff]
  %v3676 = vld [vmem:[%s4 + $0x5e0] sm:$0xff]
  %v3677 = vld [vmem:[%s4 + $0x5e8] sm:$0xff]
  %v3678 = vld [vmem:[%s4 + $0x5f0] sm:$0xff]
  %v3679 = vld [vmem:[%s4 + $0x5f8] sm:$0xff]
  %v3680 = vld [vmem:[%s5] sm:$0xf]
  %v3682 = vlaneseq
  %v3683 = vshrl.u32 %v3682, 7
  %v3684 = vsub.s32 0, %v3683
  %v3685 = vrot.slane %v3680, %v3684
  %v3686 = vlaneseq
  %v3687 = vshrl.u32 %v3686, 7
  %v3688 = vsub.s32 1, %v3687
  %v3689 = vrot.slane %v3680, %v3688
  %v3690 = vlaneseq
  %v3691 = vshrl.u32 %v3690, 7
  %v3692 = vsub.s32 2, %v3691
  %v3693 = vrot.slane %v3680, %v3692
  %v3694 = vlaneseq
  %v3695 = vshrl.u32 %v3694, 7
  %v3696 = vsub.s32 3, %v3695
  %v3697 = vrot.slane %v3680, %v3696
  %v3894 = vunpack.c.l.b16 %v3488
  %v3895 = vunpack.c.h.b16 %v3488
  %v3896 = vunpack.c.l.b16 %v3489
  %v3897 = vunpack.c.h.b16 %v3489
  %v3898 = vunpack.c.l.b16 %v3490
  %v3899 = vunpack.c.h.b16 %v3490
  %v3900 = vunpack.c.l.b16 %v3491
  %v3901 = vunpack.c.h.b16 %v3491
  %v3902 = vunpack.c.l.b16 %v3492
  %v3903 = vunpack.c.h.b16 %v3492
  %v3904 = vunpack.c.l.b16 %v3493
  %v3905 = vunpack.c.h.b16 %v3493
  %v3906 = vunpack.c.l.b16 %v3494
  %v3907 = vunpack.c.h.b16 %v3494
  %v3908 = vunpack.c.l.b16 %v3495
  %v3909 = vunpack.c.h.b16 %v3495
  %v3910 = vunpack.c.l.b16 %v3496
  %v3911 = vunpack.c.h.b16 %v3496
  %v3912 = vunpack.c.l.b16 %v3497
  %v3913 = vunpack.c.h.b16 %v3497
  %v3914 = vunpack.c.l.b16 %v3498
  %v3915 = vunpack.c.h.b16 %v3498
  %v3916 = vunpack.c.l.b16 %v3499
  %v3917 = vunpack.c.h.b16 %v3499
  %v3918 = vunpack.c.l.b16 %v3500
  %v3919 = vunpack.c.h.b16 %v3500
  %v3920 = vunpack.c.l.b16 %v3501
  %v3921 = vunpack.c.h.b16 %v3501
  %v3922 = vunpack.c.l.b16 %v3502
  %v3923 = vunpack.c.h.b16 %v3502
  %v3924 = vunpack.c.l.b16 %v3503
  %v3925 = vunpack.c.h.b16 %v3503
  %v3926 = vunpack.c.l.b16 %v3504
  %v3927 = vunpack.c.h.b16 %v3504
  %v3928 = vunpack.c.l.b16 %v3505
  %v3929 = vunpack.c.h.b16 %v3505
  %v3930 = vunpack.c.l.b16 %v3506
  %v3931 = vunpack.c.h.b16 %v3506
  %v3932 = vunpack.c.l.b16 %v3507
  %v3933 = vunpack.c.h.b16 %v3507
  %v3934 = vunpack.c.l.b16 %v3508
  %v3935 = vunpack.c.h.b16 %v3508
  %v3936 = vunpack.c.l.b16 %v3509
  %v3937 = vunpack.c.h.b16 %v3509
  %v3938 = vunpack.c.l.b16 %v3510
  %v3939 = vunpack.c.h.b16 %v3510
  %v3940 = vunpack.c.l.b16 %v3511
  %v3941 = vunpack.c.h.b16 %v3511
  %v3942 = vunpack.c.l.b16 %v3512
  %v3943 = vunpack.c.h.b16 %v3512
  %v3944 = vunpack.c.l.b16 %v3513
  %v3945 = vunpack.c.h.b16 %v3513
  %v3946 = vunpack.c.l.b16 %v3514
  %v3947 = vunpack.c.h.b16 %v3514
  %v3948 = vunpack.c.l.b16 %v3515
  %v3949 = vunpack.c.h.b16 %v3515
  %v3950 = vunpack.c.l.b16 %v3516
  %v3951 = vunpack.c.h.b16 %v3516
  %v3952 = vunpack.c.l.b16 %v3517
  %v3953 = vunpack.c.h.b16 %v3517
  %v3954 = vunpack.c.l.b16 %v3518
  %v3955 = vunpack.c.h.b16 %v3518
  %v3956 = vunpack.c.l.b16 %v3519
  %v3957 = vunpack.c.h.b16 %v3519
  %v3958 = vunpack.c.l.b16 %v3520
  %v3959 = vunpack.c.h.b16 %v3520
  %v3960 = vunpack.c.l.b16 %v3521
  %v3961 = vunpack.c.h.b16 %v3521
  %v3962 = vunpack.c.l.b16 %v3522
  %v3963 = vunpack.c.h.b16 %v3522
  %v3964 = vunpack.c.l.b16 %v3523
  %v3965 = vunpack.c.h.b16 %v3523
  %v3966 = vunpack.c.l.b16 %v3524
  %v3967 = vunpack.c.h.b16 %v3524
  %v3968 = vunpack.c.l.b16 %v3525
  %v3969 = vunpack.c.h.b16 %v3525
  %v3970 = vunpack.c.l.b16 %v3526
  %v3971 = vunpack.c.h.b16 %v3526
  %v3972 = vunpack.c.l.b16 %v3527
  %v3973 = vunpack.c.h.b16 %v3527
  %v3974 = vunpack.c.l.b16 %v3528
  %v3975 = vunpack.c.h.b16 %v3528
  %v3976 = vunpack.c.l.b16 %v3529
  %v3977 = vunpack.c.h.b16 %v3529
  %v3978 = vunpack.c.l.b16 %v3530
  %v3979 = vunpack.c.h.b16 %v3530
  %v3980 = vunpack.c.l.b16 %v3531
  %v3981 = vunpack.c.h.b16 %v3531
  %v3982 = vunpack.c.l.b16 %v3532
  %v3983 = vunpack.c.h.b16 %v3532
  %v3984 = vunpack.c.l.b16 %v3533
  %v3985 = vunpack.c.h.b16 %v3533
  %v3986 = vunpack.c.l.b16 %v3534
  %v3987 = vunpack.c.h.b16 %v3534
  %v3988 = vunpack.c.l.b16 %v3535
  %v3989 = vunpack.c.h.b16 %v3535
  %v3990 = vunpack.c.l.b16 %v3536
  %v3991 = vunpack.c.h.b16 %v3536
  %v3992 = vunpack.c.l.b16 %v3537
  %v3993 = vunpack.c.h.b16 %v3537
  %v3994 = vunpack.c.l.b16 %v3538
  %v3995 = vunpack.c.h.b16 %v3538
  %v3996 = vunpack.c.l.b16 %v3539
  %v3997 = vunpack.c.h.b16 %v3539
  %v3998 = vunpack.c.l.b16 %v3540
  %v3999 = vunpack.c.h.b16 %v3540
  %v4000 = vunpack.c.l.b16 %v3541
  %v4001 = vunpack.c.h.b16 %v3541
  %v4002 = vunpack.c.l.b16 %v3542
  %v4003 = vunpack.c.h.b16 %v3542
  %v4004 = vunpack.c.l.b16 %v3543
  %v4005 = vunpack.c.h.b16 %v3543
  %v4006 = vunpack.c.l.b16 %v3544
  %v4007 = vunpack.c.h.b16 %v3544
  %v4008 = vunpack.c.l.b16 %v3545
  %v4009 = vunpack.c.h.b16 %v3545
  %v4010 = vunpack.c.l.b16 %v3546
  %v4011 = vunpack.c.h.b16 %v3546
  %v4012 = vunpack.c.l.b16 %v3547
  %v4013 = vunpack.c.h.b16 %v3547
  %v4014 = vunpack.c.l.b16 %v3548
  %v4015 = vunpack.c.h.b16 %v3548
  %v4016 = vunpack.c.l.b16 %v3549
  %v4017 = vunpack.c.h.b16 %v3549
  %v4018 = vunpack.c.l.b16 %v3550
  %v4019 = vunpack.c.h.b16 %v3550
  %v4020 = vunpack.c.l.b16 %v3551
  %v4021 = vunpack.c.h.b16 %v3551
  %v4022 = vunpack.c.l.b16 %v3552
  %v4023 = vunpack.c.h.b16 %v3552
  %v4024 = vunpack.c.l.b16 %v3553
  %v4025 = vunpack.c.h.b16 %v3553
  %v4026 = vunpack.c.l.b16 %v3554
  %v4027 = vunpack.c.h.b16 %v3554
  %v4028 = vunpack.c.l.b16 %v3555
  %v4029 = vunpack.c.h.b16 %v3555
  %v4030 = vunpack.c.l.b16 %v3556
  %v4031 = vunpack.c.h.b16 %v3556
  %v4032 = vunpack.c.l.b16 %v3557
  %v4033 = vunpack.c.h.b16 %v3557
  %v4034 = vunpack.c.l.b16 %v3558
  %v4035 = vunpack.c.h.b16 %v3558
  %v4036 = vunpack.c.l.b16 %v3559
  %v4037 = vunpack.c.h.b16 %v3559
  %v4038 = vunpack.c.l.b16 %v3560
  %v4039 = vunpack.c.h.b16 %v3560
  %v4040 = vunpack.c.l.b16 %v3561
  %v4041 = vunpack.c.h.b16 %v3561
  %v4042 = vunpack.c.l.b16 %v3562
  %v4043 = vunpack.c.h.b16 %v3562
  %v4044 = vunpack.c.l.b16 %v3563
  %v4045 = vunpack.c.h.b16 %v3563
  %v4046 = vunpack.c.l.b16 %v3564
  %v4047 = vunpack.c.h.b16 %v3564
  %v4048 = vunpack.c.l.b16 %v3565
  %v4049 = vunpack.c.h.b16 %v3565
  %v4050 = vunpack.c.l.b16 %v3566
  %v4051 = vunpack.c.h.b16 %v3566
  %v4052 = vunpack.c.l.b16 %v3567
  %v4053 = vunpack.c.h.b16 %v3567
  %v4054 = vunpack.c.l.b16 %v3568
  %v4055 = vunpack.c.h.b16 %v3568
  %v4056 = vunpack.c.l.b16 %v3569
  %v4057 = vunpack.c.h.b16 %v3569
  %v4058 = vunpack.c.l.b16 %v3570
  %v4059 = vunpack.c.h.b16 %v3570
  %v4060 = vunpack.c.l.b16 %v3571
  %v4061 = vunpack.c.h.b16 %v3571
  %v4062 = vunpack.c.l.b16 %v3572
  %v4063 = vunpack.c.h.b16 %v3572
  %v4064 = vunpack.c.l.b16 %v3573
  %v4065 = vunpack.c.h.b16 %v3573
  %v4066 = vunpack.c.l.b16 %v3574
  %v4067 = vunpack.c.h.b16 %v3574
  %v4068 = vunpack.c.l.b16 %v3575
  %v4069 = vunpack.c.h.b16 %v3575
  %v4070 = vunpack.c.l.b16 %v3576
  %v4071 = vunpack.c.h.b16 %v3576
  %v4072 = vunpack.c.l.b16 %v3577
  %v4073 = vunpack.c.h.b16 %v3577
  %v4074 = vunpack.c.l.b16 %v3578
  %v4075 = vunpack.c.h.b16 %v3578
  %v4076 = vunpack.c.l.b16 %v3579
  %v4077 = vunpack.c.h.b16 %v3579
  %v4078 = vunpack.c.l.b16 %v3580
  %v4079 = vunpack.c.h.b16 %v3580
  %v4080 = vunpack.c.l.b16 %v3581
  %v4081 = vunpack.c.h.b16 %v3581
  %v4082 = vunpack.c.l.b16 %v3582
  %v4083 = vunpack.c.h.b16 %v3582
  %v4084 = vunpack.c.l.b16 %v3583
  %v4085 = vunpack.c.h.b16 %v3583
  %v4086 = vunpack.c.l.b16 %v3584
  %v4087 = vunpack.c.h.b16 %v3584
  %v4088 = vunpack.c.l.b16 %v3585
  %v4089 = vunpack.c.h.b16 %v3585
  %v4090 = vunpack.c.l.b16 %v3586
  %v4091 = vunpack.c.h.b16 %v3586
  %v4092 = vunpack.c.l.b16 %v3587
  %v4093 = vunpack.c.h.b16 %v3587
  %v4094 = vunpack.c.l.b16 %v3588
  %v4095 = vunpack.c.h.b16 %v3588
  %v4096 = vunpack.c.l.b16 %v3589
  %v4097 = vunpack.c.h.b16 %v3589
  %v4098 = vunpack.c.l.b16 %v3590
  %v4099 = vunpack.c.h.b16 %v3590
  %v4100 = vunpack.c.l.b16 %v3591
  %v4101 = vunpack.c.h.b16 %v3591
  %v4102 = vunpack.c.l.b16 %v3592
  %v4103 = vunpack.c.h.b16 %v3592
  %v4104 = vunpack.c.l.b16 %v3593
  %v4105 = vunpack.c.h.b16 %v3593
  %v4106 = vunpack.c.l.b16 %v3594
  %v4107 = vunpack.c.h.b16 %v3594
  %v4108 = vunpack.c.l.b16 %v3595
  %v4109 = vunpack.c.h.b16 %v3595
  %v4110 = vunpack.c.l.b16 %v3596
  %v4111 = vunpack.c.h.b16 %v3596
  %v4112 = vunpack.c.l.b16 %v3597
  %v4113 = vunpack.c.h.b16 %v3597
  %v4114 = vunpack.c.l.b16 %v3598
  %v4115 = vunpack.c.h.b16 %v3598
  %v4116 = vunpack.c.l.b16 %v3599
  %v4117 = vunpack.c.h.b16 %v3599
  %v4118 = vunpack.c.l.b16 %v3600
  %v4119 = vunpack.c.h.b16 %v3600
  %v4120 = vunpack.c.l.b16 %v3601
  %v4121 = vunpack.c.h.b16 %v3601
  %v4122 = vunpack.c.l.b16 %v3602
  %v4123 = vunpack.c.h.b16 %v3602
  %v4124 = vunpack.c.l.b16 %v3603
  %v4125 = vunpack.c.h.b16 %v3603
  %v4126 = vunpack.c.l.b16 %v3604
  %v4127 = vunpack.c.h.b16 %v3604
  %v4128 = vunpack.c.l.b16 %v3605
  %v4129 = vunpack.c.h.b16 %v3605
  %v4130 = vunpack.c.l.b16 %v3606
  %v4131 = vunpack.c.h.b16 %v3606
  %v4132 = vunpack.c.l.b16 %v3607
  %v4133 = vunpack.c.h.b16 %v3607
  %v4134 = vunpack.c.l.b16 %v3608
  %v4135 = vunpack.c.h.b16 %v3608
  %v4136 = vunpack.c.l.b16 %v3609
  %v4137 = vunpack.c.h.b16 %v3609
  %v4138 = vunpack.c.l.b16 %v3610
  %v4139 = vunpack.c.h.b16 %v3610
  %v4140 = vunpack.c.l.b16 %v3611
  %v4141 = vunpack.c.h.b16 %v3611
  %v4142 = vunpack.c.l.b16 %v3612
  %v4143 = vunpack.c.h.b16 %v3612
  %v4144 = vunpack.c.l.b16 %v3613
  %v4145 = vunpack.c.h.b16 %v3613
  %v4146 = vunpack.c.l.b16 %v3614
  %v4147 = vunpack.c.h.b16 %v3614
  %v4148 = vunpack.c.l.b16 %v3615
  %v4149 = vunpack.c.h.b16 %v3615
  %v4150 = vunpack.c.l.b16 %v3616
  %v4151 = vunpack.c.h.b16 %v3616
  %v4152 = vunpack.c.l.b16 %v3617
  %v4153 = vunpack.c.h.b16 %v3617
  %v4154 = vunpack.c.l.b16 %v3618
  %v4155 = vunpack.c.h.b16 %v3618
  %v4156 = vunpack.c.l.b16 %v3619
  %v4157 = vunpack.c.h.b16 %v3619
  %v4158 = vunpack.c.l.b16 %v3620
  %v4159 = vunpack.c.h.b16 %v3620
  %v4160 = vunpack.c.l.b16 %v3621
  %v4161 = vunpack.c.h.b16 %v3621
  %v4162 = vunpack.c.l.b16 %v3622
  %v4163 = vunpack.c.h.b16 %v3622
  %v4164 = vunpack.c.l.b16 %v3623
  %v4165 = vunpack.c.h.b16 %v3623
  %v4166 = vunpack.c.l.b16 %v3624
  %v4167 = vunpack.c.h.b16 %v3624
  %v4168 = vunpack.c.l.b16 %v3625
  %v4169 = vunpack.c.h.b16 %v3625
  %v4170 = vunpack.c.l.b16 %v3626
  %v4171 = vunpack.c.h.b16 %v3626
  %v4172 = vunpack.c.l.b16 %v3627
  %v4173 = vunpack.c.h.b16 %v3627
  %v4174 = vunpack.c.l.b16 %v3628
  %v4175 = vunpack.c.h.b16 %v3628
  %v4176 = vunpack.c.l.b16 %v3629
  %v4177 = vunpack.c.h.b16 %v3629
  %v4178 = vunpack.c.l.b16 %v3630
  %v4179 = vunpack.c.h.b16 %v3630
  %v4180 = vunpack.c.l.b16 %v3631
  %v4181 = vunpack.c.h.b16 %v3631
  %v4182 = vunpack.c.l.b16 %v3632
  %v4183 = vunpack.c.h.b16 %v3632
  %v4184 = vunpack.c.l.b16 %v3633
  %v4185 = vunpack.c.h.b16 %v3633
  %v4186 = vunpack.c.l.b16 %v3634
  %v4187 = vunpack.c.h.b16 %v3634
  %v4188 = vunpack.c.l.b16 %v3635
  %v4189 = vunpack.c.h.b16 %v3635
  %v4190 = vunpack.c.l.b16 %v3636
  %v4191 = vunpack.c.h.b16 %v3636
  %v4192 = vunpack.c.l.b16 %v3637
  %v4193 = vunpack.c.h.b16 %v3637
  %v4194 = vunpack.c.l.b16 %v3638
  %v4195 = vunpack.c.h.b16 %v3638
  %v4196 = vunpack.c.l.b16 %v3639
  %v4197 = vunpack.c.h.b16 %v3639
  %v4198 = vunpack.c.l.b16 %v3640
  %v4199 = vunpack.c.h.b16 %v3640
  %v4200 = vunpack.c.l.b16 %v3641
  %v4201 = vunpack.c.h.b16 %v3641
  %v4202 = vunpack.c.l.b16 %v3642
  %v4203 = vunpack.c.h.b16 %v3642
  %v4204 = vunpack.c.l.b16 %v3643
  %v4205 = vunpack.c.h.b16 %v3643
  %v4206 = vunpack.c.l.b16 %v3644
  %v4207 = vunpack.c.h.b16 %v3644
  %v4208 = vunpack.c.l.b16 %v3645
  %v4209 = vunpack.c.h.b16 %v3645
  %v4210 = vunpack.c.l.b16 %v3646
  %v4211 = vunpack.c.h.b16 %v3646
  %v4212 = vunpack.c.l.b16 %v3647
  %v4213 = vunpack.c.h.b16 %v3647
  %v4214 = vunpack.c.l.b16 %v3648
  %v4215 = vunpack.c.h.b16 %v3648
  %v4216 = vunpack.c.l.b16 %v3649
  %v4217 = vunpack.c.h.b16 %v3649
  %v4218 = vunpack.c.l.b16 %v3650
  %v4219 = vunpack.c.h.b16 %v3650
  %v4220 = vunpack.c.l.b16 %v3651
  %v4221 = vunpack.c.h.b16 %v3651
  %v4222 = vunpack.c.l.b16 %v3652
  %v4223 = vunpack.c.h.b16 %v3652
  %v4224 = vunpack.c.l.b16 %v3653
  %v4225 = vunpack.c.h.b16 %v3653
  %v4226 = vunpack.c.l.b16 %v3654
  %v4227 = vunpack.c.h.b16 %v3654
  %v4228 = vunpack.c.l.b16 %v3655
  %v4229 = vunpack.c.h.b16 %v3655
  %v4230 = vunpack.c.l.b16 %v3656
  %v4231 = vunpack.c.h.b16 %v3656
  %v4232 = vunpack.c.l.b16 %v3657
  %v4233 = vunpack.c.h.b16 %v3657
  %v4234 = vunpack.c.l.b16 %v3658
  %v4235 = vunpack.c.h.b16 %v3658
  %v4236 = vunpack.c.l.b16 %v3659
  %v4237 = vunpack.c.h.b16 %v3659
  %v4238 = vunpack.c.l.b16 %v3660
  %v4239 = vunpack.c.h.b16 %v3660
  %v4240 = vunpack.c.l.b16 %v3661
  %v4241 = vunpack.c.h.b16 %v3661
  %v4242 = vunpack.c.l.b16 %v3662
  %v4243 = vunpack.c.h.b16 %v3662
  %v4244 = vunpack.c.l.b16 %v3663
  %v4245 = vunpack.c.h.b16 %v3663
  %v4246 = vunpack.c.l.b16 %v3664
  %v4247 = vunpack.c.h.b16 %v3664
  %v4248 = vunpack.c.l.b16 %v3665
  %v4249 = vunpack.c.h.b16 %v3665
  %v4250 = vunpack.c.l.b16 %v3666
  %v4251 = vunpack.c.h.b16 %v3666
  %v4252 = vunpack.c.l.b16 %v3667
  %v4253 = vunpack.c.h.b16 %v3667
  %v4254 = vunpack.c.l.b16 %v3668
  %v4255 = vunpack.c.h.b16 %v3668
  %v4256 = vunpack.c.l.b16 %v3669
  %v4257 = vunpack.c.h.b16 %v3669
  %v4258 = vunpack.c.l.b16 %v3670
  %v4259 = vunpack.c.h.b16 %v3670
  %v4260 = vunpack.c.l.b16 %v3671
  %v4261 = vunpack.c.h.b16 %v3671
  %v4262 = vunpack.c.l.b16 %v3672
  %v4263 = vunpack.c.h.b16 %v3672
  %v4264 = vunpack.c.l.b16 %v3673
  %v4265 = vunpack.c.h.b16 %v3673
  %v4266 = vunpack.c.l.b16 %v3674
  %v4267 = vunpack.c.h.b16 %v3674
  %v4268 = vunpack.c.l.b16 %v3675
  %v4269 = vunpack.c.h.b16 %v3675
  %v4270 = vunpack.c.l.b16 %v3676
  %v4271 = vunpack.c.h.b16 %v3676
  %v4272 = vunpack.c.l.b16 %v3677
  %v4273 = vunpack.c.h.b16 %v3677
  %v4274 = vunpack.c.l.b16 %v3678
  %v4275 = vunpack.c.h.b16 %v3678
  %v4276 = vunpack.c.l.b16 %v3679
  %v4277 = vunpack.c.h.b16 %v3679
  %v4278 = vpack.c.b16 %v3898, %v3894
  %v4279 = vpack.c.b16 %v3899, %v3895
  %v4280 = vpack.c.b16 %v3900, %v3896
  %v4281 = vpack.c.b16 %v3901, %v3897
  %v4282 = vpack.c.b16 %v3906, %v3902
  %v4283 = vpack.c.b16 %v3907, %v3903
  %v4284 = vpack.c.b16 %v3908, %v3904
  %v4285 = vpack.c.b16 %v3909, %v3905
  %v4286 = vpack.c.b16 %v3914, %v3910
  %v4287 = vpack.c.b16 %v3915, %v3911
  %v4288 = vpack.c.b16 %v3916, %v3912
  %v4289 = vpack.c.b16 %v3917, %v3913
  %v4290 = vpack.c.b16 %v3922, %v3918
  %v4291 = vpack.c.b16 %v3923, %v3919
  %v4292 = vpack.c.b16 %v3924, %v3920
  %v4293 = vpack.c.b16 %v3925, %v3921
  %v4294 = vpack.c.b16 %v3930, %v3926
  %v4295 = vpack.c.b16 %v3931, %v3927
  %v4296 = vpack.c.b16 %v3932, %v3928
  %v4297 = vpack.c.b16 %v3933, %v3929
  %v4298 = vpack.c.b16 %v3938, %v3934
  %v4299 = vpack.c.b16 %v3939, %v3935
  %v4300 = vpack.c.b16 %v3940, %v3936
  %v4301 = vpack.c.b16 %v3941, %v3937
  %v4302 = vpack.c.b16 %v3946, %v3942
  %v4303 = vpack.c.b16 %v3947, %v3943
  %v4304 = vpack.c.b16 %v3948, %v3944
  %v4305 = vpack.c.b16 %v3949, %v3945
  %v4306 = vpack.c.b16 %v3954, %v3950
  %v4307 = vpack.c.b16 %v3955, %v3951
  %v4308 = vpack.c.b16 %v3956, %v3952
  %v4309 = vpack.c.b16 %v3957, %v3953
  %v4310 = vpack.c.b16 %v3962, %v3958
  %v4311 = vpack.c.b16 %v3963, %v3959
  %v4312 = vpack.c.b16 %v3964, %v3960
  %v4313 = vpack.c.b16 %v3965, %v3961
  %v4314 = vpack.c.b16 %v3970, %v3966
  %v4315 = vpack.c.b16 %v3971, %v3967
  %v4316 = vpack.c.b16 %v3972, %v3968
  %v4317 = vpack.c.b16 %v3973, %v3969
  %v4318 = vpack.c.b16 %v3978, %v3974
  %v4319 = vpack.c.b16 %v3979, %v3975
  %v4320 = vpack.c.b16 %v3980, %v3976
  %v4321 = vpack.c.b16 %v3981, %v3977
  %v4322 = vpack.c.b16 %v3986, %v3982
  %v4323 = vpack.c.b16 %v3987, %v3983
  %v4324 = vpack.c.b16 %v3988, %v3984
  %v4325 = vpack.c.b16 %v3989, %v3985
  %v4326 = vpack.c.b16 %v3994, %v3990
  %v4327 = vpack.c.b16 %v3995, %v3991
  %v4328 = vpack.c.b16 %v3996, %v3992
  %v4329 = vpack.c.b16 %v3997, %v3993
  %v4330 = vpack.c.b16 %v4002, %v3998
  %v4331 = vpack.c.b16 %v4003, %v3999
  %v4332 = vpack.c.b16 %v4004, %v4000
  %v4333 = vpack.c.b16 %v4005, %v4001
  %v4334 = vpack.c.b16 %v4010, %v4006
  %v4335 = vpack.c.b16 %v4011, %v4007
  %v4336 = vpack.c.b16 %v4012, %v4008
  %v4337 = vpack.c.b16 %v4013, %v4009
  %v4338 = vpack.c.b16 %v4018, %v4014
  %v4339 = vpack.c.b16 %v4019, %v4015
  %v4340 = vpack.c.b16 %v4020, %v4016
  %v4341 = vpack.c.b16 %v4021, %v4017
  %v4342 = vpack.c.b16 %v4026, %v4022
  %v4343 = vpack.c.b16 %v4027, %v4023
  %v4344 = vpack.c.b16 %v4028, %v4024
  %v4345 = vpack.c.b16 %v4029, %v4025
  %v4346 = vpack.c.b16 %v4034, %v4030
  %v4347 = vpack.c.b16 %v4035, %v4031
  %v4348 = vpack.c.b16 %v4036, %v4032
  %v4349 = vpack.c.b16 %v4037, %v4033
  %v4350 = vpack.c.b16 %v4042, %v4038
  %v4351 = vpack.c.b16 %v4043, %v4039
  %v4352 = vpack.c.b16 %v4044, %v4040
  %v4353 = vpack.c.b16 %v4045, %v4041
  %v4354 = vpack.c.b16 %v4050, %v4046
  %v4355 = vpack.c.b16 %v4051, %v4047
  %v4356 = vpack.c.b16 %v4052, %v4048
  %v4357 = vpack.c.b16 %v4053, %v4049
  %v4358 = vpack.c.b16 %v4058, %v4054
  %v4359 = vpack.c.b16 %v4059, %v4055
  %v4360 = vpack.c.b16 %v4060, %v4056
  %v4361 = vpack.c.b16 %v4061, %v4057
  %v4362 = vpack.c.b16 %v4066, %v4062
  %v4363 = vpack.c.b16 %v4067, %v4063
  %v4364 = vpack.c.b16 %v4068, %v4064
  %v4365 = vpack.c.b16 %v4069, %v4065
  %v4366 = vpack.c.b16 %v4074, %v4070
  %v4367 = vpack.c.b16 %v4075, %v4071
  %v4368 = vpack.c.b16 %v4076, %v4072
  %v4369 = vpack.c.b16 %v4077, %v4073
  %v4370 = vpack.c.b16 %v4082, %v4078
  %v4371 = vpack.c.b16 %v4083, %v4079
  %v4372 = vpack.c.b16 %v4084, %v4080
  %v4373 = vpack.c.b16 %v4085, %v4081
  %v4374 = vpack.c.b16 %v4090, %v4086
  %v4375 = vpack.c.b16 %v4091, %v4087
  %v4376 = vpack.c.b16 %v4092, %v4088
  %v4377 = vpack.c.b16 %v4093, %v4089
  %v4378 = vpack.c.b16 %v4098, %v4094
  %v4379 = vpack.c.b16 %v4099, %v4095
  %v4380 = vpack.c.b16 %v4100, %v4096
  %v4381 = vpack.c.b16 %v4101, %v4097
  %v4382 = vpack.c.b16 %v4106, %v4102
  %v4383 = vpack.c.b16 %v4107, %v4103
  %v4384 = vpack.c.b16 %v4108, %v4104
  %v4385 = vpack.c.b16 %v4109, %v4105
  %v4386 = vpack.c.b16 %v4114, %v4110
  %v4387 = vpack.c.b16 %v4115, %v4111
  %v4388 = vpack.c.b16 %v4116, %v4112
  %v4389 = vpack.c.b16 %v4117, %v4113
  %v4390 = vpack.c.b16 %v4122, %v4118
  %v4391 = vpack.c.b16 %v4123, %v4119
  %v4392 = vpack.c.b16 %v4124, %v4120
  %v4393 = vpack.c.b16 %v4125, %v4121
  %v4394 = vpack.c.b16 %v4130, %v4126
  %v4395 = vpack.c.b16 %v4131, %v4127
  %v4396 = vpack.c.b16 %v4132, %v4128
  %v4397 = vpack.c.b16 %v4133, %v4129
  %v4398 = vpack.c.b16 %v4138, %v4134
  %v4399 = vpack.c.b16 %v4139, %v4135
  %v4400 = vpack.c.b16 %v4140, %v4136
  %v4401 = vpack.c.b16 %v4141, %v4137
  %v4402 = vpack.c.b16 %v4146, %v4142
  %v4403 = vpack.c.b16 %v4147, %v4143
  %v4404 = vpack.c.b16 %v4148, %v4144
  %v4405 = vpack.c.b16 %v4149, %v4145
  %v4406 = vpack.c.b16 %v4154, %v4150
  %v4407 = vpack.c.b16 %v4155, %v4151
  %v4408 = vpack.c.b16 %v4156, %v4152
  %v4409 = vpack.c.b16 %v4157, %v4153
  %v4410 = vpack.c.b16 %v4162, %v4158
  %v4411 = vpack.c.b16 %v4163, %v4159
  %v4412 = vpack.c.b16 %v4164, %v4160
  %v4413 = vpack.c.b16 %v4165, %v4161
  %v4414 = vpack.c.b16 %v4170, %v4166
  %v4415 = vpack.c.b16 %v4171, %v4167
  %v4416 = vpack.c.b16 %v4172, %v4168
  %v4417 = vpack.c.b16 %v4173, %v4169
  %v4418 = vpack.c.b16 %v4178, %v4174
  %v4419 = vpack.c.b16 %v4179, %v4175
  %v4420 = vpack.c.b16 %v4180, %v4176
  %v4421 = vpack.c.b16 %v4181, %v4177
  %v4422 = vpack.c.b16 %v4186, %v4182
  %v4423 = vpack.c.b16 %v4187, %v4183
  %v4424 = vpack.c.b16 %v4188, %v4184
  %v4425 = vpack.c.b16 %v4189, %v4185
  %v4426 = vpack.c.b16 %v4194, %v4190
  %v4427 = vpack.c.b16 %v4195, %v4191
  %v4428 = vpack.c.b16 %v4196, %v4192
  %v4429 = vpack.c.b16 %v4197, %v4193
  %v4430 = vpack.c.b16 %v4202, %v4198
  %v4431 = vpack.c.b16 %v4203, %v4199
  %v4432 = vpack.c.b16 %v4204, %v4200
  %v4433 = vpack.c.b16 %v4205, %v4201
  %v4434 = vpack.c.b16 %v4210, %v4206
  %v4435 = vpack.c.b16 %v4211, %v4207
  %v4436 = vpack.c.b16 %v4212, %v4208
  %v4437 = vpack.c.b16 %v4213, %v4209
  %v4438 = vpack.c.b16 %v4218, %v4214
  %v4439 = vpack.c.b16 %v4219, %v4215
  %v4440 = vpack.c.b16 %v4220, %v4216
  %v4441 = vpack.c.b16 %v4221, %v4217
  %v4442 = vpack.c.b16 %v4226, %v4222
  %v4443 = vpack.c.b16 %v4227, %v4223
  %v4444 = vpack.c.b16 %v4228, %v4224
  %v4445 = vpack.c.b16 %v4229, %v4225
  %v4446 = vpack.c.b16 %v4234, %v4230
  %v4447 = vpack.c.b16 %v4235, %v4231
  %v4448 = vpack.c.b16 %v4236, %v4232
  %v4449 = vpack.c.b16 %v4237, %v4233
  %v4450 = vpack.c.b16 %v4242, %v4238
  %v4451 = vpack.c.b16 %v4243, %v4239
  %v4452 = vpack.c.b16 %v4244, %v4240
  %v4453 = vpack.c.b16 %v4245, %v4241
  %v4454 = vpack.c.b16 %v4250, %v4246
  %v4455 = vpack.c.b16 %v4251, %v4247
  %v4456 = vpack.c.b16 %v4252, %v4248
  %v4457 = vpack.c.b16 %v4253, %v4249
  %v4458 = vpack.c.b16 %v4258, %v4254
  %v4459 = vpack.c.b16 %v4259, %v4255
  %v4460 = vpack.c.b16 %v4260, %v4256
  %v4461 = vpack.c.b16 %v4261, %v4257
  %v4462 = vpack.c.b16 %v4266, %v4262
  %v4463 = vpack.c.b16 %v4267, %v4263
  %v4464 = vpack.c.b16 %v4268, %v4264
  %v4465 = vpack.c.b16 %v4269, %v4265
  %v4466 = vpack.c.b16 %v4274, %v4270
  %v4467 = vpack.c.b16 %v4275, %v4271
  %v4468 = vpack.c.b16 %v4276, %v4272
  %v4469 = vpack.c.b16 %v4277, %v4273
  %4662 = vmatprep.subr.bf16.mxu0 %v4279
  %4663 = vmatpush1.bf16.msra.mxu0 %v4278
  %4664 = vmatprep.subr.bf16.mxu0 %v4283
  %4665 = vmatpush1.bf16.msra.mxu0 %v4282
  %4666 = vmatprep.subr.bf16.mxu0 %v4287
  %4667 = vmatpush1.bf16.msra.mxu0 %v4286
  %4668 = vmatprep.subr.bf16.mxu0 %v4291
  %4669 = vmatpush1.bf16.msra.mxu0 %v4290
  %4670 = vmatprep.subr.bf16.mxu0 %v4295
  %4671 = vmatpush1.bf16.msra.mxu0 %v4294
  %4672 = vmatprep.subr.bf16.mxu0 %v4299
  %4673 = vmatpush1.bf16.msra.mxu0 %v4298
  %4674 = vmatprep.subr.bf16.mxu0 %v4303
  %4675 = vmatpush1.bf16.msra.mxu0 %v4302
  %4676 = vmatprep.subr.bf16.mxu0 %v4307
  %4677 = vmatpush1.bf16.msra.mxu0 %v4306
  %4678 = vmatprep.subr.bf16.mxu0 %v4311
  %4679 = vmatpush1.bf16.msra.mxu0 %v4310
  %4680 = vmatprep.subr.bf16.mxu0 %v4315
  %4681 = vmatpush1.bf16.msra.mxu0 %v4314
  %4682 = vmatprep.subr.bf16.mxu0 %v4319
  %4683 = vmatpush1.bf16.msra.mxu0 %v4318
  %4684 = vmatprep.subr.bf16.mxu0 %v4323
  %4685 = vmatpush1.bf16.msra.mxu0 %v4322
  %4686 = vmatprep.subr.bf16.mxu0 %v4327
  %4687 = vmatpush1.bf16.msra.mxu0 %v4326
  %4688 = vmatprep.subr.bf16.mxu0 %v4331
  %4689 = vmatpush1.bf16.msra.mxu0 %v4330
  %4690 = vmatprep.subr.bf16.mxu0 %v4335
  %4691 = vmatpush1.bf16.msra.mxu0 %v4334
  %4692 = vmatprep.subr.bf16.mxu0 %v4339
  %4693 = vmatpush1.bf16.msra.mxu0 %v4338
  %4694 = vmatprep.mubr.bf16.mxu0 %v3483
  %4695 = vmatmul.mubr.bf16.gmra.mrb[0].mxu0 %v3482
  %v4696 = vpop.f32.mrb[0].mxu0
  %v4697 = vadd.f32 %v3685, %v4696
  %v4698 = vpop.f32.mrb[0].mxu0
  %v4699 = vadd.f32 %v3689, %v4698
  %v4700 = vpop.f32.mrb[0].mxu0
  %v4701 = vadd.f32 %v3685, %v4700
  %v4702 = vpop.f32.mrb[0].mxu0
  %v4703 = vadd.f32 %v3689, %v4702
  %4704 = vdwg.mxu0
  %4705 = vmatprep.subr.bf16.mxu0 %v4343
  %4706 = vmatpush1.bf16.msra.mxu0 %v4342
  %4707 = vmatprep.subr.bf16.mxu0 %v4347
  %4708 = vmatpush1.bf16.msra.mxu0 %v4346
  %4709 = vmatprep.subr.bf16.mxu0 %v4351
  %4710 = vmatpush1.bf16.msra.mxu0 %v4350
  %4711 = vmatprep.subr.bf16.mxu0 %v4355
  %4712 = vmatpush1.bf16.msra.mxu0 %v4354
  %4713 = vmatprep.subr.bf16.mxu0 %v4359
  %4714 = vmatpush1.bf16.msra.mxu0 %v4358
  %4715 = vmatprep.subr.bf16.mxu0 %v4363
  %4716 = vmatpush1.bf16.msra.mxu0 %v4362
  %4717 = vmatprep.subr.bf16.mxu0 %v4367
  %4718 = vmatpush1.bf16.msra.mxu0 %v4366
  %4719 = vmatprep.subr.bf16.mxu0 %v4371
  %4720 = vmatpush1.bf16.msra.mxu0 %v4370
  %4721 = vmatprep.subr.bf16.mxu0 %v4375
  %4722 = vmatpush1.bf16.msra.mxu0 %v4374
  %4723 = vmatprep.subr.bf16.mxu0 %v4379
  %4724 = vmatpush1.bf16.msra.mxu0 %v4378
  %4725 = vmatprep.subr.bf16.mxu0 %v4383
  %4726 = vmatpush1.bf16.msra.mxu0 %v4382
  %4727 = vmatprep.subr.bf16.mxu0 %v4387
  %4728 = vmatpush1.bf16.msra.mxu0 %v4386
  %4729 = vmatprep.subr.bf16.mxu0 %v4391
  %4730 = vmatpush1.bf16.msra.mxu0 %v4390
  %4731 = vmatprep.subr.bf16.mxu0 %v4395
  %4732 = vmatpush1.bf16.msra.mxu0 %v4394
  %4733 = vmatprep.subr.bf16.mxu0 %v4399
  %4734 = vmatpush1.bf16.msra.mxu0 %v4398
  %4735 = vmatprep.subr.bf16.mxu0 %v4403
  %4736 = vmatpush1.bf16.msra.mxu0 %v4402
  %4737 = vmatprep.mubr.bf16.mxu0 %v3485
  %4738 = vmatmul.mubr.bf16.gmra.mrb[0].mxu0 %v3484
  %v4739 = vpop.f32.mrb[0].mxu0
  %v4740 = vadd.f32 %v4697, %v4739
  %v4741 = vpop.f32.mrb[0].mxu0
  %v4742 = vadd.f32 %v4699, %v4741
  %v4743 = vpop.f32.mrb[0].mxu0
  %v4744 = vadd.f32 %v4701, %v4743
  %v4745 = vpop.f32.mrb[0].mxu0
  %v4746 = vadd.f32 %v4703, %v4745
  %4747 = vdwg.mxu0
  %4748 = vmatprep.subr.bf16.mxu0 %v4407
  %4749 = vmatpush1.bf16.msra.mxu0 %v4406
  %4750 = vmatprep.subr.bf16.mxu0 %v4411
  %4751 = vmatpush1.bf16.msra.mxu0 %v4410
  %4752 = vmatprep.subr.bf16.mxu0 %v4415
  %4753 = vmatpush1.bf16.msra.mxu0 %v4414
  %4754 = vmatprep.subr.bf16.mxu0 %v4419
  %4755 = vmatpush1.bf16.msra.mxu0 %v4418
  %4756 = vmatprep.subr.bf16.mxu0 %v4423
  %4757 = vmatpush1.bf16.msra.mxu0 %v4422
  %4758 = vmatprep.subr.bf16.mxu0 %v4427
  %4759 = vmatpush1.bf16.msra.mxu0 %v4426
  %4760 = vmatprep.subr.bf16.mxu0 %v4431
  %4761 = vmatpush1.bf16.msra.mxu0 %v4430
  %4762 = vmatprep.subr.bf16.mxu0 %v4435
  %4763 = vmatpush1.bf16.msra.mxu0 %v4434
  %4764 = vmatprep.subr.bf16.mxu0 %v4439
  %4765 = vmatpush1.bf16.msra.mxu0 %v4438
  %4766 = vmatprep.subr.bf16.mxu0 %v4443
  %4767 = vmatpush1.bf16.msra.mxu0 %v4442
  %4768 = vmatprep.subr.bf16.mxu0 %v4447
  %4769 = vmatpush1.bf16.msra.mxu0 %v4446
  %4770 = vmatprep.subr.bf16.mxu0 %v4451
  %4771 = vmatpush1.bf16.msra.mxu0 %v4450
  %4772 = vmatprep.subr.bf16.mxu0 %v4455
  %4773 = vmatpush1.bf16.msra.mxu0 %v4454
  %4774 = vmatprep.subr.bf16.mxu0 %v4459
  %4775 = vmatpush1.bf16.msra.mxu0 %v4458
  %4776 = vmatprep.subr.bf16.mxu0 %v4463
  %4777 = vmatpush1.bf16.msra.mxu0 %v4462
  %4778 = vmatprep.subr.bf16.mxu0 %v4467
  %4779 = vmatpush1.bf16.msra.mxu0 %v4466
  %4780 = vmatprep.mubr.bf16.mxu0 %v3487
  %4781 = vmatmul.mubr.bf16.gmra.mrb[0].mxu0 %v3486
  %v4782 = vpop.f32.mrb[0].mxu0
  %v4783 = vadd.f32 %v4740, %v4782
  %v4784 = vpop.f32.mrb[0].mxu0
  %v4785 = vadd.f32 %v4742, %v4784
  %v4786 = vpop.f32.mrb[0].mxu0
  %v4787 = vadd.f32 %v4744, %v4786
  %v4788 = vpop.f32.mrb[0].mxu0
  %v4789 = vadd.f32 %v4746, %v4788
  %4790 = vdwg.mxu0
  %4791 = vmatprep.subr.bf16.mxu0 %v4281
  %4792 = vmatpush1.bf16.msra.mxu0 %v4280
  %4793 = vmatprep.subr.bf16.mxu0 %v4285
  %4794 = vmatpush1.bf16.msra.mxu0 %v4284
  %4795 = vmatprep.subr.bf16.mxu0 %v4289
  %4796 = vmatpush1.bf16.msra.mxu0 %v4288
  %4797 = vmatprep.subr.bf16.mxu0 %v4293
  %4798 = vmatpush1.bf16.msra.mxu0 %v4292
  %4799 = vmatprep.subr.bf16.mxu0 %v4297
  %4800 = vmatpush1.bf16.msra.mxu0 %v4296
  %4801 = vmatprep.subr.bf16.mxu0 %v4301
  %4802 = vmatpush1.bf16.msra.mxu0 %v4300
  %4803 = vmatprep.subr.bf16.mxu0 %v4305
  %4804 = vmatpush1.bf16.msra.mxu0 %v4304
  %4805 = vmatprep.subr.bf16.mxu0 %v4309
  %4806 = vmatpush1.bf16.msra.mxu0 %v4308
  %4807 = vmatprep.subr.bf16.mxu0 %v4313
  %4808 = vmatpush1.bf16.msra.mxu0 %v4312
  %4809 = vmatprep.subr.bf16.mxu0 %v4317
  %4810 = vmatpush1.bf16.msra.mxu0 %v4316
  %4811 = vmatprep.subr.bf16.mxu0 %v4321
  %4812 = vmatpush1.bf16.msra.mxu0 %v4320
  %4813 = vmatprep.subr.bf16.mxu0 %v4325
  %4814 = vmatpush1.bf16.msra.mxu0 %v4324
  %4815 = vmatprep.subr.bf16.mxu0 %v4329
  %4816 = vmatpush1.bf16.msra.mxu0 %v4328
  %4817 = vmatprep.subr.bf16.mxu0 %v4333
  %4818 = vmatpush1.bf16.msra.mxu0 %v4332
  %4819 = vmatprep.subr.bf16.mxu0 %v4337
  %4820 = vmatpush1.bf16.msra.mxu0 %v4336
  %4821 = vmatprep.subr.bf16.mxu0 %v4341
  %4822 = vmatpush1.bf16.msra.mxu0 %v4340
  %4823 = vmatprep.mubr.bf16.mxu0 %v3483
  %4824 = vmatmul.mubr.bf16.gmra.mrb[0].mxu0 %v3482
  %v4825 = vpop.f32.mrb[0].mxu0
  %v4826 = vadd.f32 %v3693, %v4825
  %v4827 = vpop.f32.mrb[0].mxu0
  %v4828 = vadd.f32 %v3697, %v4827
  %v4829 = vpop.f32.mrb[0].mxu0
  %v4830 = vadd.f32 %v3693, %v4829
  %v4831 = vpop.f32.mrb[0].mxu0
  %v4832 = vadd.f32 %v3697, %v4831
  %4833 = vdwg.mxu0
  %4834 = vmatprep.subr.bf16.mxu0 %v4345
  %4835 = vmatpush1.bf16.msra.mxu0 %v4344
  %4836 = vmatprep.subr.bf16.mxu0 %v4349
  %4837 = vmatpush1.bf16.msra.mxu0 %v4348
  %4838 = vmatprep.subr.bf16.mxu0 %v4353
  %4839 = vmatpush1.bf16.msra.mxu0 %v4352
  %4840 = vmatprep.subr.bf16.mxu0 %v4357
  %4841 = vmatpush1.bf16.msra.mxu0 %v4356
  %4842 = vmatprep.subr.bf16.mxu0 %v4361
  %4843 = vmatpush1.bf16.msra.mxu0 %v4360
  %4844 = vmatprep.subr.bf16.mxu0 %v4365
  %4845 = vmatpush1.bf16.msra.mxu0 %v4364
  %4846 = vmatprep.subr.bf16.mxu0 %v4369
  %4847 = vmatpush1.bf16.msra.mxu0 %v4368
  %4848 = vmatprep.subr.bf16.mxu0 %v4373
  %4849 = vmatpush1.bf16.msra.mxu0 %v4372
  %4850 = vmatprep.subr.bf16.mxu0 %v4377
  %4851 = vmatpush1.bf16.msra.mxu0 %v4376
  %4852 = vmatprep.subr.bf16.mxu0 %v4381
  %4853 = vmatpush1.bf16.msra.mxu0 %v4380
  %4854 = vmatprep.subr.bf16.mxu0 %v4385
  %4855 = vmatpush1.bf16.msra.mxu0 %v4384
  %4856 = vmatprep.subr.bf16.mxu0 %v4389
  %4857 = vmatpush1.bf16.msra.mxu0 %v4388
  %4858 = vmatprep.subr.bf16.mxu0 %v4393
  %4859 = vmatpush1.bf16.msra.mxu0 %v4392
  %4860 = vmatprep.subr.bf16.mxu0 %v4397
  %4861 = vmatpush1.bf16.msra.mxu0 %v4396
  %4862 = vmatprep.subr.bf16.mxu0 %v4401
  %4863 = vmatpush1.bf16.msra.mxu0 %v4400
  %4864 = vmatprep.subr.bf16.mxu0 %v4405
  %4865 = vmatpush1.bf16.msra.mxu0 %v4404
  %4866 = vmatprep.mubr.bf16.mxu0 %v3485
  %4867 = vmatmul.mubr.bf16.gmra.mrb[0].mxu0 %v3484
  %v4868 = vpop.f32.mrb[0].mxu0
  %v4869 = vadd.f32 %v4826, %v4868
  %v4870 = vpop.f32.mrb[0].mxu0
  %v4871 = vadd.f32 %v4828, %v4870
  %v4872 = vpop.f32.mrb[0].mxu0
  %v4873 = vadd.f32 %v4830, %v4872
  %v4874 = vpop.f32.mrb[0].mxu0
  %v4875 = vadd.f32 %v4832, %v4874
  %4876 = vdwg.mxu0
  %4877 = vmatprep.subr.bf16.mxu0 %v4409
  %4878 = vmatpush1.bf16.msra.mxu0 %v4408
  %4879 = vmatprep.subr.bf16.mxu0 %v4413
  %4880 = vmatpush1.bf16.msra.mxu0 %v4412
  %4881 = vmatprep.subr.bf16.mxu0 %v4417
  %4882 = vmatpush1.bf16.msra.mxu0 %v4416
  %4883 = vmatprep.subr.bf16.mxu0 %v4421
  %4884 = vmatpush1.bf16.msra.mxu0 %v4420
  %4885 = vmatprep.subr.bf16.mxu0 %v4425
  %4886 = vmatpush1.bf16.msra.mxu0 %v4424
  %4887 = vmatprep.subr.bf16.mxu0 %v4429
  %4888 = vmatpush1.bf16.msra.mxu0 %v4428
  %4889 = vmatprep.subr.bf16.mxu0 %v4433
  %4890 = vmatpush1.bf16.msra.mxu0 %v4432
  %4891 = vmatprep.subr.bf16.mxu0 %v4437
  %4892 = vmatpush1.bf16.msra.mxu0 %v4436
  %4893 = vmatprep.subr.bf16.mxu0 %v4441
  %4894 = vmatpush1.bf16.msra.mxu0 %v4440
  %4895 = vmatprep.subr.bf16.mxu0 %v4445
  %4896 = vmatpush1.bf16.msra.mxu0 %v4444
  %4897 = vmatprep.subr.bf16.mxu0 %v4449
  %4898 = vmatpush1.bf16.msra.mxu0 %v4448
  %4899 = vmatprep.subr.bf16.mxu0 %v4453
  %4900 = vmatpush1.bf16.msra.mxu0 %v4452
  %4901 = vmatprep.subr.bf16.mxu0 %v4457
  %4902 = vmatpush1.bf16.msra.mxu0 %v4456
  %4903 = vmatprep.subr.bf16.mxu0 %v4461
  %4904 = vmatpush1.bf16.msra.mxu0 %v4460
  %4905 = vmatprep.subr.bf16.mxu0 %v4465
  %4906 = vmatpush1.bf16.msra.mxu0 %v4464
  %4907 = vmatprep.subr.bf16.mxu0 %v4469
  %4908 = vmatpush1.bf16.msra.mxu0 %v4468
  %4909 = vmatprep.mubr.bf16.mxu0 %v3487
  %4910 = vmatmul.mubr.bf16.gmra.mrb[0].mxu0 %v3486
  %v4911 = vpop.f32.mrb[0].mxu0
  %v4912 = vadd.f32 %v4869, %v4911
  %v4913 = vpop.f32.mrb[0].mxu0
  %v4914 = vadd.f32 %v4871, %v4913
  %v4915 = vpop.f32.mrb[0].mxu0
  %v4916 = vadd.f32 %v4873, %v4915
  %v4917 = vpop.f32.mrb[0].mxu0
  %v4918 = vadd.f32 %v4875, %v4917
  %4919 = vdwg.mxu0
  %v4920 = vmax.f32 %v4783, 0.0
  %v4921 = vmax.f32 %v4785, 0.0
  %v4922 = vmax.f32 %v4912, 0.0
  %v4923 = vmax.f32 %v4914, 0.0
  %v4924 = vmax.f32 %v4787, 0.0
  %v4925 = vmax.f32 %v4789, 0.0
  %v4926 = vmax.f32 %v4916, 0.0
  %v4927 = vmax.f32 %v4918, 0.0
  %v4928 = vpack.c.bf16 %v4924, %v4920
  %v4929 = vpack.c.bf16 %v4925, %v4921
  %v4930 = vpack.c.bf16 %v4926, %v4922
  %v4931 = vpack.c.bf16 %v4927, %v4923
  %v4932 = vld [vmem:[%s6] sm:$0xf]
  %v4933 = vld [vmem:[%s6 + $0x4] sm:$0xf]
  %v4934 = vld [vmem:[%s6 + $0x8] sm:$0xf]
  %v4935 = vld [vmem:[%s6 + $0xc] sm:$0xf]
  %v4936 = vld [vmem:[%s6 + $0x10] sm:$0xf]
  %v4937 = vld [vmem:[%s6 + $0x14] sm:$0xf]
  %v4938 = vld [vmem:[%s6 + $0x18] sm:$0xf]
  %v4939 = vld [vmem:[%s6 + $0x1c] sm:$0xf]
  %v4940 = vld [vmem:[%s6 + $0x20] sm:$0xf]
  %v4941 = vld [vmem:[%s6 + $0x24] sm:$0xf]
  %v4942 = vld [vmem:[%s6 + $0x28] sm:$0xf]
  %v4943 = vld [vmem:[%s6 + $0x2c] sm:$0xf]
  %v4944 = vld [vmem:[%s6 + $0x30] sm:$0xf]
  %v4945 = vld [vmem:[%s6 + $0x34] sm:$0xf]
  %v4946 = vld [vmem:[%s6 + $0x38] sm:$0xf]
  %v4947 = vld [vmem:[%s6 + $0x3c] sm:$0xf]
  %v4948 = vld [vmem:[%s6 + $0x40] sm:$0xf]
  %v4949 = vld [vmem:[%s6 + $0x44] sm:$0xf]
  %v4950 = vld [vmem:[%s6 + $0x48] sm:$0xf]
  %v4951 = vld [vmem:[%s6 + $0x4c] sm:$0xf]
  %v4952 = vld [vmem:[%s6 + $0x50] sm:$0xf]
  %v4953 = vld [vmem:[%s6 + $0x54] sm:$0xf]
  %v4954 = vld [vmem:[%s6 + $0x58] sm:$0xf]
  %v4955 = vld [vmem:[%s6 + $0x5c] sm:$0xf]
  %v4956 = vld [vmem:[%s6 + $0x60] sm:$0xf]
  %v4957 = vld [vmem:[%s6 + $0x64] sm:$0xf]
  %v4958 = vld [vmem:[%s6 + $0x68] sm:$0xf]
  %v4959 = vld [vmem:[%s6 + $0x6c] sm:$0xf]
  %v4960 = vld [vmem:[%s6 + $0x70] sm:$0xf]
  %v4961 = vld [vmem:[%s6 + $0x74] sm:$0xf]
  %v4962 = vld [vmem:[%s6 + $0x78] sm:$0xf]
  %v4963 = vld [vmem:[%s6 + $0x7c] sm:$0xf]
  %v4964 = vld [vmem:[%s6 + $0x80] sm:$0xf]
  %v4965 = vld [vmem:[%s6 + $0x84] sm:$0xf]
  %v4966 = vld [vmem:[%s6 + $0x88] sm:$0xf]
  %v4967 = vld [vmem:[%s6 + $0x8c] sm:$0xf]
  %v4968 = vld [vmem:[%s6 + $0x90] sm:$0xf]
  %v4969 = vld [vmem:[%s6 + $0x94] sm:$0xf]
  %v4970 = vld [vmem:[%s6 + $0x98] sm:$0xf]
  %v4971 = vld [vmem:[%s6 + $0x9c] sm:$0xf]
  %v4972 = vld [vmem:[%s6 + $0xa0] sm:$0xf]
  %v4973 = vld [vmem:[%s6 + $0xa4] sm:$0xf]
  %v4974 = vld [vmem:[%s6 + $0xa8] sm:$0xf]
  %v4975 = vld [vmem:[%s6 + $0xac] sm:$0xf]
  %v4976 = vld [vmem:[%s6 + $0xb0] sm:$0xf]
  %v4977 = vld [vmem:[%s6 + $0xb4] sm:$0xf]
  %v4978 = vld [vmem:[%s6 + $0xb8] sm:$0xf]
  %v4979 = vld [vmem:[%s6 + $0xbc] sm:$0xf]
  %v4980 = vld [vmem:[%s6 + $0xc0] sm:$0xf]
  %v4981 = vld [vmem:[%s6 + $0xc4] sm:$0xf]
  %v4982 = vld [vmem:[%s6 + $0xc8] sm:$0xf]
  %v4983 = vld [vmem:[%s6 + $0xcc] sm:$0xf]
  %v4984 = vld [vmem:[%s6 + $0xd0] sm:$0xf]
  %v4985 = vld [vmem:[%s6 + $0xd4] sm:$0xf]
  %v4986 = vld [vmem:[%s6 + $0xd8] sm:$0xf]
  %v4987 = vld [vmem:[%s6 + $0xdc] sm:$0xf]
  %v4988 = vld [vmem:[%s6 + $0xe0] sm:$0xf]
  %v4989 = vld [vmem:[%s6 + $0xe4] sm:$0xf]
  %v4990 = vld [vmem:[%s6 + $0xe8] sm:$0xf]
  %v4991 = vld [vmem:[%s6 + $0xec] sm:$0xf]
  %v4992 = vld [vmem:[%s6 + $0xf0] sm:$0xf]
  %v4993 = vld [vmem:[%s6 + $0xf4] sm:$0xf]
  %v4994 = vld [vmem:[%s6 + $0xf8] sm:$0xf]
  %v4995 = vld [vmem:[%s6 + $0xfc] sm:$0xf]
  %v4996 = vld [vmem:[%s7] sm:$0x1]
  %v4998 = vlaneseq
  %v4999 = vshrl.u32 %v4998, 7
  %v5000 = vsub.s32 0, %v4999
  %v5001 = vrot.slane %v4996, %v5000
  %v5067 = vunpack.c.l.b16 %v4932
  %v5068 = vunpack.c.l.b16 %v4933
  %v5069 = vunpack.c.l.b16 %v4934
  %v5070 = vunpack.c.l.b16 %v4935
  %v5071 = vunpack.c.l.b16 %v4936
  %v5072 = vunpack.c.l.b16 %v4937
  %v5073 = vunpack.c.l.b16 %v4938
  %v5074 = vunpack.c.l.b16 %v4939
  %v5075 = vunpack.c.l.b16 %v4940
  %v5076 = vunpack.c.l.b16 %v4941
  %v5077 = vunpack.c.l.b16 %v4942
  %v5078 = vunpack.c.l.b16 %v4943
  %v5079 = vunpack.c.l.b16 %v4944
  %v5080 = vunpack.c.l.b16 %v4945
  %v5081 = vunpack.c.l.b16 %v4946
  %v5082 = vunpack.c.l.b16 %v4947
  %v5083 = vunpack.c.l.b16 %v4948
  %v5084 = vunpack.c.l.b16 %v4949
  %v5085 = vunpack.c.l.b16 %v4950
  %v5086 = vunpack.c.l.b16 %v4951
  %v5087 = vunpack.c.l.b16 %v4952
  %v5088 = vunpack.c.l.b16 %v4953
  %v5089 = vunpack.c.l.b16 %v4954
  %v5090 = vunpack.c.l.b16 %v4955
  %v5091 = vunpack.c.l.b16 %v4956
  %v5092 = vunpack.c.l.b16 %v4957
  %v5093 = vunpack.c.l.b16 %v4958
  %v5094 = vunpack.c.l.b16 %v4959
  %v5095 = vunpack.c.l.b16 %v4960
  %v5096 = vunpack.c.l.b16 %v4961
  %v5097 = vunpack.c.l.b16 %v4962
  %v5098 = vunpack.c.l.b16 %v4963
  %v5099 = vunpack.c.l.b16 %v4964
  %v5100 = vunpack.c.l.b16 %v4965
  %v5101 = vunpack.c.l.b16 %v4966
  %v5102 = vunpack.c.l.b16 %v4967
  %v5103 = vunpack.c.l.b16 %v4968
  %v5104 = vunpack.c.l.b16 %v4969
  %v5105 = vunpack.c.l.b16 %v4970
  %v5106 = vunpack.c.l.b16 %v4971
  %v5107 = vunpack.c.l.b16 %v4972
  %v5108 = vunpack.c.l.b16 %v4973
  %v5109 = vunpack.c.l.b16 %v4974
  %v5110 = vunpack.c.l.b16 %v4975
  %v5111 = vunpack.c.l.b16 %v4976
  %v5112 = vunpack.c.l.b16 %v4977
  %v5113 = vunpack.c.l.b16 %v4978
  %v5114 = vunpack.c.l.b16 %v4979
  %v5115 = vunpack.c.l.b16 %v4980
  %v5116 = vunpack.c.l.b16 %v4981
  %v5117 = vunpack.c.l.b16 %v4982
  %v5118 = vunpack.c.l.b16 %v4983
  %v5119 = vunpack.c.l.b16 %v4984
  %v5120 = vunpack.c.l.b16 %v4985
  %v5121 = vunpack.c.l.b16 %v4986
  %v5122 = vunpack.c.l.b16 %v4987
  %v5123 = vunpack.c.l.b16 %v4988
  %v5124 = vunpack.c.l.b16 %v4989
  %v5125 = vunpack.c.l.b16 %v4990
  %v5126 = vunpack.c.l.b16 %v4991
  %v5127 = vunpack.c.l.b16 %v4992
  %v5128 = vunpack.c.l.b16 %v4993
  %v5129 = vunpack.c.l.b16 %v4994
  %v5130 = vunpack.c.l.b16 %v4995
  %v5131 = vpack.c.b16 %v5068, %v5067
  %v5132 = vpack.c.b16 %v5070, %v5069
  %v5133 = vpack.c.b16 %v5072, %v5071
  %v5134 = vpack.c.b16 %v5074, %v5073
  %v5135 = vpack.c.b16 %v5076, %v5075
  %v5136 = vpack.c.b16 %v5078, %v5077
  %v5137 = vpack.c.b16 %v5080, %v5079
  %v5138 = vpack.c.b16 %v5082, %v5081
  %v5139 = vpack.c.b16 %v5084, %v5083
  %v5140 = vpack.c.b16 %v5086, %v5085
  %v5141 = vpack.c.b16 %v5088, %v5087
  %v5142 = vpack.c.b16 %v5090, %v5089
  %v5143 = vpack.c.b16 %v5092, %v5091
  %v5144 = vpack.c.b16 %v5094, %v5093
  %v5145 = vpack.c.b16 %v5096, %v5095
  %v5146 = vpack.c.b16 %v5098, %v5097
  %v5147 = vpack.c.b16 %v5100, %v5099
  %v5148 = vpack.c.b16 %v5102, %v5101
  %v5149 = vpack.c.b16 %v5104, %v5103
  %v5150 = vpack.c.b16 %v5106, %v5105
  %v5151 = vpack.c.b16 %v5108, %v5107
  %v5152 = vpack.c.b16 %v5110, %v5109
  %v5153 = vpack.c.b16 %v5112, %v5111
  %v5154 = vpack.c.b16 %v5114, %v5113
  %v5155 = vpack.c.b16 %v5116, %v5115
  %v5156 = vpack.c.b16 %v5118, %v5117
  %v5157 = vpack.c.b16 %v5120, %v5119
  %v5158 = vpack.c.b16 %v5122, %v5121
  %v5159 = vpack.c.b16 %v5124, %v5123
  %v5160 = vpack.c.b16 %v5126, %v5125
  %v5161 = vpack.c.b16 %v5128, %v5127
  %v5162 = vpack.c.b16 %v5130, %v5129
  %5195 = vmatprep.subr.bf16.mxu0 0
  %5196 = vmatpush1.bf16.msra.mxu0 %v5131
  %5197 = vmatprep.subr.bf16.mxu0 0
  %5198 = vmatpush1.bf16.msra.mxu0 %v5132
  %5199 = vmatprep.subr.bf16.mxu0 0
  %5200 = vmatpush1.bf16.msra.mxu0 %v5133
  %5201 = vmatprep.subr.bf16.mxu0 0
  %5202 = vmatpush1.bf16.msra.mxu0 %v5134
  %5203 = vmatprep.subr.bf16.mxu0 0
  %5204 = vmatpush1.bf16.msra.mxu0 %v5135
  %5205 = vmatprep.subr.bf16.mxu0 0
  %5206 = vmatpush1.bf16.msra.mxu0 %v5136
  %5207 = vmatprep.subr.bf16.mxu0 0
  %5208 = vmatpush1.bf16.msra.mxu0 %v5137
  %5209 = vmatprep.subr.bf16.mxu0 0
  %5210 = vmatpush1.bf16.msra.mxu0 %v5138
  %5211 = vmatprep.subr.bf16.mxu0 0
  %5212 = vmatpush1.bf16.msra.mxu0 %v5139
  %5213 = vmatprep.subr.bf16.mxu0 0
  %5214 = vmatpush1.bf16.msra.mxu0 %v5140
  %5215 = vmatprep.subr.bf16.mxu0 0
  %5216 = vmatpush1.bf16.msra.mxu0 %v5141
  %5217 = vmatprep.subr.bf16.mxu0 0
  %5218 = vmatpush1.bf16.msra.mxu0 %v5142
  %5219 = vmatprep.subr.bf16.mxu0 0
  %5220 = vmatpush1.bf16.msra.mxu0 %v5143
  %5221 = vmatprep.subr.bf16.mxu0 0
  %5222 = vmatpush1.bf16.msra.mxu0 %v5144
  %5223 = vmatprep.subr.bf16.mxu0 0
  %5224 = vmatpush1.bf16.msra.mxu0 %v5145
  %5225 = vmatprep.subr.bf16.mxu0 0
  %5226 = vmatpush1.bf16.msra.mxu0 %v5146
  %5227 = vmatprep.mubr.bf16.mxu0 %v4929
  %5228 = vmatmul.mubr.bf16.gmra.mrb[0].mxu0 %v4928
  %v5229 = vpop.f32.mrb[0].mxu0
  %v5230 = vadd.f32 %v5001, %v5229
  %v5231 = vpop.f32.mrb[0].mxu0
  %v5232 = vpop.f32.mrb[0].mxu0
  %v5233 = vadd.f32 %v5001, %v5232
  %v5234 = vpop.f32.mrb[0].mxu0
  %5235 = vdwg.mxu0
  %5236 = vmatprep.subr.bf16.mxu0 0
  %5237 = vmatpush1.bf16.msra.mxu0 %v5147
  %5238 = vmatprep.subr.bf16.mxu0 0
  %5239 = vmatpush1.bf16.msra.mxu0 %v5148
  %5240 = vmatprep.subr.bf16.mxu0 0
  %5241 = vmatpush1.bf16.msra.mxu0 %v5149
  %5242 = vmatprep.subr.bf16.mxu0 0
  %5243 = vmatpush1.bf16.msra.mxu0 %v5150
  %5244 = vmatprep.subr.bf16.mxu0 0
  %5245 = vmatpush1.bf16.msra.mxu0 %v5151
  %5246 = vmatprep.subr.bf16.mxu0 0
  %5247 = vmatpush1.bf16.msra.mxu0 %v5152
  %5248 = vmatprep.subr.bf16.mxu0 0
  %5249 = vmatpush1.bf16.msra.mxu0 %v5153
  %5250 = vmatprep.subr.bf16.mxu0 0
  %5251 = vmatpush1.bf16.msra.mxu0 %v5154
  %5252 = vmatprep.subr.bf16.mxu0 0
  %5253 = vmatpush1.bf16.msra.mxu0 %v5155
  %5254 = vmatprep.subr.bf16.mxu0 0
  %5255 = vmatpush1.bf16.msra.mxu0 %v5156
  %5256 = vmatprep.subr.bf16.mxu0 0
  %5257 = vmatpush1.bf16.msra.mxu0 %v5157
  %5258 = vmatprep.subr.bf16.mxu0 0
  %5259 = vmatpush1.bf16.msra.mxu0 %v5158
  %5260 = vmatprep.subr.bf16.mxu0 0
  %5261 = vmatpush1.bf16.msra.mxu0 %v5159
  %5262 = vmatprep.subr.bf16.mxu0 0
  %5263 = vmatpush1.bf16.msra.mxu0 %v5160
  %5264 = vmatprep.subr.bf16.mxu0 0
  %5265 = vmatpush1.bf16.msra.mxu0 %v5161
  %5266 = vmatprep.subr.bf16.mxu0 0
  %5267 = vmatpush1.bf16.msra.mxu0 %v5162
  %5268 = vmatprep.mubr.bf16.mxu0 %v4931
  %5269 = vmatmul.mubr.bf16.gmra.mrb[0].mxu0 %v4930
  %v5270 = vpop.f32.mrb[0].mxu0
  %v5271 = vadd.f32 %v5230, %v5270
  %v5272 = vpop.f32.mrb[0].mxu0
  %v5273 = vpop.f32.mrb[0].mxu0
  %v5274 = vadd.f32 %v5233, %v5273
  %v5275 = vpop.f32.mrb[0].mxu0
  %5276 = vdwg.mxu0
  %v5277 = vsub.f32 %v5271, %v5274
  %v5278 = vmul.f32 %v5277, %v5277
  %5280 = vrot.lane.b32.xlu0 %v5278, 126
  %v5281 = vpop.permute.xlu0 %5280
  %vm5283 = vcmask 80896
  %v5284 = vsel %vm5283, %v5281, 0.0
  %5285 = vadd.xlane.f32.xlu0 %v5284
  %v5286 = vpop.xlane.xlu0 %5285
  %v5287 = vadd.f32 %v5286, 1e-09
  %v5288 = vrsqrt.pop %v5287
  %v5289 = vmul.f32 %v5287, %v5288
  %vm5290 = vcmp.eq.f32.partialorder %v5287, inf
  %v5291 = vsel %vm5290, %v5287, %v5289
  %vm5292 = vcmp.eq.f32.partialorder %v5287, 0.0
  %v5293 = vand.u32 %v5287, 2147483648
  %v5294 = vsel %vm5292, %v5293, %v5291
  %v5295 = vsub.f32 1.0, %v5294
  %v5296 = vmax.f32 %v5295, 0.0
  %v5297 = vld [vmem:[%s1] sm:$0xff]
  %v5298 = vmul.f32 %v5297, %v5286
  %v5299 = vsub.f32 1.0, %v5297
  %v5300 = vmul.f32 %v5299, %v5296
  %v5301 = vmul.f32 %v5300, %v5296
  %v5302 = vadd.f32 %v5298, %v5301
  %v5303 = vmul.f32 %v5302, 0.5
  %5305 = vrot.lane.b32.xlu0 %v5303, 2
  %v5306 = vpop.permute.xlu0 %5305
  %vm5308 = vcmask 15360
  %v5309 = vsel %vm5308, %v5271, %v5306
  %vm5310 = vcmask 23552
  %v5311 = vsel %vm5310, %v5309, 0.0
  %5312 = vst [vmem:[%s8] sm:$0xff] %v5311
  // Predicated region
  $region34: #{net_forward.1} parent=0 // pred_check
    _
  $region35: #{net_forward.1} parent=0 // pred_check_branch
    %5314 = sbr.rel (0) target = $region37
  $region36: #{net_forward.1} parent=0 // pred_region
    _
  $region37: #{net_forward.1} parent=0 // pred_fallthru
    _
  // Predicated region
  $region38: #{net_forward.1} parent=0 // pred_check
    _
  $region39: #{net_forward.1} parent=0 // pred_check_branch
    %5316 = sbr.rel (0) target = $region41
  $region40: #{net_forward.1} parent=0 // pred_region
    _
  $region41: #{net_forward.1} parent=0 // pred_fallthru
    _

</llo_original>
